<compile_context>
chip_gen: v5e
topology: v5e:2x2
jax: 0.10.0
libtpu: 0.0.40
codegen_flags: <defaults>
</compile_context>

<pallas_src>
import jax
import jax.numpy as jnp
from jax.experimental import pallas as pl
from jax.experimental.pallas import tpu as pltpu


# --------------------------- kernel body ---------------------------

def _ffn_kernel(x_ref, w1_ref, b1_ref, w2_ref, b2_ref, o_ref):
    """One (row-tile i, hidden-tile k) grid step of the FFN.

    x_ref  : (tm, D)  bf16  activation row tile (full feature dim)
    w1_ref : (D, th)  bf16  fc1 weight column tile
    b1_ref : (1, th)  f32   fc1 bias tile
    w2_ref : (th, D)  bf16  fc2 weight row tile
    b2_ref : (1, D)   f32   fc2 bias (same block every step)
    o_ref  : (tm, D)  f32   output row tile; resident across the hidden axis,
                            used directly as the f32 accumulator.
    """
    k = pl.program_id(1)

    # fc1 for this hidden tile: bf16 MXU operands, f32 accumulation.
    h = jnp.dot(x_ref[...], w1_ref[...],
                preferred_element_type=jnp.float32) + b1_ref[...]

    # SiLU in f32 (VPU mul + EUP sigmoid).
    a = h * jax.nn.sigmoid(h)

    # fc2 partial contraction over this hidden tile (f32 accumulation).
    partial = jnp.dot(a.astype(jnp.bfloat16), w2_ref[...],
                      preferred_element_type=jnp.float32)

    @pl.when(k == 0)
    def _first():
        o_ref[...] = partial          # init with first partial (no zero-fill pass)

    @pl.when(k != 0)
    def _rest():
        o_ref[...] += partial

    @pl.when(k == pl.num_programs(1) - 1)
    def _finalize():
        o_ref[...] += b2_ref[...]


# --------------------------- tiling helpers ---------------------------

def _round_up(n, m):
    return ((n + m - 1) // m) * m


def _vmem_capacity_bytes():
    try:
        info = pltpu.get_tpu_info()
        cap = getattr(info, "vmem_capacity_bytes", None)
        if cap:
            return int(cap)
    except Exception:
        pass
    return 128 * 1024 * 1024  # conservative v5e/v6e default


def _vmem_estimate(tm, th, d):
    """Rough double-buffered working-set estimate (bytes)."""
    x_b = 2 * tm * d * 2        # bf16 x tile, 2 buffers
    w1_b = 2 * d * th * 2       # bf16 w1 tile, 2 buffers
    w2_b = 2 * th * d * 2       # bf16 w2 tile, 2 buffers
    bias = 2 * (th + d) * 4     # f32 biases, 2 buffers
    o_b = 2 * tm * d * 4        # f32 resident output/accumulator, 2 buffers
    return x_b + w1_b + w2_b + bias + o_b


def _choose_config(m, d, h):
    cap = _vmem_capacity_bytes()
    is_small_vmem = cap <= 64 * 1024 * 1024           # v7x-like
    budget = min(int(cap * 0.82), 104 * 1024 * 1024)  # ~52 MiB on v7x, ~104 MiB else

    # Hidden tile: prefer multiples of 256 (v6e/v7x MXU is 2x256^2).
    if h % 512 == 0:
        th = 512
    elif h % 256 == 0:
        th = 256
    elif h >= 256:
        th = 256            # pad H up to a multiple of 256
    else:
        th = 128            # small hidden dim; pad up to 128

    # Row tile: as large as the chip allows (weights are re-streamed once per
    # row tile, so arithmetic intensity ~ tm flops/byte).
    tm_max = 512 if is_small_vmem else 1024
    tm = min(tm_max, _round_up(m, 8))
    tm = max(8, (tm // 8) * 8)

    # v7x has 2 TensorCores: make sure the parallel row axis has >= 2 tiles.
    if is_small_vmem and m > 8:
        while tm > 8 and (m + tm - 1) // tm < 2:
            tm = max(8, ((tm // 2) // 8) * 8)

    # Shrink to fit the per-generation VMEM budget (tm first: it drives the
    # f32 output + bf16 x tiles; then th, but not below 128).
    while _vmem_estimate(tm, th, d) > budget and tm > 8:
        tm = max(8, ((tm // 2) // 8) * 8)
    while _vmem_estimate(tm, th, d) > budget and th > 128:
        th = max(128, th // 2)

    return tm, th, budget


# --------------------------- host wrapper ---------------------------

def feed_forward_pallas(x, w1, b1, w2, b2, *, tile_m=None, tile_h=None):
    """FeedForward forward pass.

    x: (..., D), w1: (D, H), b1: (H,), w2: (H, D), b2: (D,).  Returns f32 (..., D).
    """
    orig_shape = x.shape
    d = orig_shape[-1]
    h = w1.shape[1]
    x2d = x.reshape(-1, d)
    m = x2d.shape[0]

    tm, th, vmem_budget = _choose_config(m, d, h)
    if tile_m is not None:
        tm = tile_m
    if tile_h is not None:
        th = tile_h

    # Pad rows of x to a multiple of tm (sliced off afterwards) and the hidden
    # dim to a multiple of th (zero weight/bias columns contribute exactly 0).
    mp = _round_up(m, tm)
    hp = _round_up(h, th)

    x_bf = x2d.astype(jnp.bfloat16)
    if mp != m:
        x_bf = jnp.pad(x_bf, ((0, mp - m), (0, 0)))

    w1_bf = w1.astype(jnp.bfloat16)
    w2_bf = w2.astype(jnp.bfloat16)
    b1_f = b1.astype(jnp.float32)
    if hp != h:
        w1_bf = jnp.pad(w1_bf, ((0, 0), (0, hp - h)))
        w2_bf = jnp.pad(w2_bf, ((0, hp - h), (0, 0)))
        b1_f = jnp.pad(b1_f, ((0, hp - h),))

    b1_2d = b1_f.reshape(1, hp)
    b2_2d = b2.reshape(1, d).astype(jnp.float32)

    grid = (mp // tm, hp // th)

    out2d = pl.pallas_call(
        _ffn_kernel,
        out_shape=jax.ShapeDtypeStruct((mp, d), jnp.float32),
        grid_spec=pltpu.PrefetchScalarGridSpec(
            num_scalar_prefetch=0,
            grid=grid,
            in_specs=[
                pl.BlockSpec((tm, d), lambda i, k: (i, 0)),   # x row tile (bf16)
                pl.BlockSpec((d, th), lambda i, k: (0, k)),   # w1 column tile
                pl.BlockSpec((1, th), lambda i, k: (0, k)),   # b1 tile
                pl.BlockSpec((th, d), lambda i, k: (k, 0)),   # w2 row tile
                pl.BlockSpec((1, d),  lambda i, k: (0, 0)),   # b2 (constant block)
            ],
            out_specs=pl.BlockSpec((tm, d), lambda i, k: (i, 0)),  # resident accumulator
        ),
        compiler_params=pltpu.CompilerParams(
            dimension_semantics=("parallel", "arbitrary"),
            vmem_limit_bytes=vmem_budget,
        ),
    )(x_bf, w1_bf, b1_2d, w2_bf, b2_2d)

    if mp != m:
        out2d = out2d[:m]
    return out2d.reshape(orig_shape)


# --------------------------- references ---------------------------

def feed_forward_ref_f32(x, w1, b1, w2, b2):
    h = x @ w1 + b1
    a = h * jax.nn.sigmoid(h)
    return a @ w2 + b2


def feed_forward_ref_mixed(x, w1, b1, w2, b2):
    """Same mixed precision as the kernel (bf16 MXU operands, f32 accumulation)."""
    h = jnp.dot(x.astype(jnp.bfloat16), w1.astype(jnp.bfloat16),
                preferred_element_type=jnp.float32) + b1
    a = h * jax.nn.sigmoid(h)
    return jnp.dot(a.astype(jnp.bfloat16), w2.astype(jnp.bfloat16),
                   preferred_element_type=jnp.float32) + b2


# --------------------------- demo / check ---------------------------

if __name__ == "__main__":
    # Small shapes consistent with the module; feature dim lane-dense.
    B, S, D, HID = 2, 128, 128, 512

    key = jax.random.PRNGKey(0)
    kx, k1, k2, k3, k4 = jax.random.split(key, 5)
    x = jax.random.normal(kx, (B, S, D), jnp.float32)
    w1 = 0.02 * jax.random.normal(k1, (D, HID), jnp.float32)
    b1 = 0.02 * jax.random.normal(k2, (HID,), jnp.float32)
    w2 = 0.02 * jax.random.normal(k3, (HID, D), jnp.float32)
    b2 = 0.02 * jax.random.normal(k4, (D,), jnp.float32)

    out = feed_forward_pallas(x, w1, b1, w2, b2)
    out = jax.block_until_ready(out)
    assert out.shape == (B, S, D)

    x2d = x.reshape(-1, D)
    ref_mixed = feed_forward_ref_mixed(x2d, w1, b1, w2, b2).reshape(B, S, D)
    ref_f32 = feed_forward_ref_f32(x, w1, b1, w2, b2)

    err_mixed = float(jnp.max(jnp.abs(out - ref_mixed)))
    err_f32 = float(jnp.max(jnp.abs(out - ref_f32)))
    assert jnp.allclose(out, ref_mixed, atol=1e-4, rtol=1e-4), \
        f"mixed-precision mismatch: max abs err {err_mixed}"
    assert jnp.allclose(out, ref_f32, atol=1e-2, rtol=1e-2), \
        f"f32 reference mismatch: max abs err {err_f32}"

    print("KERNEL_OK")
</pallas_src>

<mosaic_0001>
module attributes {stable_mosaic.version = 11 : i64} {
  func.func @_ffn_kernel(%arg0: i32, %arg1: i32, %arg2: memref<256x128xbf16, #tpu.memory_space<vmem>>, %arg3: memref<128x512xbf16, #tpu.memory_space<vmem>>, %arg4: memref<1x512xf32, #tpu.memory_space<vmem>>, %arg5: memref<512x128xbf16, #tpu.memory_space<vmem>>, %arg6: memref<1x128xf32, #tpu.memory_space<vmem>>, %arg7: memref<256x128xf32, #tpu.memory_space<vmem>>) attributes {dimension_semantics = [#tpu.dimension_semantics<parallel>, #tpu.dimension_semantics<arbitrary>], iteration_bounds = array<i64: 1, 1>, scalar_prefetch = 0 : i64, scratch_operands = 0 : i64, tpu.core_type = #tpu.core_type<tc>, window_params = [{transform_indices = @transform_0, window_bounds = array<i64: 256, 128>}, {transform_indices = @transform_1, window_bounds = array<i64: 128, 512>}, {transform_indices = @transform_2, window_bounds = array<i64: 1, 512>}, {transform_indices = @transform_3, window_bounds = array<i64: 512, 128>}, {pipeline_mode = #tpu.pipeline_mode<synchronous>, transform_indices = @transform_4, window_bounds = array<i64: 1, 128>}, {transform_indices = @transform_5, window_bounds = array<i64: 256, 128>}]} {
    %c0 = arith.constant 0 : index
    %c0_0 = arith.constant 0 : index
    %0 = vector.load %arg2[%c0, %c0_0] : memref<256x128xbf16, #tpu.memory_space<vmem>>, vector<256x128xbf16>
    %c0_1 = arith.constant 0 : index
    %c0_2 = arith.constant 0 : index
    %1 = vector.load %arg3[%c0_1, %c0_2] : memref<128x512xbf16, #tpu.memory_space<vmem>>, vector<128x512xbf16>
    %cst = arith.constant dense<0.000000e+00> : vector<256x512xf32>
    %2 = tpu.matmul %0, %1, %cst {dimension_numbers = #tpu.dot_dimension_numbers<[1], [0], [0], [1], [0, 0, 1, 1], [], []>} : vector<256x128xbf16>, vector<128x512xbf16>, vector<256x512xf32> -> vector<256x512xf32>
    %c0_3 = arith.constant 0 : index
    %c0_4 = arith.constant 0 : index
    %3 = vector.load %arg4[%c0_3, %c0_4] : memref<1x512xf32, #tpu.memory_space<vmem>>, vector<1x512xf32>
    %4 = vector.broadcast %3 : vector<1x512xf32> to vector<256x512xf32>
    %5 = arith.addf %2, %4 : vector<256x512xf32>
    %6 = arith.negf %5 : vector<256x512xf32>
    %7 = math.exp %6 : vector<256x512xf32>
    %cst_5 = arith.constant 1.000000e+00 : f32
    %8 = vector.broadcast %cst_5 : f32 to vector<256x512xf32>
    %9 = arith.addf %8, %7 : vector<256x512xf32>
    %10 = arith.divf %8, %9 : vector<256x512xf32>
    %11 = arith.mulf %5, %10 : vector<256x512xf32>
    %12 = arith.truncf %11 : vector<256x512xf32> to vector<256x512xbf16>
    %c0_6 = arith.constant 0 : index
    %c0_7 = arith.constant 0 : index
    %13 = vector.load %arg5[%c0_6, %c0_7] : memref<512x128xbf16, #tpu.memory_space<vmem>>, vector<512x128xbf16>
    %cst_8 = arith.constant dense<0.000000e+00> : vector<256x128xf32>
    %14 = tpu.matmul %12, %13, %cst_8 {dimension_numbers = #tpu.dot_dimension_numbers<[1], [0], [0], [1], [0, 0, 1, 1], [], []>} : vector<256x512xbf16>, vector<512x128xbf16>, vector<256x128xf32> -> vector<256x128xf32>
    %c0_i32 = arith.constant 0 : i32
    %15 = arith.cmpi eq, %arg1, %c0_i32 : i32
    %16 = arith.extui %15 : i1 to i32
    %c0_i32_9 = arith.constant 0 : i32
    %17 = arith.cmpi ne, %16, %c0_i32_9 : i32
    scf.if %17 {
      %c0_14 = arith.constant 0 : index
      %c0_15 = arith.constant 0 : index
      %24 = vector.load %arg7[%c0_14, %c0_15] : memref<256x128xf32, #tpu.memory_space<vmem>>, vector<256x128xf32>
      tpu.vector_store %arg7[%c0_14, %c0_15], %14 {strides = array<i32>} : memref<256x128xf32, #tpu.memory_space<vmem>>, vector<256x128xf32>,
    } else {
    }
    %c0_i32_10 = arith.constant 0 : i32
    %18 = arith.cmpi ne, %arg1, %c0_i32_10 : i32
    %19 = arith.extui %18 : i1 to i32
    %c0_i32_11 = arith.constant 0 : i32
    %20 = arith.cmpi ne, %19, %c0_i32_11 : i32
    scf.if %20 {
      %c0_14 = arith.constant 0 : index
      %c0_15 = arith.constant 0 : index
      %24 = vector.load %arg7[%c0_14, %c0_15] : memref<256x128xf32, #tpu.memory_space<vmem>>, vector<256x128xf32>
      %25 = arith.addf %24, %14 : vector<256x128xf32>
      %c0_16 = arith.constant 0 : index
      %c0_17 = arith.constant 0 : index
      %26 = vector.load %arg7[%c0_16, %c0_17] : memref<256x128xf32, #tpu.memory_space<vmem>>, vector<256x128xf32>
      tpu.vector_store %arg7[%c0_16, %c0_17], %25 {strides = array<i32>} : memref<256x128xf32, #tpu.memory_space<vmem>>, vector<256x128xf32>,
    } else {
    }
    %c0_i32_12 = arith.constant 0 : i32
    %21 = arith.cmpi eq, %arg1, %c0_i32_12 : i32
    %22 = arith.extui %21 : i1 to i32
    %c0_i32_13 = arith.constant 0 : i32
    %23 = arith.cmpi ne, %22, %c0_i32_13 : i32
    scf.if %23 {
      %c0_14 = arith.constant 0 : index
      %c0_15 = arith.constant 0 : index
      %24 = vector.load %arg7[%c0_14, %c0_15] : memref<256x128xf32, #tpu.memory_space<vmem>>, vector<256x128xf32>
      %c0_16 = arith.constant 0 : index
      %c0_17 = arith.constant 0 : index
      %25 = vector.load %arg6[%c0_16, %c0_17] : memref<1x128xf32, #tpu.memory_space<vmem>>, vector<1x128xf32>
      %26 = vector.broadcast %25 : vector<1x128xf32> to vector<256x128xf32>
      %27 = arith.addf %24, %26 : vector<256x128xf32>
      %c0_18 = arith.constant 0 : index
      %c0_19 = arith.constant 0 : index
      %28 = vector.load %arg7[%c0_18, %c0_19] : memref<256x128xf32, #tpu.memory_space<vmem>>, vector<256x128xf32>
      tpu.vector_store %arg7[%c0_18, %c0_19], %27 {strides = array<i32>} : memref<256x128xf32, #tpu.memory_space<vmem>>, vector<256x128xf32>,
    } else {
    }
    return
  }
  func.func @transform_0(%arg0: i32, %arg1: i32) -> (i32, i32) {
    %c0_i32 = arith.constant 0 : i32
    %c0_i32_0 = arith.constant 0 : i32
    return %arg0, %c0_i32 : i32, i32
  }
  func.func @transform_1(%arg0: i32, %arg1: i32) -> (i32, i32) {
    %c0_i32 = arith.constant 0 : i32
    %c0_i32_0 = arith.constant 0 : i32
    return %c0_i32, %arg1 : i32, i32
  }
  func.func @transform_2(%arg0: i32, %arg1: i32) -> (i32, i32) {
    %c0_i32 = arith.constant 0 : i32
    %c0_i32_0 = arith.constant 0 : i32
    return %c0_i32, %arg1 : i32, i32
  }
  func.func @transform_3(%arg0: i32, %arg1: i32) -> (i32, i32) {
    %c0_i32 = arith.constant 0 : i32
    %c0_i32_0 = arith.constant 0 : i32
    return %arg1, %c0_i32 : i32, i32
  }
  func.func @transform_4(%arg0: i32, %arg1: i32) -> (i32, i32) {
    %c0_i32 = arith.constant 0 : i32
    %c0_i32_0 = arith.constant 0 : i32
    %c0_i32_1 = arith.constant 0 : i32
    return %c0_i32, %c0_i32_0 : i32, i32
  }
  func.func @transform_5(%arg0: i32, %arg1: i32) -> (i32, i32) {
    %c0_i32 = arith.constant 0 : i32
    %c0_i32_0 = arith.constant 0 : i32
    return %arg0, %c0_i32 : i32, i32
  }
}

</mosaic_0001>

<llo_original>
// kernel: tpu_custom_call.1
$region0: #{tpu_custom_call.1}
  #allocation0 [shape = 'u32[]', space=smem, size = 0x4, offset = 0x4, fixed_abs, tag = 'smem constant byte address 0x4 - core index']
  #allocation1 [shape = 'u32[72,128]{1,0:T(1,128)}', space=vmem, size = 0x9000, scoped, tag = 'internal scratch']
  %s0 = inlined_call_operand.hbm [shape: bf16[256,128], index: 0, kind: input, shape index: {}]
  %s1 = inlined_call_operand.hbm [shape: bf16[128,512], index: 1, kind: input, shape index: {}]
  %s2 = inlined_call_operand.hbm [shape: f32[1,512], index: 2, kind: input, shape index: {}]
  %s3 = inlined_call_operand.hbm [shape: bf16[512,128], index: 3, kind: input, shape index: {}]
  %s4 = inlined_call_operand.vmem [shape: f32[1,128], index: 4, kind: input, shape index: {}]
  %s5 = inlined_call_operand.hbm [shape: f32[256,128], index: 5, kind: output, shape index: {}]
  %s6 = sld [smem:[#allocation0]]
  $region58: #{tpu_custom_call.1} parent=0
    _
  %s8 = ssub.s32 1, %s6
  %s9 = scalar_select 0, %s8, %s6
  $region1: #{tpu_custom_call.1} parent=0
    #allocation2 [shape = 'u8[65536]{0}', space=vmem, size = 0x10000, scoped, tag = 'input window, operand 0, single buffered']
    #allocation3 [shape = 's32[1]{0}', space=sflag, size = 0x4, scoped, tag = 'scoped memory for tpu_custom_call.1']
    #allocation4 [shape = 's32[1]{0}', space=sflag, size = 0x4, scoped, tag = 'scoped memory for tpu_custom_call.1']
    #allocation5 [shape = 'u8[131072]{0}', space=vmem, size = 0x20000, scoped, tag = 'input window, operand 1, single buffered']
    #allocation6 [shape = 's32[1]{0}', space=sflag, size = 0x4, scoped, tag = 'scoped memory for tpu_custom_call.1']
    #allocation7 [shape = 'u8[2048]{0}', space=vmem, size = 0x800, scoped, tag = 'input window, operand 2, single buffered']
    #allocation8 [shape = 'u8[131072]{0}', space=vmem, size = 0x20000, scoped, tag = 'input window, operand 3, single buffered']
    #allocation9 [shape = 's32[1]{0}', space=sflag, size = 0x4, scoped, tag = 'scoped memory for tpu_custom_call.1']
    #allocation10 [shape = 'u8[131072]{0}', space=vmem, size = 0x20000, scoped, tag = 'output window, operand 0, single buffered']
    %10 = vsyncpa [#allocation3], 0
    %11 = vsyncpa [#allocation6], 0
    %12 = vsyncpa [#allocation9], 0
    %13 = vsyncpa [#allocation4], 0
    // Predicated region
    $region2: #{tpu_custom_call.1} parent=1 // pred_check
      _
    $region3: #{tpu_custom_call.1} parent=1 // pred_check_branch
      %15 = sbr.rel (0) target = $region5
    $region4: #{tpu_custom_call.1} parent=1 // pred_region
      %17 = vsyncadd [#allocation3], 0
      %s18 = sshll.u32 %s0, 4
      %s19 = int_to_ptr.hbm [resolvable:$true] %s18
      %s20 = sshll.u32 [#allocation2], 4
      %s21 = int_to_ptr.vmem [resolvable:$true] %s20
      %26 = dma.hbm_to_vmem [thread:$0]  %s19, 2048, %s21, [#allocation3], 64, 64, 4
    $region5: #{tpu_custom_call.1} parent=1 // pred_fallthru
      _
    // Predicated region
    $region6: #{tpu_custom_call.1} parent=1 // pred_check
      _
    $region7: #{tpu_custom_call.1} parent=1 // pred_check_branch
      %28 = sbr.rel (0) target = $region9
    $region8: #{tpu_custom_call.1} parent=1 // pred_region
      %30 = vsyncadd [#allocation6], 0
      %s31 = sshll.u32 %s1, 4
      %s32 = int_to_ptr.hbm [resolvable:$true] %s31
      %s33 = sshll.u32 [#allocation5], 4
      %s34 = int_to_ptr.vmem [resolvable:$true] %s33
      %39 = dma.hbm_to_vmem [thread:$0]  %s32, 4096, %s34, [#allocation6], 256, 256, 16
    $region9: #{tpu_custom_call.1} parent=1 // pred_fallthru
      _
    // Predicated region
    $region10: #{tpu_custom_call.1} parent=1 // pred_check
      _
    $region11: #{tpu_custom_call.1} parent=1 // pred_check_branch
      %41 = sbr.rel (0) target = $region13
    $region12: #{tpu_custom_call.1} parent=1 // pred_region
      %43 = vsyncadd [#allocation6], 0
      %s45 = sshll.u32 %s2, 4
      %s46 = int_to_ptr.hbm [resolvable:$true] %s45
      %s47 = sshll.u32 [#allocation7], 4
      %s48 = int_to_ptr.vmem [resolvable:$true] %s47
      %50 = dma.hbm_to_vmem [thread:$0]  %s46, 64, %s48, [#allocation6]
    $region13: #{tpu_custom_call.1} parent=1 // pred_fallthru
      _
    // Predicated region
    $region14: #{tpu_custom_call.1} parent=1 // pred_check
      _
    $region15: #{tpu_custom_call.1} parent=1 // pred_check_branch
      %52 = sbr.rel (0) target = $region17
    $region16: #{tpu_custom_call.1} parent=1 // pred_region
      %54 = vsyncadd [#allocation9], 0
      %s55 = sshll.u32 %s3, 4
      %s56 = int_to_ptr.hbm [resolvable:$true] %s55
      %s57 = sshll.u32 [#allocation8], 4
      %s58 = int_to_ptr.vmem [resolvable:$true] %s57
      %63 = dma.hbm_to_vmem [thread:$0]  %s56, 4096, %s58, [#allocation9], 64, 64, 4
    $region17: #{tpu_custom_call.1} parent=1 // pred_fallthru
      _
    // Predicated region
    $region18: #{tpu_custom_call.1} parent=1 // pred_check
      _
    $region19: #{tpu_custom_call.1} parent=1 // pred_check_branch
      %65 = sbr.rel (0) target = $region21
    $region20: #{tpu_custom_call.1} parent=1 // pred_region
      _
    $region21: #{tpu_custom_call.1} parent=1 // pred_fallthru
      _
    // Predicated region
    $region22: #{tpu_custom_call.1} parent=1 // pred_check
      _
    $region23: #{tpu_custom_call.1} parent=1 // pred_check_branch
      %67 = sbr.rel (0) target = $region25
    $region24: #{tpu_custom_call.1} parent=1 // pred_region
      %69 = dma.done [#allocation3], 2048
    $region25: #{tpu_custom_call.1} parent=1 // pred_fallthru
      _
    // Predicated region
    $region26: #{tpu_custom_call.1} parent=1 // pred_check
      _
    $region27: #{tpu_custom_call.1} parent=1 // pred_check_branch
      %71 = sbr.rel (0) target = $region29
    $region28: #{tpu_custom_call.1} parent=1 // pred_region
      %73 = dma.done [#allocation6], 4096
    $region29: #{tpu_custom_call.1} parent=1 // pred_fallthru
      _
    // Predicated region
    $region30: #{tpu_custom_call.1} parent=1 // pred_check
      _
    $region31: #{tpu_custom_call.1} parent=1 // pred_check_branch
      %75 = sbr.rel (0) target = $region33
    $region32: #{tpu_custom_call.1} parent=1 // pred_region
      %77 = dma.done [#allocation6], 64
    $region33: #{tpu_custom_call.1} parent=1 // pred_fallthru
      _
    // Predicated region
    $region34: #{tpu_custom_call.1} parent=1 // pred_check
      _
    $region35: #{tpu_custom_call.1} parent=1 // pred_check_branch
      %79 = sbr.rel (0) target = $region37
    $region36: #{tpu_custom_call.1} parent=1 // pred_region
      %81 = dma.done [#allocation9], 4096
    $region37: #{tpu_custom_call.1} parent=1 // pred_fallthru
      _
    %v82 = vld [vmem:[#allocation2] sm:$0xf]
    %v83 = vld [vmem:[#allocation2 + $0x4] sm:$0xf]
    %v84 = vld [vmem:[#allocation2 + $0x8] sm:$0xf]
    %v85 = vld [vmem:[#allocation2 + $0xc] sm:$0xf]
    %v86 = vld [vmem:[#allocation2 + $0x10] sm:$0xf]
    %v87 = vld [vmem:[#allocation2 + $0x14] sm:$0xf]
    %v88 = vld [vmem:[#allocation2 + $0x18] sm:$0xf]
    %v89 = vld [vmem:[#allocation2 + $0x1c] sm:$0xf]
    %v90 = vld [vmem:[#allocation2 + $0x20] sm:$0xf]
    %v91 = vld [vmem:[#allocation2 + $0x24] sm:$0xf]
    %v92 = vld [vmem:[#allocation2 + $0x28] sm:$0xf]
    %v93 = vld [vmem:[#allocation2 + $0x2c] sm:$0xf]
    %v94 = vld [vmem:[#allocation2 + $0x30] sm:$0xf]
    %v95 = vld [vmem:[#allocation2 + $0x34] sm:$0xf]
    %v96 = vld [vmem:[#allocation2 + $0x38] sm:$0xf]
    %v97 = vld [vmem:[#allocation2 + $0x3c] sm:$0xf]
    %v98 = vld [vmem:[#allocation2 + $0x40] sm:$0xf]
    %v99 = vld [vmem:[#allocation2 + $0x44] sm:$0xf]
    %v100 = vld [vmem:[#allocation2 + $0x48] sm:$0xf]
    %v101 = vld [vmem:[#allocation2 + $0x4c] sm:$0xf]
    %v102 = vld [vmem:[#allocation2 + $0x50] sm:$0xf]
    %v103 = vld [vmem:[#allocation2 + $0x54] sm:$0xf]
    %v104 = vld [vmem:[#allocation2 + $0x58] sm:$0xf]
    %v105 = vld [vmem:[#allocation2 + $0x5c] sm:$0xf]
    %v106 = vld [vmem:[#allocation2 + $0x60] sm:$0xf]
    %v107 = vld [vmem:[#allocation2 + $0x64] sm:$0xf]
    %v108 = vld [vmem:[#allocation2 + $0x68] sm:$0xf]
    %v109 = vld [vmem:[#allocation2 + $0x6c] sm:$0xf]
    %v110 = vld [vmem:[#allocation2 + $0x70] sm:$0xf]
    %v111 = vld [vmem:[#allocation2 + $0x74] sm:$0xf]
    %v112 = vld [vmem:[#allocation2 + $0x78] sm:$0xf]
    %v113 = vld [vmem:[#allocation2 + $0x7c] sm:$0xf]
    %v114 = vld [vmem:[#allocation5] sm:$0xff]
    %v115 = vld [vmem:[#allocation5 + $0x8] sm:$0xff]
    %v116 = vld [vmem:[#allocation5 + $0x10] sm:$0xff]
    %v117 = vld [vmem:[#allocation5 + $0x18] sm:$0xff]
    %v118 = vld [vmem:[#allocation5 + $0x20] sm:$0xff]
    %v119 = vld [vmem:[#allocation5 + $0x28] sm:$0xff]
    %v120 = vld [vmem:[#allocation5 + $0x30] sm:$0xff]
    %v121 = vld [vmem:[#allocation5 + $0x38] sm:$0xff]
    %v122 = vld [vmem:[#allocation5 + $0x40] sm:$0xff]
    %v123 = vld [vmem:[#allocation5 + $0x48] sm:$0xff]
    %v124 = vld [vmem:[#allocation5 + $0x50] sm:$0xff]
    %v125 = vld [vmem:[#allocation5 + $0x58] sm:$0xff]
    %v126 = vld [vmem:[#allocation5 + $0x60] sm:$0xff]
    %v127 = vld [vmem:[#allocation5 + $0x68] sm:$0xff]
    %v128 = vld [vmem:[#allocation5 + $0x70] sm:$0xff]
    %v129 = vld [vmem:[#allocation5 + $0x78] sm:$0xff]
    %v130 = vld [vmem:[#allocation5 + $0x80] sm:$0xff]
    %v131 = vld [vmem:[#allocation5 + $0x88] sm:$0xff]
    %v132 = vld [vmem:[#allocation5 + $0x90] sm:$0xff]
    %v133 = vld [vmem:[#allocation5 + $0x98] sm:$0xff]
    %v134 = vld [vmem:[#allocation5 + $0xa0] sm:$0xff]
    %v135 = vld [vmem:[#allocation5 + $0xa8] sm:$0xff]
    %v136 = vld [vmem:[#allocation5 + $0xb0] sm:$0xff]
    %v137 = vld [vmem:[#allocation5 + $0xb8] sm:$0xff]
    %v138 = vld [vmem:[#allocation5 + $0xc0] sm:$0xff]
    %v139 = vld [vmem:[#allocation5 + $0xc8] sm:$0xff]
    %v140 = vld [vmem:[#allocation5 + $0xd0] sm:$0xff]
    %v141 = vld [vmem:[#allocation5 + $0xd8] sm:$0xff]
    %v142 = vld [vmem:[#allocation5 + $0xe0] sm:$0xff]
    %v143 = vld [vmem:[#allocation5 + $0xe8] sm:$0xff]
    %v144 = vld [vmem:[#allocation5 + $0xf0] sm:$0xff]
    %v145 = vld [vmem:[#allocation5 + $0xf8] sm:$0xff]
    %v146 = vld [vmem:[#allocation7] sm:$0xf]
    %v148 = vperm.slane %v146, 0
    %v149 = vperm.slane %v146, 1
    %v150 = vperm.slane %v146, 2
    %v151 = vperm.slane %v146, 3
    %v188 = vunpack.c.l.b16 %v82
    %v189 = vunpack.c.l.b16 %v83
    %v190 = vunpack.c.l.b16 %v84
    %v191 = vunpack.c.l.b16 %v85
    %v192 = vunpack.c.l.b16 %v86
    %v193 = vunpack.c.l.b16 %v87
    %v194 = vunpack.c.l.b16 %v88
    %v195 = vunpack.c.l.b16 %v89
    %v196 = vunpack.c.l.b16 %v90
    %v197 = vunpack.c.l.b16 %v91
    %v198 = vunpack.c.l.b16 %v92
    %v199 = vunpack.c.l.b16 %v93
    %v200 = vunpack.c.l.b16 %v94
    %v201 = vunpack.c.l.b16 %v95
    %v202 = vunpack.c.l.b16 %v96
    %v203 = vunpack.c.l.b16 %v97
    %v204 = vunpack.c.l.b16 %v98
    %v205 = vunpack.c.l.b16 %v99
    %v206 = vunpack.c.l.b16 %v100
    %v207 = vunpack.c.l.b16 %v101
    %v208 = vunpack.c.l.b16 %v102
    %v209 = vunpack.c.l.b16 %v103
    %v210 = vunpack.c.l.b16 %v104
    %v211 = vunpack.c.l.b16 %v105
    %v212 = vunpack.c.l.b16 %v106
    %v213 = vunpack.c.l.b16 %v107
    %v214 = vunpack.c.l.b16 %v108
    %v215 = vunpack.c.l.b16 %v109
    %v216 = vunpack.c.l.b16 %v110
    %v217 = vunpack.c.l.b16 %v111
    %v218 = vunpack.c.l.b16 %v112
    %v219 = vunpack.c.l.b16 %v113
    %v220 = vpack.c.b16 %v189, %v188
    %v221 = vpack.c.b16 %v191, %v190
    %v222 = vpack.c.b16 %v193, %v192
    %v223 = vpack.c.b16 %v195, %v194
    %v224 = vpack.c.b16 %v197, %v196
    %v225 = vpack.c.b16 %v199, %v198
    %v226 = vpack.c.b16 %v201, %v200
    %v227 = vpack.c.b16 %v203, %v202
    %v228 = vpack.c.b16 %v205, %v204
    %v229 = vpack.c.b16 %v207, %v206
    %v230 = vpack.c.b16 %v209, %v208
    %v231 = vpack.c.b16 %v211, %v210
    %v232 = vpack.c.b16 %v213, %v212
    %v233 = vpack.c.b16 %v215, %v214
    %v234 = vpack.c.b16 %v217, %v216
    %v235 = vpack.c.b16 %v219, %v218
    %v284 = vunpack.c.l.b16 %v114
    %v285 = vunpack.c.h.b16 %v114
    %v286 = vunpack.c.l.b16 %v115
    %v287 = vunpack.c.h.b16 %v115
    %v288 = vunpack.c.l.b16 %v116
    %v289 = vunpack.c.h.b16 %v116
    %v290 = vunpack.c.l.b16 %v117
    %v291 = vunpack.c.h.b16 %v117
    %v292 = vunpack.c.l.b16 %v118
    %v293 = vunpack.c.h.b16 %v118
    %v294 = vunpack.c.l.b16 %v119
    %v295 = vunpack.c.h.b16 %v119
    %v296 = vunpack.c.l.b16 %v120
    %v297 = vunpack.c.h.b16 %v120
    %v298 = vunpack.c.l.b16 %v121
    %v299 = vunpack.c.h.b16 %v121
    %v300 = vunpack.c.l.b16 %v122
    %v301 = vunpack.c.h.b16 %v122
    %v302 = vunpack.c.l.b16 %v123
    %v303 = vunpack.c.h.b16 %v123
    %v304 = vunpack.c.l.b16 %v124
    %v305 = vunpack.c.h.b16 %v124
    %v306 = vunpack.c.l.b16 %v125
    %v307 = vunpack.c.h.b16 %v125
    %v308 = vunpack.c.l.b16 %v126
    %v309 = vunpack.c.h.b16 %v126
    %v310 = vunpack.c.l.b16 %v127
    %v311 = vunpack.c.h.b16 %v127
    %v312 = vunpack.c.l.b16 %v128
    %v313 = vunpack.c.h.b16 %v128
    %v314 = vunpack.c.l.b16 %v129
    %v315 = vunpack.c.h.b16 %v129
    %v316 = vunpack.c.l.b16 %v130
    %v317 = vunpack.c.h.b16 %v130
    %v318 = vunpack.c.l.b16 %v131
    %v319 = vunpack.c.h.b16 %v131
    %v320 = vunpack.c.l.b16 %v132
    %v321 = vunpack.c.h.b16 %v132
    %v322 = vunpack.c.l.b16 %v133
    %v323 = vunpack.c.h.b16 %v133
    %v324 = vunpack.c.l.b16 %v134
    %v325 = vunpack.c.h.b16 %v134
    %v326 = vunpack.c.l.b16 %v135
    %v327 = vunpack.c.h.b16 %v135
    %v328 = vunpack.c.l.b16 %v136
    %v329 = vunpack.c.h.b16 %v136
    %v330 = vunpack.c.l.b16 %v137
    %v331 = vunpack.c.h.b16 %v137
    %v332 = vunpack.c.l.b16 %v138
    %v333 = vunpack.c.h.b16 %v138
    %v334 = vunpack.c.l.b16 %v139
    %v335 = vunpack.c.h.b16 %v139
    %v336 = vunpack.c.l.b16 %v140
    %v337 = vunpack.c.h.b16 %v140
    %v338 = vunpack.c.l.b16 %v141
    %v339 = vunpack.c.h.b16 %v141
    %v340 = vunpack.c.l.b16 %v142
    %v341 = vunpack.c.h.b16 %v142
    %v342 = vunpack.c.l.b16 %v143
    %v343 = vunpack.c.h.b16 %v143
    %v344 = vunpack.c.l.b16 %v144
    %v345 = vunpack.c.h.b16 %v144
    %v346 = vunpack.c.l.b16 %v145
    %v347 = vunpack.c.h.b16 %v145
    %v348 = vpack.c.b16 %v288, %v284
    %v349 = vpack.c.b16 %v289, %v285
    %v350 = vpack.c.b16 %v290, %v286
    %v351 = vpack.c.b16 %v291, %v287
    %v352 = vpack.c.b16 %v296, %v292
    %v353 = vpack.c.b16 %v297, %v293
    %v354 = vpack.c.b16 %v298, %v294
    %v355 = vpack.c.b16 %v299, %v295
    %v356 = vpack.c.b16 %v304, %v300
    %v357 = vpack.c.b16 %v305, %v301
    %v358 = vpack.c.b16 %v306, %v302
    %v359 = vpack.c.b16 %v307, %v303
    %v360 = vpack.c.b16 %v312, %v308
    %v361 = vpack.c.b16 %v313, %v309
    %v362 = vpack.c.b16 %v314, %v310
    %v363 = vpack.c.b16 %v315, %v311
    %v364 = vpack.c.b16 %v320, %v316
    %v365 = vpack.c.b16 %v321, %v317
    %v366 = vpack.c.b16 %v322, %v318
    %v367 = vpack.c.b16 %v323, %v319
    %v368 = vpack.c.b16 %v328, %v324
    %v369 = vpack.c.b16 %v329, %v325
    %v370 = vpack.c.b16 %v330, %v326
    %v371 = vpack.c.b16 %v331, %v327
    %v372 = vpack.c.b16 %v336, %v332
    %v373 = vpack.c.b16 %v337, %v333
    %v374 = vpack.c.b16 %v338, %v334
    %v375 = vpack.c.b16 %v339, %v335
    %v376 = vpack.c.b16 %v344, %v340
    %v377 = vpack.c.b16 %v345, %v341
    %v378 = vpack.c.b16 %v346, %v342
    %v379 = vpack.c.b16 %v347, %v343
    %412 = vmatpush.bf16.msra.mxu0 %v376
    %413 = vmatpush.bf16.msra.mxu0 %v372
    %414 = vmatpush.bf16.msra.mxu0 %v368
    %415 = vmatpush.bf16.msra.mxu0 %v364
    %416 = vmatpush.bf16.msra.mxu0 %v360
    %417 = vmatpush.bf16.msra.mxu0 %v356
    %418 = vmatpush.bf16.msra.mxu0 %v352
    %419 = vmatpush.bf16.msra.mxu0 %v348
    %420 = vmatmul.bf16.gmra.mxu0 %v220
    %v421 = vpop.f32.mrf.mxu0
    %v422 = vadd.f32 %v148, %v421
    %v423 = vpop.f32.mrf.mxu0
    %v424 = vadd.f32 %v148, %v423
    %425 = vmatmul.bf16.gmra.mxu0 %v221
    %v426 = vpop.f32.mrf.mxu0
    %v427 = vadd.f32 %v148, %v426
    %v428 = vpop.f32.mrf.mxu0
    %v429 = vadd.f32 %v148, %v428
    %430 = vmatmul.bf16.gmra.mxu0 %v222
    %v431 = vpop.f32.mrf.mxu0
    %v432 = vadd.f32 %v148, %v431
    %v433 = vpop.f32.mrf.mxu0
    %v434 = vadd.f32 %v148, %v433
    %435 = vmatmul.bf16.gmra.mxu0 %v223
    %v436 = vpop.f32.mrf.mxu0
    %v437 = vadd.f32 %v148, %v436
    %v438 = vpop.f32.mrf.mxu0
    %v439 = vadd.f32 %v148, %v438
    %440 = vmatmul.bf16.gmra.mxu0 %v224
    %v441 = vpop.f32.mrf.mxu0
    %v442 = vadd.f32 %v148, %v441
    %v443 = vpop.f32.mrf.mxu0
    %v444 = vadd.f32 %v148, %v443
    %445 = vmatmul.bf16.gmra.mxu0 %v225
    %v446 = vpop.f32.mrf.mxu0
    %v447 = vadd.f32 %v148, %v446
    %v448 = vpop.f32.mrf.mxu0
    %v449 = vadd.f32 %v148, %v448
    %450 = vmatmul.bf16.gmra.mxu0 %v226
    %v451 = vpop.f32.mrf.mxu0
    %v452 = vadd.f32 %v148, %v451
    %v453 = vpop.f32.mrf.mxu0
    %v454 = vadd.f32 %v148, %v453
    %455 = vmatmul.bf16.gmra.mxu0 %v227
    %v456 = vpop.f32.mrf.mxu0
    %v457 = vadd.f32 %v148, %v456
    %v458 = vpop.f32.mrf.mxu0
    %v459 = vadd.f32 %v148, %v458
    %460 = vmatmul.bf16.gmra.mxu0 %v228
    %v461 = vpop.f32.mrf.mxu0
    %v462 = vadd.f32 %v148, %v461
    %v463 = vpop.f32.mrf.mxu0
    %v464 = vadd.f32 %v148, %v463
    %465 = vmatmul.bf16.gmra.mxu0 %v229
    %v466 = vpop.f32.mrf.mxu0
    %v467 = vadd.f32 %v148, %v466
    %v468 = vpop.f32.mrf.mxu0
    %v469 = vadd.f32 %v148, %v468
    %470 = vmatmul.bf16.gmra.mxu0 %v230
    %v471 = vpop.f32.mrf.mxu0
    %v472 = vadd.f32 %v148, %v471
    %v473 = vpop.f32.mrf.mxu0
    %v474 = vadd.f32 %v148, %v473
    %475 = vmatmul.bf16.gmra.mxu0 %v231
    %v476 = vpop.f32.mrf.mxu0
    %v477 = vadd.f32 %v148, %v476
    %v478 = vpop.f32.mrf.mxu0
    %v479 = vadd.f32 %v148, %v478
    %480 = vmatmul.bf16.gmra.mxu0 %v232
    %v481 = vpop.f32.mrf.mxu0
    %v482 = vadd.f32 %v148, %v481
    %v483 = vpop.f32.mrf.mxu0
    %v484 = vadd.f32 %v148, %v483
    %485 = vmatmul.bf16.gmra.mxu0 %v233
    %v486 = vpop.f32.mrf.mxu0
    %v487 = vadd.f32 %v148, %v486
    %v488 = vpop.f32.mrf.mxu0
    %v489 = vadd.f32 %v148, %v488
    %490 = vmatmul.bf16.gmra.mxu0 %v234
    %v491 = vpop.f32.mrf.mxu0
    %v492 = vadd.f32 %v148, %v491
    %v493 = vpop.f32.mrf.mxu0
    %v494 = vadd.f32 %v148, %v493
    %495 = vmatmul.bf16.gmra.mxu0 %v235
    %v496 = vpop.f32.mrf.mxu0
    %v497 = vadd.f32 %v148, %v496
    %v498 = vpop.f32.mrf.mxu0
    %v499 = vadd.f32 %v148, %v498
    %500 = vdwg.mxu0
    %501 = vmatpush.bf16.msra.mxu0 %v377
    %502 = vmatpush.bf16.msra.mxu0 %v373
    %503 = vmatpush.bf16.msra.mxu0 %v369
    %504 = vmatpush.bf16.msra.mxu0 %v365
    %505 = vmatpush.bf16.msra.mxu0 %v361
    %506 = vmatpush.bf16.msra.mxu0 %v357
    %507 = vmatpush.bf16.msra.mxu0 %v353
    %508 = vmatpush.bf16.msra.mxu0 %v349
    %509 = vmatmul.bf16.gmra.mxu0 %v220
    %v510 = vpop.f32.mrf.mxu0
    %v511 = vadd.f32 %v149, %v510
    %v512 = vpop.f32.mrf.mxu0
    %v513 = vadd.f32 %v149, %v512
    %514 = vmatmul.bf16.gmra.mxu0 %v221
    %v515 = vpop.f32.mrf.mxu0
    %v516 = vadd.f32 %v149, %v515
    %v517 = vpop.f32.mrf.mxu0
    %v518 = vadd.f32 %v149, %v517
    %519 = vmatmul.bf16.gmra.mxu0 %v222
    %v520 = vpop.f32.mrf.mxu0
    %v521 = vadd.f32 %v149, %v520
    %v522 = vpop.f32.mrf.mxu0
    %v523 = vadd.f32 %v149, %v522
    %524 = vmatmul.bf16.gmra.mxu0 %v223
    %v525 = vpop.f32.mrf.mxu0
    %v526 = vadd.f32 %v149, %v525
    %v527 = vpop.f32.mrf.mxu0
    %v528 = vadd.f32 %v149, %v527
    %529 = vmatmul.bf16.gmra.mxu0 %v224
    %v530 = vpop.f32.mrf.mxu0
    %v531 = vadd.f32 %v149, %v530
    %v532 = vpop.f32.mrf.mxu0
    %v533 = vadd.f32 %v149, %v532
    %534 = vmatmul.bf16.gmra.mxu0 %v225
    %v535 = vpop.f32.mrf.mxu0
    %v536 = vadd.f32 %v149, %v535
    %v537 = vpop.f32.mrf.mxu0
    %v538 = vadd.f32 %v149, %v537
    %539 = vmatmul.bf16.gmra.mxu0 %v226
    %v540 = vpop.f32.mrf.mxu0
    %v541 = vadd.f32 %v149, %v540
    %v542 = vpop.f32.mrf.mxu0
    %v543 = vadd.f32 %v149, %v542
    %544 = vmatmul.bf16.gmra.mxu0 %v227
    %v545 = vpop.f32.mrf.mxu0
    %v546 = vadd.f32 %v149, %v545
    %v547 = vpop.f32.mrf.mxu0
    %v548 = vadd.f32 %v149, %v547
    %549 = vmatmul.bf16.gmra.mxu0 %v228
    %v550 = vpop.f32.mrf.mxu0
    %v551 = vadd.f32 %v149, %v550
    %v552 = vpop.f32.mrf.mxu0
    %v553 = vadd.f32 %v149, %v552
    %554 = vmatmul.bf16.gmra.mxu0 %v229
    %v555 = vpop.f32.mrf.mxu0
    %v556 = vadd.f32 %v149, %v555
    %v557 = vpop.f32.mrf.mxu0
    %v558 = vadd.f32 %v149, %v557
    %559 = vmatmul.bf16.gmra.mxu0 %v230
    %v560 = vpop.f32.mrf.mxu0
    %v561 = vadd.f32 %v149, %v560
    %v562 = vpop.f32.mrf.mxu0
    %v563 = vadd.f32 %v149, %v562
    %564 = vmatmul.bf16.gmra.mxu0 %v231
    %v565 = vpop.f32.mrf.mxu0
    %v566 = vadd.f32 %v149, %v565
    %v567 = vpop.f32.mrf.mxu0
    %v568 = vadd.f32 %v149, %v567
    %569 = vmatmul.bf16.gmra.mxu0 %v232
    %v570 = vpop.f32.mrf.mxu0
    %v571 = vadd.f32 %v149, %v570
    %v572 = vpop.f32.mrf.mxu0
    %v573 = vadd.f32 %v149, %v572
    %574 = vmatmul.bf16.gmra.mxu0 %v233
    %v575 = vpop.f32.mrf.mxu0
    %v576 = vadd.f32 %v149, %v575
    %v577 = vpop.f32.mrf.mxu0
    %v578 = vadd.f32 %v149, %v577
    %579 = vmatmul.bf16.gmra.mxu0 %v234
    %v580 = vpop.f32.mrf.mxu0
    %v581 = vadd.f32 %v149, %v580
    %v582 = vpop.f32.mrf.mxu0
    %v583 = vadd.f32 %v149, %v582
    %584 = vmatmul.bf16.gmra.mxu0 %v235
    %v585 = vpop.f32.mrf.mxu0
    %v586 = vadd.f32 %v149, %v585
    %v587 = vpop.f32.mrf.mxu0
    %v588 = vadd.f32 %v149, %v587
    %589 = vdwg.mxu0
    %590 = vmatpush.bf16.msra.mxu0 %v378
    %591 = vmatpush.bf16.msra.mxu0 %v374
    %592 = vmatpush.bf16.msra.mxu0 %v370
    %593 = vmatpush.bf16.msra.mxu0 %v366
    %594 = vmatpush.bf16.msra.mxu0 %v362
    %595 = vmatpush.bf16.msra.mxu0 %v358
    %596 = vmatpush.bf16.msra.mxu0 %v354
    %597 = vmatpush.bf16.msra.mxu0 %v350
    %598 = vmatmul.bf16.gmra.mxu0 %v220
    %v599 = vpop.f32.mrf.mxu0
    %v600 = vadd.f32 %v150, %v599
    %v601 = vpop.f32.mrf.mxu0
    %v602 = vadd.f32 %v150, %v601
    %603 = vmatmul.bf16.gmra.mxu0 %v221
    %v604 = vpop.f32.mrf.mxu0
    %v605 = vadd.f32 %v150, %v604
    %v606 = vpop.f32.mrf.mxu0
    %v607 = vadd.f32 %v150, %v606
    %608 = vmatmul.bf16.gmra.mxu0 %v222
    %v609 = vpop.f32.mrf.mxu0
    %v610 = vadd.f32 %v150, %v609
    %v611 = vpop.f32.mrf.mxu0
    %v612 = vadd.f32 %v150, %v611
    %613 = vmatmul.bf16.gmra.mxu0 %v223
    %v614 = vpop.f32.mrf.mxu0
    %v615 = vadd.f32 %v150, %v614
    %v616 = vpop.f32.mrf.mxu0
    %v617 = vadd.f32 %v150, %v616
    %618 = vmatmul.bf16.gmra.mxu0 %v224
    %v619 = vpop.f32.mrf.mxu0
    %v620 = vadd.f32 %v150, %v619
    %v621 = vpop.f32.mrf.mxu0
    %v622 = vadd.f32 %v150, %v621
    %623 = vmatmul.bf16.gmra.mxu0 %v225
    %v624 = vpop.f32.mrf.mxu0
    %v625 = vadd.f32 %v150, %v624
    %v626 = vpop.f32.mrf.mxu0
    %v627 = vadd.f32 %v150, %v626
    %628 = vmatmul.bf16.gmra.mxu0 %v226
    %v629 = vpop.f32.mrf.mxu0
    %v630 = vadd.f32 %v150, %v629
    %v631 = vpop.f32.mrf.mxu0
    %v632 = vadd.f32 %v150, %v631
    %633 = vmatmul.bf16.gmra.mxu0 %v227
    %v634 = vpop.f32.mrf.mxu0
    %v635 = vadd.f32 %v150, %v634
    %v636 = vpop.f32.mrf.mxu0
    %v637 = vadd.f32 %v150, %v636
    %638 = vmatmul.bf16.gmra.mxu0 %v228
    %v639 = vpop.f32.mrf.mxu0
    %v640 = vadd.f32 %v150, %v639
    %v641 = vpop.f32.mrf.mxu0
    %v642 = vadd.f32 %v150, %v641
    %643 = vmatmul.bf16.gmra.mxu0 %v229
    %v644 = vpop.f32.mrf.mxu0
    %v645 = vadd.f32 %v150, %v644
    %v646 = vpop.f32.mrf.mxu0
    %v647 = vadd.f32 %v150, %v646
    %648 = vmatmul.bf16.gmra.mxu0 %v230
    %v649 = vpop.f32.mrf.mxu0
    %v650 = vadd.f32 %v150, %v649
    %v651 = vpop.f32.mrf.mxu0
    %v652 = vadd.f32 %v150, %v651
    %653 = vmatmul.bf16.gmra.mxu0 %v231
    %v654 = vpop.f32.mrf.mxu0
    %v655 = vadd.f32 %v150, %v654
    %v656 = vpop.f32.mrf.mxu0
    %v657 = vadd.f32 %v150, %v656
    %658 = vmatmul.bf16.gmra.mxu0 %v232
    %v659 = vpop.f32.mrf.mxu0
    %v660 = vadd.f32 %v150, %v659
    %v661 = vpop.f32.mrf.mxu0
    %v662 = vadd.f32 %v150, %v661
    %663 = vmatmul.bf16.gmra.mxu0 %v233
    %v664 = vpop.f32.mrf.mxu0
    %v665 = vadd.f32 %v150, %v664
    %v666 = vpop.f32.mrf.mxu0
    %v667 = vadd.f32 %v150, %v666
    %668 = vmatmul.bf16.gmra.mxu0 %v234
    %v669 = vpop.f32.mrf.mxu0
    %v670 = vadd.f32 %v150, %v669
    %v671 = vpop.f32.mrf.mxu0
    %v672 = vadd.f32 %v150, %v671
    %673 = vmatmul.bf16.gmra.mxu0 %v235
    %v674 = vpop.f32.mrf.mxu0
    %v675 = vadd.f32 %v150, %v674
    %v676 = vpop.f32.mrf.mxu0
    %v677 = vadd.f32 %v150, %v676
    %678 = vdwg.mxu0
    %679 = vmatpush.bf16.msra.mxu0 %v379
    %680 = vmatpush.bf16.msra.mxu0 %v375
    %681 = vmatpush.bf16.msra.mxu0 %v371
    %682 = vmatpush.bf16.msra.mxu0 %v367
    %683 = vmatpush.bf16.msra.mxu0 %v363
    %684 = vmatpush.bf16.msra.mxu0 %v359
    %685 = vmatpush.bf16.msra.mxu0 %v355
    %686 = vmatpush.bf16.msra.mxu0 %v351
    %687 = vmatmul.bf16.gmra.mxu0 %v220
    %v688 = vpop.f32.mrf.mxu0
    %v689 = vadd.f32 %v151, %v688
    %v690 = vpop.f32.mrf.mxu0
    %v691 = vadd.f32 %v151, %v690
    %692 = vmatmul.bf16.gmra.mxu0 %v221
    %v693 = vpop.f32.mrf.mxu0
    %v694 = vadd.f32 %v151, %v693
    %v695 = vpop.f32.mrf.mxu0
    %v696 = vadd.f32 %v151, %v695
    %697 = vmatmul.bf16.gmra.mxu0 %v222
    %v698 = vpop.f32.mrf.mxu0
    %v699 = vadd.f32 %v151, %v698
    %v700 = vpop.f32.mrf.mxu0
    %v701 = vadd.f32 %v151, %v700
    %702 = vmatmul.bf16.gmra.mxu0 %v223
    %v703 = vpop.f32.mrf.mxu0
    %v704 = vadd.f32 %v151, %v703
    %v705 = vpop.f32.mrf.mxu0
    %v706 = vadd.f32 %v151, %v705
    %707 = vmatmul.bf16.gmra.mxu0 %v224
    %v708 = vpop.f32.mrf.mxu0
    %v709 = vadd.f32 %v151, %v708
    %v710 = vpop.f32.mrf.mxu0
    %v711 = vadd.f32 %v151, %v710
    %712 = vmatmul.bf16.gmra.mxu0 %v225
    %v713 = vpop.f32.mrf.mxu0
    %v714 = vadd.f32 %v151, %v713
    %v715 = vpop.f32.mrf.mxu0
    %v716 = vadd.f32 %v151, %v715
    %717 = vmatmul.bf16.gmra.mxu0 %v226
    %v718 = vpop.f32.mrf.mxu0
    %v719 = vadd.f32 %v151, %v718
    %v720 = vpop.f32.mrf.mxu0
    %v721 = vadd.f32 %v151, %v720
    %722 = vmatmul.bf16.gmra.mxu0 %v227
    %v723 = vpop.f32.mrf.mxu0
    %v724 = vadd.f32 %v151, %v723
    %v725 = vpop.f32.mrf.mxu0
    %v726 = vadd.f32 %v151, %v725
    %727 = vmatmul.bf16.gmra.mxu0 %v228
    %v728 = vpop.f32.mrf.mxu0
    %v729 = vadd.f32 %v151, %v728
    %v730 = vpop.f32.mrf.mxu0
    %v731 = vadd.f32 %v151, %v730
    %732 = vmatmul.bf16.gmra.mxu0 %v229
    %v733 = vpop.f32.mrf.mxu0
    %v734 = vadd.f32 %v151, %v733
    %v735 = vpop.f32.mrf.mxu0
    %v736 = vadd.f32 %v151, %v735
    %737 = vmatmul.bf16.gmra.mxu0 %v230
    %v738 = vpop.f32.mrf.mxu0
    %v739 = vadd.f32 %v151, %v738
    %v740 = vpop.f32.mrf.mxu0
    %v741 = vadd.f32 %v151, %v740
    %742 = vmatmul.bf16.gmra.mxu0 %v231
    %v743 = vpop.f32.mrf.mxu0
    %v744 = vadd.f32 %v151, %v743
    %v745 = vpop.f32.mrf.mxu0
    %v746 = vadd.f32 %v151, %v745
    %747 = vmatmul.bf16.gmra.mxu0 %v232
    %v748 = vpop.f32.mrf.mxu0
    %v749 = vadd.f32 %v151, %v748
    %v750 = vpop.f32.mrf.mxu0
    %v751 = vadd.f32 %v151, %v750
    %752 = vmatmul.bf16.gmra.mxu0 %v233
    %v753 = vpop.f32.mrf.mxu0
    %v754 = vadd.f32 %v151, %v753
    %v755 = vpop.f32.mrf.mxu0
    %v756 = vadd.f32 %v151, %v755
    %757 = vmatmul.bf16.gmra.mxu0 %v234
    %v758 = vpop.f32.mrf.mxu0
    %v759 = vadd.f32 %v151, %v758
    %v760 = vpop.f32.mrf.mxu0
    %v761 = vadd.f32 %v151, %v760
    %762 = vmatmul.bf16.gmra.mxu0 %v235
    %v763 = vpop.f32.mrf.mxu0
    %v764 = vadd.f32 %v151, %v763
    %v765 = vpop.f32.mrf.mxu0
    %v766 = vadd.f32 %v151, %v765
    %767 = vdwg.mxu0
    %v768 = vxor.u32 %v422, 2147483648
    %v769 = vxor.u32 %v511, 2147483648
    %v770 = vxor.u32 %v600, 2147483648
    %v771 = vxor.u32 %v689, 2147483648
    %v772 = vxor.u32 %v424, 2147483648
    %v773 = vxor.u32 %v513, 2147483648
    %v774 = vxor.u32 %v602, 2147483648
    %v775 = vxor.u32 %v691, 2147483648
    %v776 = vxor.u32 %v427, 2147483648
    %v777 = vxor.u32 %v516, 2147483648
    %v778 = vxor.u32 %v605, 2147483648
    %v779 = vxor.u32 %v694, 2147483648
    %v780 = vxor.u32 %v429, 2147483648
    %v781 = vxor.u32 %v518, 2147483648
    %v782 = vxor.u32 %v607, 2147483648
    %v783 = vxor.u32 %v696, 2147483648
    %v784 = vxor.u32 %v432, 2147483648
    %v785 = vxor.u32 %v521, 2147483648
    %v786 = vxor.u32 %v610, 2147483648
    %v787 = vxor.u32 %v699, 2147483648
    %v788 = vxor.u32 %v434, 2147483648
    %v789 = vxor.u32 %v523, 2147483648
    %v790 = vxor.u32 %v612, 2147483648
    %v791 = vxor.u32 %v701, 2147483648
    %v792 = vxor.u32 %v437, 2147483648
    %v793 = vxor.u32 %v526, 2147483648
    %v794 = vxor.u32 %v615, 2147483648
    %v795 = vxor.u32 %v704, 2147483648
    %v796 = vxor.u32 %v439, 2147483648
    %v797 = vxor.u32 %v528, 2147483648
    %v798 = vxor.u32 %v617, 2147483648
    %v799 = vxor.u32 %v706, 2147483648
    %v800 = vxor.u32 %v442, 2147483648
    %v801 = vxor.u32 %v531, 2147483648
    %v802 = vxor.u32 %v620, 2147483648
    %v803 = vxor.u32 %v709, 2147483648
    %v804 = vxor.u32 %v444, 2147483648
    %v805 = vxor.u32 %v533, 2147483648
    %v806 = vxor.u32 %v622, 2147483648
    %v807 = vxor.u32 %v711, 2147483648
    %v808 = vxor.u32 %v447, 2147483648
    %v809 = vxor.u32 %v536, 2147483648
    %v810 = vxor.u32 %v625, 2147483648
    %v811 = vxor.u32 %v714, 2147483648
    %v812 = vxor.u32 %v449, 2147483648
    %v813 = vxor.u32 %v538, 2147483648
    %v814 = vxor.u32 %v627, 2147483648
    %v815 = vxor.u32 %v716, 2147483648
    %v816 = vxor.u32 %v452, 2147483648
    %v817 = vxor.u32 %v541, 2147483648
    %v818 = vxor.u32 %v630, 2147483648
    %v819 = vxor.u32 %v719, 2147483648
    %v820 = vxor.u32 %v454, 2147483648
    %v821 = vxor.u32 %v543, 2147483648
    %v822 = vxor.u32 %v632, 2147483648
    %v823 = vxor.u32 %v721, 2147483648
    %v824 = vxor.u32 %v457, 2147483648
    %v825 = vxor.u32 %v546, 2147483648
    %v826 = vxor.u32 %v635, 2147483648
    %v827 = vxor.u32 %v724, 2147483648
    %v828 = vxor.u32 %v459, 2147483648
    %v829 = vxor.u32 %v548, 2147483648
    %v830 = vxor.u32 %v637, 2147483648
    %v831 = vxor.u32 %v726, 2147483648
    %v832 = vxor.u32 %v462, 2147483648
    %v833 = vxor.u32 %v551, 2147483648
    %v834 = vxor.u32 %v640, 2147483648
    %v835 = vxor.u32 %v729, 2147483648
    %v836 = vxor.u32 %v464, 2147483648
    %v837 = vxor.u32 %v553, 2147483648
    %v838 = vxor.u32 %v642, 2147483648
    %v839 = vxor.u32 %v731, 2147483648
    %v840 = vxor.u32 %v467, 2147483648
    %v841 = vxor.u32 %v556, 2147483648
    %v842 = vxor.u32 %v645, 2147483648
    %v843 = vxor.u32 %v734, 2147483648
    %v844 = vxor.u32 %v469, 2147483648
    %v845 = vxor.u32 %v558, 2147483648
    %v846 = vxor.u32 %v647, 2147483648
    %v847 = vxor.u32 %v736, 2147483648
    %v848 = vxor.u32 %v472, 2147483648
    %v849 = vxor.u32 %v561, 2147483648
    %v850 = vxor.u32 %v650, 2147483648
    %v851 = vxor.u32 %v739, 2147483648
    %v852 = vxor.u32 %v474, 2147483648
    %v853 = vxor.u32 %v563, 2147483648
    %v854 = vxor.u32 %v652, 2147483648
    %v855 = vxor.u32 %v741, 2147483648
    %v856 = vxor.u32 %v477, 2147483648
    %v857 = vxor.u32 %v566, 2147483648
    %v858 = vxor.u32 %v655, 2147483648
    %v859 = vxor.u32 %v744, 2147483648
    %v860 = vxor.u32 %v479, 2147483648
    %v861 = vxor.u32 %v568, 2147483648
    %v862 = vxor.u32 %v657, 2147483648
    %v863 = vxor.u32 %v746, 2147483648
    %v864 = vxor.u32 %v482, 2147483648
    %v865 = vxor.u32 %v571, 2147483648
    %v866 = vxor.u32 %v660, 2147483648
    %v867 = vxor.u32 %v749, 2147483648
    %v868 = vxor.u32 %v484, 2147483648
    %v869 = vxor.u32 %v573, 2147483648
    %v870 = vxor.u32 %v662, 2147483648
    %v871 = vxor.u32 %v751, 2147483648
    %v872 = vxor.u32 %v487, 2147483648
    %v873 = vxor.u32 %v576, 2147483648
    %v874 = vxor.u32 %v665, 2147483648
    %v875 = vxor.u32 %v754, 2147483648
    %v876 = vxor.u32 %v489, 2147483648
    %v877 = vxor.u32 %v578, 2147483648
    %v878 = vxor.u32 %v667, 2147483648
    %v879 = vxor.u32 %v756, 2147483648
    %v880 = vxor.u32 %v492, 2147483648
    %v881 = vxor.u32 %v581, 2147483648
    %v882 = vxor.u32 %v670, 2147483648
    %v883 = vxor.u32 %v759, 2147483648
    %v884 = vxor.u32 %v494, 2147483648
    %v885 = vxor.u32 %v583, 2147483648
    %v886 = vxor.u32 %v672, 2147483648
    %v887 = vxor.u32 %v761, 2147483648
    %v888 = vxor.u32 %v497, 2147483648
    %v889 = vxor.u32 %v586, 2147483648
    %v890 = vxor.u32 %v675, 2147483648
    %v891 = vxor.u32 %v764, 2147483648
    %v892 = vxor.u32 %v499, 2147483648
    %v893 = vxor.u32 %v588, 2147483648
    %v894 = vxor.u32 %v677, 2147483648
    %v895 = vxor.u32 %v766, 2147483648
    %v896 = vmul.f32 %v768, 1.442695
    %v897 = vpow.pop %v896
    %v898 = vmul.f32 %v769, 1.442695
    %v899 = vpow.pop %v898
    %v900 = vmul.f32 %v770, 1.442695
    %v901 = vpow.pop %v900
    %v902 = vmul.f32 %v771, 1.442695
    %v903 = vpow.pop %v902
    %v904 = vmul.f32 %v772, 1.442695
    %v905 = vpow.pop %v904
    %v906 = vmul.f32 %v773, 1.442695
    %v907 = vpow.pop %v906
    %v908 = vmul.f32 %v774, 1.442695
    %v909 = vpow.pop %v908
    %v910 = vmul.f32 %v775, 1.442695
    %v911 = vpow.pop %v910
    %v912 = vmul.f32 %v776, 1.442695
    %v913 = vpow.pop %v912
    %v914 = vmul.f32 %v777, 1.442695
    %v915 = vpow.pop %v914
    %v916 = vmul.f32 %v778, 1.442695
    %v917 = vpow.pop %v916
    %v918 = vmul.f32 %v779, 1.442695
    %v919 = vpow.pop %v918
    %v920 = vmul.f32 %v780, 1.442695
    %v921 = vpow.pop %v920
    %v922 = vmul.f32 %v781, 1.442695
    %v923 = vpow.pop %v922
    %v924 = vmul.f32 %v782, 1.442695
    %v925 = vpow.pop %v924
    %v926 = vmul.f32 %v783, 1.442695
    %v927 = vpow.pop %v926
    %v928 = vmul.f32 %v784, 1.442695
    %v929 = vpow.pop %v928
    %v930 = vmul.f32 %v785, 1.442695
    %v931 = vpow.pop %v930
    %v932 = vmul.f32 %v786, 1.442695
    %v933 = vpow.pop %v932
    %v934 = vmul.f32 %v787, 1.442695
    %v935 = vpow.pop %v934
    %v936 = vmul.f32 %v788, 1.442695
    %v937 = vpow.pop %v936
    %v938 = vmul.f32 %v789, 1.442695
    %v939 = vpow.pop %v938
    %v940 = vmul.f32 %v790, 1.442695
    %v941 = vpow.pop %v940
    %v942 = vmul.f32 %v791, 1.442695
    %v943 = vpow.pop %v942
    %v944 = vmul.f32 %v792, 1.442695
    %v945 = vpow.pop %v944
    %v946 = vmul.f32 %v793, 1.442695
    %v947 = vpow.pop %v946
    %v948 = vmul.f32 %v794, 1.442695
    %v949 = vpow.pop %v948
    %v950 = vmul.f32 %v795, 1.442695
    %v951 = vpow.pop %v950
    %v952 = vmul.f32 %v796, 1.442695
    %v953 = vpow.pop %v952
    %v954 = vmul.f32 %v797, 1.442695
    %v955 = vpow.pop %v954
    %v956 = vmul.f32 %v798, 1.442695
    %v957 = vpow.pop %v956
    %v958 = vmul.f32 %v799, 1.442695
    %v959 = vpow.pop %v958
    %v960 = vmul.f32 %v800, 1.442695
    %v961 = vpow.pop %v960
    %v962 = vmul.f32 %v801, 1.442695
    %v963 = vpow.pop %v962
    %v964 = vmul.f32 %v802, 1.442695
    %v965 = vpow.pop %v964
    %v966 = vmul.f32 %v803, 1.442695
    %v967 = vpow.pop %v966
    %v968 = vmul.f32 %v804, 1.442695
    %v969 = vpow.pop %v968
    %v970 = vmul.f32 %v805, 1.442695
    %v971 = vpow.pop %v970
    %v972 = vmul.f32 %v806, 1.442695
    %v973 = vpow.pop %v972
    %v974 = vmul.f32 %v807, 1.442695
    %v975 = vpow.pop %v974
    %v976 = vmul.f32 %v808, 1.442695
    %v977 = vpow.pop %v976
    %v978 = vmul.f32 %v809, 1.442695
    %v979 = vpow.pop %v978
    %v980 = vmul.f32 %v810, 1.442695
    %v981 = vpow.pop %v980
    %v982 = vmul.f32 %v811, 1.442695
    %v983 = vpow.pop %v982
    %v984 = vmul.f32 %v812, 1.442695
    %v985 = vpow.pop %v984
    %v986 = vmul.f32 %v813, 1.442695
    %v987 = vpow.pop %v986
    %v988 = vmul.f32 %v814, 1.442695
    %v989 = vpow.pop %v988
    %v990 = vmul.f32 %v815, 1.442695
    %v991 = vpow.pop %v990
    %v992 = vmul.f32 %v816, 1.442695
    %v993 = vpow.pop %v992
    %v994 = vmul.f32 %v817, 1.442695
    %v995 = vpow.pop %v994
    %v996 = vmul.f32 %v818, 1.442695
    %v997 = vpow.pop %v996
    %v998 = vmul.f32 %v819, 1.442695
    %v999 = vpow.pop %v998
    %v1000 = vmul.f32 %v820, 1.442695
    %v1001 = vpow.pop %v1000
    %v1002 = vmul.f32 %v821, 1.442695
    %v1003 = vpow.pop %v1002
    %v1004 = vmul.f32 %v822, 1.442695
    %v1005 = vpow.pop %v1004
    %v1006 = vmul.f32 %v823, 1.442695
    %v1007 = vpow.pop %v1006
    %v1008 = vmul.f32 %v824, 1.442695
    %v1009 = vpow.pop %v1008
    %v1010 = vmul.f32 %v825, 1.442695
    %v1011 = vpow.pop %v1010
    %v1012 = vmul.f32 %v826, 1.442695
    %v1013 = vpow.pop %v1012
    %v1014 = vmul.f32 %v827, 1.442695
    %v1015 = vpow.pop %v1014
    %v1016 = vmul.f32 %v828, 1.442695
    %v1017 = vpow.pop %v1016
    %v1018 = vmul.f32 %v829, 1.442695
    %v1019 = vpow.pop %v1018
    %v1020 = vmul.f32 %v830, 1.442695
    %v1021 = vpow.pop %v1020
    %v1022 = vmul.f32 %v831, 1.442695
    %v1023 = vpow.pop %v1022
    %v1024 = vmul.f32 %v832, 1.442695
    %v1025 = vpow.pop %v1024
    %v1026 = vmul.f32 %v833, 1.442695
    %v1027 = vpow.pop %v1026
    %v1028 = vmul.f32 %v834, 1.442695
    %v1029 = vpow.pop %v1028
    %v1030 = vmul.f32 %v835, 1.442695
    %v1031 = vpow.pop %v1030
    %v1032 = vmul.f32 %v836, 1.442695
    %v1033 = vpow.pop %v1032
    %v1034 = vmul.f32 %v837, 1.442695
    %v1035 = vpow.pop %v1034
    %v1036 = vmul.f32 %v838, 1.442695
    %v1037 = vpow.pop %v1036
    %v1038 = vmul.f32 %v839, 1.442695
    %v1039 = vpow.pop %v1038
    %v1040 = vmul.f32 %v840, 1.442695
    %v1041 = vpow.pop %v1040
    %v1042 = vmul.f32 %v841, 1.442695
    %v1043 = vpow.pop %v1042
    %v1044 = vmul.f32 %v842, 1.442695
    %v1045 = vpow.pop %v1044
    %v1046 = vmul.f32 %v843, 1.442695
    %v1047 = vpow.pop %v1046
    %v1048 = vmul.f32 %v844, 1.442695
    %v1049 = vpow.pop %v1048
    %v1050 = vmul.f32 %v845, 1.442695
    %v1051 = vpow.pop %v1050
    %v1052 = vmul.f32 %v846, 1.442695
    %v1053 = vpow.pop %v1052
    %v1054 = vmul.f32 %v847, 1.442695
    %v1055 = vpow.pop %v1054
    %v1056 = vmul.f32 %v848, 1.442695
    %v1057 = vpow.pop %v1056
    %v1058 = vmul.f32 %v849, 1.442695
    %v1059 = vpow.pop %v1058
    %v1060 = vmul.f32 %v850, 1.442695
    %v1061 = vpow.pop %v1060
    %v1062 = vmul.f32 %v851, 1.442695
    %v1063 = vpow.pop %v1062
    %v1064 = vmul.f32 %v852, 1.442695
    %v1065 = vpow.pop %v1064
    %v1066 = vmul.f32 %v853, 1.442695
    %v1067 = vpow.pop %v1066
    %v1068 = vmul.f32 %v854, 1.442695
    %v1069 = vpow.pop %v1068
    %v1070 = vmul.f32 %v855, 1.442695
    %v1071 = vpow.pop %v1070
    %v1072 = vmul.f32 %v856, 1.442695
    %v1073 = vpow.pop %v1072
    %v1074 = vmul.f32 %v857, 1.442695
    %v1075 = vpow.pop %v1074
    %v1076 = vmul.f32 %v858, 1.442695
    %v1077 = vpow.pop %v1076
    %v1078 = vmul.f32 %v859, 1.442695
    %v1079 = vpow.pop %v1078
    %v1080 = vmul.f32 %v860, 1.442695
    %v1081 = vpow.pop %v1080
    %v1082 = vmul.f32 %v861, 1.442695
    %v1083 = vpow.pop %v1082
    %v1084 = vmul.f32 %v862, 1.442695
    %v1085 = vpow.pop %v1084
    %v1086 = vmul.f32 %v863, 1.442695
    %v1087 = vpow.pop %v1086
    %v1088 = vmul.f32 %v864, 1.442695
    %v1089 = vpow.pop %v1088
    %v1090 = vmul.f32 %v865, 1.442695
    %v1091 = vpow.pop %v1090
    %v1092 = vmul.f32 %v866, 1.442695
    %v1093 = vpow.pop %v1092
    %v1094 = vmul.f32 %v867, 1.442695
    %v1095 = vpow.pop %v1094
    %v1096 = vmul.f32 %v868, 1.442695
    %v1097 = vpow.pop %v1096
    %v1098 = vmul.f32 %v869, 1.442695
    %v1099 = vpow.pop %v1098
    %v1100 = vmul.f32 %v870, 1.442695
    %v1101 = vpow.pop %v1100
    %v1102 = vmul.f32 %v871, 1.442695
    %v1103 = vpow.pop %v1102
    %v1104 = vmul.f32 %v872, 1.442695
    %v1105 = vpow.pop %v1104
    %v1106 = vmul.f32 %v873, 1.442695
    %v1107 = vpow.pop %v1106
    %v1108 = vmul.f32 %v874, 1.442695
    %v1109 = vpow.pop %v1108
    %v1110 = vmul.f32 %v875, 1.442695
    %v1111 = vpow.pop %v1110
    %v1112 = vmul.f32 %v876, 1.442695
    %v1113 = vpow.pop %v1112
    %v1114 = vmul.f32 %v877, 1.442695
    %v1115 = vpow.pop %v1114
    %v1116 = vmul.f32 %v878, 1.442695
    %v1117 = vpow.pop %v1116
    %v1118 = vmul.f32 %v879, 1.442695
    %v1119 = vpow.pop %v1118
    %v1120 = vmul.f32 %v880, 1.442695
    %v1121 = vpow.pop %v1120
    %v1122 = vmul.f32 %v881, 1.442695
    %v1123 = vpow.pop %v1122
    %v1124 = vmul.f32 %v882, 1.442695
    %v1125 = vpow.pop %v1124
    %v1126 = vmul.f32 %v883, 1.442695
    %v1127 = vpow.pop %v1126
    %v1128 = vmul.f32 %v884, 1.442695
    %v1129 = vpow.pop %v1128
    %v1130 = vmul.f32 %v885, 1.442695
    %v1131 = vpow.pop %v1130
    %v1132 = vmul.f32 %v886, 1.442695
    %v1133 = vpow.pop %v1132
    %v1134 = vmul.f32 %v887, 1.442695
    %v1135 = vpow.pop %v1134
    %v1136 = vmul.f32 %v888, 1.442695
    %v1137 = vpow.pop %v1136
    %v1138 = vmul.f32 %v889, 1.442695
    %v1139 = vpow.pop %v1138
    %v1140 = vmul.f32 %v890, 1.442695
    %v1141 = vpow.pop %v1140
    %v1142 = vmul.f32 %v891, 1.442695
    %v1143 = vpow.pop %v1142
    %v1144 = vmul.f32 %v892, 1.442695
    %v1145 = vpow.pop %v1144
    %v1146 = vmul.f32 %v893, 1.442695
    %v1147 = vpow.pop %v1146
    %v1148 = vmul.f32 %v894, 1.442695
    %v1149 = vpow.pop %v1148
    %v1150 = vmul.f32 %v895, 1.442695
    %v1151 = vpow.pop %v1150
    %v1152 = vadd.f32 %v897, 1.0
    %v1153 = vadd.f32 %v899, 1.0
    %v1154 = vadd.f32 %v901, 1.0
    %v1155 = vadd.f32 %v903, 1.0
    %v1156 = vadd.f32 %v905, 1.0
    %v1157 = vadd.f32 %v907, 1.0
    %v1158 = vadd.f32 %v909, 1.0
    %v1159 = vadd.f32 %v911, 1.0
    %v1160 = vadd.f32 %v913, 1.0
    %v1161 = vadd.f32 %v915, 1.0
    %v1162 = vadd.f32 %v917, 1.0
    %v1163 = vadd.f32 %v919, 1.0
    %v1164 = vadd.f32 %v921, 1.0
    %v1165 = vadd.f32 %v923, 1.0
    %v1166 = vadd.f32 %v925, 1.0
    %v1167 = vadd.f32 %v927, 1.0
    %v1168 = vadd.f32 %v929, 1.0
    %v1169 = vadd.f32 %v931, 1.0
    %v1170 = vadd.f32 %v933, 1.0
    %v1171 = vadd.f32 %v935, 1.0
    %v1172 = vadd.f32 %v937, 1.0
    %v1173 = vadd.f32 %v939, 1.0
    %v1174 = vadd.f32 %v941, 1.0
    %v1175 = vadd.f32 %v943, 1.0
    %v1176 = vadd.f32 %v945, 1.0
    %v1177 = vadd.f32 %v947, 1.0
    %v1178 = vadd.f32 %v949, 1.0
    %v1179 = vadd.f32 %v951, 1.0
    %v1180 = vadd.f32 %v953, 1.0
    %v1181 = vadd.f32 %v955, 1.0
    %v1182 = vadd.f32 %v957, 1.0
    %v1183 = vadd.f32 %v959, 1.0
    %v1184 = vadd.f32 %v961, 1.0
    %v1185 = vadd.f32 %v963, 1.0
    %v1186 = vadd.f32 %v965, 1.0
    %v1187 = vadd.f32 %v967, 1.0
    %v1188 = vadd.f32 %v969, 1.0
    %v1189 = vadd.f32 %v971, 1.0
    %v1190 = vadd.f32 %v973, 1.0
    %v1191 = vadd.f32 %v975, 1.0
    %v1192 = vadd.f32 %v977, 1.0
    %v1193 = vadd.f32 %v979, 1.0
    %v1194 = vadd.f32 %v981, 1.0
    %v1195 = vadd.f32 %v983, 1.0
    %v1196 = vadd.f32 %v985, 1.0
    %v1197 = vadd.f32 %v987, 1.0
    %v1198 = vadd.f32 %v989, 1.0
    %v1199 = vadd.f32 %v991, 1.0
    %v1200 = vadd.f32 %v993, 1.0
    %v1201 = vadd.f32 %v995, 1.0
    %v1202 = vadd.f32 %v997, 1.0
    %v1203 = vadd.f32 %v999, 1.0
    %v1204 = vadd.f32 %v1001, 1.0
    %v1205 = vadd.f32 %v1003, 1.0
    %v1206 = vadd.f32 %v1005, 1.0
    %v1207 = vadd.f32 %v1007, 1.0
    %v1208 = vadd.f32 %v1009, 1.0
    %v1209 = vadd.f32 %v1011, 1.0
    %v1210 = vadd.f32 %v1013, 1.0
    %v1211 = vadd.f32 %v1015, 1.0
    %v1212 = vadd.f32 %v1017, 1.0
    %v1213 = vadd.f32 %v1019, 1.0
    %v1214 = vadd.f32 %v1021, 1.0
    %v1215 = vadd.f32 %v1023, 1.0
    %v1216 = vadd.f32 %v1025, 1.0
    %v1217 = vadd.f32 %v1027, 1.0
    %v1218 = vadd.f32 %v1029, 1.0
    %v1219 = vadd.f32 %v1031, 1.0
    %v1220 = vadd.f32 %v1033, 1.0
    %v1221 = vadd.f32 %v1035, 1.0
    %v1222 = vadd.f32 %v1037, 1.0
    %v1223 = vadd.f32 %v1039, 1.0
    %v1224 = vadd.f32 %v1041, 1.0
    %v1225 = vadd.f32 %v1043, 1.0
    %v1226 = vadd.f32 %v1045, 1.0
    %v1227 = vadd.f32 %v1047, 1.0
    %v1228 = vadd.f32 %v1049, 1.0
    %v1229 = vadd.f32 %v1051, 1.0
    %v1230 = vadd.f32 %v1053, 1.0
    %v1231 = vadd.f32 %v1055, 1.0
    %v1232 = vadd.f32 %v1057, 1.0
    %v1233 = vadd.f32 %v1059, 1.0
    %v1234 = vadd.f32 %v1061, 1.0
    %v1235 = vadd.f32 %v1063, 1.0
    %v1236 = vadd.f32 %v1065, 1.0
    %v1237 = vadd.f32 %v1067, 1.0
    %v1238 = vadd.f32 %v1069, 1.0
    %v1239 = vadd.f32 %v1071, 1.0
    %v1240 = vadd.f32 %v1073, 1.0
    %v1241 = vadd.f32 %v1075, 1.0
    %v1242 = vadd.f32 %v1077, 1.0
    %v1243 = vadd.f32 %v1079, 1.0
    %v1244 = vadd.f32 %v1081, 1.0
    %v1245 = vadd.f32 %v1083, 1.0
    %v1246 = vadd.f32 %v1085, 1.0
    %v1247 = vadd.f32 %v1087, 1.0
    %v1248 = vadd.f32 %v1089, 1.0
    %v1249 = vadd.f32 %v1091, 1.0
    %v1250 = vadd.f32 %v1093, 1.0
    %v1251 = vadd.f32 %v1095, 1.0
    %v1252 = vadd.f32 %v1097, 1.0
    %v1253 = vadd.f32 %v1099, 1.0
    %v1254 = vadd.f32 %v1101, 1.0
    %v1255 = vadd.f32 %v1103, 1.0
    %v1256 = vadd.f32 %v1105, 1.0
    %v1257 = vadd.f32 %v1107, 1.0
    %v1258 = vadd.f32 %v1109, 1.0
    %v1259 = vadd.f32 %v1111, 1.0
    %v1260 = vadd.f32 %v1113, 1.0
    %v1261 = vadd.f32 %v1115, 1.0
    %v1262 = vadd.f32 %v1117, 1.0
    %v1263 = vadd.f32 %v1119, 1.0
    %v1264 = vadd.f32 %v1121, 1.0
    %v1265 = vadd.f32 %v1123, 1.0
    %v1266 = vadd.f32 %v1125, 1.0
    %v1267 = vadd.f32 %v1127, 1.0
    %v1268 = vadd.f32 %v1129, 1.0
    %v1269 = vadd.f32 %v1131, 1.0
    %v1270 = vadd.f32 %v1133, 1.0
    %v1271 = vadd.f32 %v1135, 1.0
    %v1272 = vadd.f32 %v1137, 1.0
    %v1273 = vadd.f32 %v1139, 1.0
    %v1274 = vadd.f32 %v1141, 1.0
    %v1275 = vadd.f32 %v1143, 1.0
    %v1276 = vadd.f32 %v1145, 1.0
    %v1277 = vadd.f32 %v1147, 1.0
    %v1278 = vadd.f32 %v1149, 1.0
    %v1279 = vadd.f32 %v1151, 1.0
    %v1280 = vrcp.pop %v1152
    %v1281 = vmul.f32 %v1152, %v1280
    %v1282 = vsub.f32 1.0, %v1281
    %v1283 = vmul.f32 %v1280, %v1282
    %v1284 = vadd.f32 %v1280, %v1283
    %vm1285 = vweird.f32 %v1152
    %vm1286 = vweird.f32 %v1280
    %vm1287 = vmor %vm1285, %vm1286
    %v1288 = vsel %vm1287, %v1280, %v1284
    %v1289 = vand.u32 2147483647, %v1152
    %vm1290 = vcmp.eq.f32.partialorder %v1289, 8.507059e+37
    %v1291 = vand.u32 %v1152, 2147483648
    %v1292 = vor.u32 1.1754944e-38, %v1291
    %v1293 = vsel %vm1290, %v1292, %v1288
    %v1294 = vmul.f32 1.0, %v1293
    %v1295 = vrcp.pop %v1153
    %v1296 = vmul.f32 %v1153, %v1295
    %v1297 = vsub.f32 1.0, %v1296
    %v1298 = vmul.f32 %v1295, %v1297
    %v1299 = vadd.f32 %v1295, %v1298
    %vm1300 = vweird.f32 %v1153
    %vm1301 = vweird.f32 %v1295
    %vm1302 = vmor %vm1300, %vm1301
    %v1303 = vsel %vm1302, %v1295, %v1299
    %v1304 = vand.u32 2147483647, %v1153
    %vm1305 = vcmp.eq.f32.partialorder %v1304, 8.507059e+37
    %v1306 = vand.u32 %v1153, 2147483648
    %v1307 = vor.u32 1.1754944e-38, %v1306
    %v1308 = vsel %vm1305, %v1307, %v1303
    %v1309 = vmul.f32 1.0, %v1308
    %v1310 = vrcp.pop %v1154
    %v1311 = vmul.f32 %v1154, %v1310
    %v1312 = vsub.f32 1.0, %v1311
    %v1313 = vmul.f32 %v1310, %v1312
    %v1314 = vadd.f32 %v1310, %v1313
    %vm1315 = vweird.f32 %v1154
    %vm1316 = vweird.f32 %v1310
    %vm1317 = vmor %vm1315, %vm1316
    %v1318 = vsel %vm1317, %v1310, %v1314
    %v1319 = vand.u32 2147483647, %v1154
    %vm1320 = vcmp.eq.f32.partialorder %v1319, 8.507059e+37
    %v1321 = vand.u32 %v1154, 2147483648
    %v1322 = vor.u32 1.1754944e-38, %v1321
    %v1323 = vsel %vm1320, %v1322, %v1318
    %v1324 = vmul.f32 1.0, %v1323
    %v1325 = vrcp.pop %v1155
    %v1326 = vmul.f32 %v1155, %v1325
    %v1327 = vsub.f32 1.0, %v1326
    %v1328 = vmul.f32 %v1325, %v1327
    %v1329 = vadd.f32 %v1325, %v1328
    %vm1330 = vweird.f32 %v1155
    %vm1331 = vweird.f32 %v1325
    %vm1332 = vmor %vm1330, %vm1331
    %v1333 = vsel %vm1332, %v1325, %v1329
    %v1334 = vand.u32 2147483647, %v1155
    %vm1335 = vcmp.eq.f32.partialorder %v1334, 8.507059e+37
    %v1336 = vand.u32 %v1155, 2147483648
    %v1337 = vor.u32 1.1754944e-38, %v1336
    %v1338 = vsel %vm1335, %v1337, %v1333
    %v1339 = vmul.f32 1.0, %v1338
    %v1340 = vrcp.pop %v1156
    %v1341 = vmul.f32 %v1156, %v1340
    %v1342 = vsub.f32 1.0, %v1341
    %v1343 = vmul.f32 %v1340, %v1342
    %v1344 = vadd.f32 %v1340, %v1343
    %vm1345 = vweird.f32 %v1156
    %vm1346 = vweird.f32 %v1340
    %vm1347 = vmor %vm1345, %vm1346
    %v1348 = vsel %vm1347, %v1340, %v1344
    %v1349 = vand.u32 2147483647, %v1156
    %vm1350 = vcmp.eq.f32.partialorder %v1349, 8.507059e+37
    %v1351 = vand.u32 %v1156, 2147483648
    %v1352 = vor.u32 1.1754944e-38, %v1351
    %v1353 = vsel %vm1350, %v1352, %v1348
    %v1354 = vmul.f32 1.0, %v1353
    %v1355 = vrcp.pop %v1157
    %v1356 = vmul.f32 %v1157, %v1355
    %v1357 = vsub.f32 1.0, %v1356
    %v1358 = vmul.f32 %v1355, %v1357
    %v1359 = vadd.f32 %v1355, %v1358
    %vm1360 = vweird.f32 %v1157
    %vm1361 = vweird.f32 %v1355
    %vm1362 = vmor %vm1360, %vm1361
    %v1363 = vsel %vm1362, %v1355, %v1359
    %v1364 = vand.u32 2147483647, %v1157
    %vm1365 = vcmp.eq.f32.partialorder %v1364, 8.507059e+37
    %v1366 = vand.u32 %v1157, 2147483648
    %v1367 = vor.u32 1.1754944e-38, %v1366
    %v1368 = vsel %vm1365, %v1367, %v1363
    %v1369 = vmul.f32 1.0, %v1368
    %v1370 = vrcp.pop %v1158
    %v1371 = vmul.f32 %v1158, %v1370
    %v1372 = vsub.f32 1.0, %v1371
    %v1373 = vmul.f32 %v1370, %v1372
    %v1374 = vadd.f32 %v1370, %v1373
    %vm1375 = vweird.f32 %v1158
    %vm1376 = vweird.f32 %v1370
    %vm1377 = vmor %vm1375, %vm1376
    %v1378 = vsel %vm1377, %v1370, %v1374
    %v1379 = vand.u32 2147483647, %v1158
    %vm1380 = vcmp.eq.f32.partialorder %v1379, 8.507059e+37
    %v1381 = vand.u32 %v1158, 2147483648
    %v1382 = vor.u32 1.1754944e-38, %v1381
    %v1383 = vsel %vm1380, %v1382, %v1378
    %v1384 = vmul.f32 1.0, %v1383
    %v1385 = vrcp.pop %v1159
    %v1386 = vmul.f32 %v1159, %v1385
    %v1387 = vsub.f32 1.0, %v1386
    %v1388 = vmul.f32 %v1385, %v1387
    %v1389 = vadd.f32 %v1385, %v1388
    %vm1390 = vweird.f32 %v1159
    %vm1391 = vweird.f32 %v1385
    %vm1392 = vmor %vm1390, %vm1391
    %v1393 = vsel %vm1392, %v1385, %v1389
    %v1394 = vand.u32 2147483647, %v1159
    %vm1395 = vcmp.eq.f32.partialorder %v1394, 8.507059e+37
    %v1396 = vand.u32 %v1159, 2147483648
    %v1397 = vor.u32 1.1754944e-38, %v1396
    %v1398 = vsel %vm1395, %v1397, %v1393
    %v1399 = vmul.f32 1.0, %v1398
    %v1400 = vrcp.pop %v1160
    %v1401 = vmul.f32 %v1160, %v1400
    %v1402 = vsub.f32 1.0, %v1401
    %v1403 = vmul.f32 %v1400, %v1402
    %v1404 = vadd.f32 %v1400, %v1403
    %vm1405 = vweird.f32 %v1160
    %vm1406 = vweird.f32 %v1400
    %vm1407 = vmor %vm1405, %vm1406
    %v1408 = vsel %vm1407, %v1400, %v1404
    %v1409 = vand.u32 2147483647, %v1160
    %vm1410 = vcmp.eq.f32.partialorder %v1409, 8.507059e+37
    %v1411 = vand.u32 %v1160, 2147483648
    %v1412 = vor.u32 1.1754944e-38, %v1411
    %v1413 = vsel %vm1410, %v1412, %v1408
    %v1414 = vmul.f32 1.0, %v1413
    %v1415 = vrcp.pop %v1161
    %v1416 = vmul.f32 %v1161, %v1415
    %v1417 = vsub.f32 1.0, %v1416
    %v1418 = vmul.f32 %v1415, %v1417
    %v1419 = vadd.f32 %v1415, %v1418
    %vm1420 = vweird.f32 %v1161
    %vm1421 = vweird.f32 %v1415
    %vm1422 = vmor %vm1420, %vm1421
    %v1423 = vsel %vm1422, %v1415, %v1419
    %v1424 = vand.u32 2147483647, %v1161
    %vm1425 = vcmp.eq.f32.partialorder %v1424, 8.507059e+37
    %v1426 = vand.u32 %v1161, 2147483648
    %v1427 = vor.u32 1.1754944e-38, %v1426
    %v1428 = vsel %vm1425, %v1427, %v1423
    %v1429 = vmul.f32 1.0, %v1428
    %v1430 = vrcp.pop %v1162
    %v1431 = vmul.f32 %v1162, %v1430
    %v1432 = vsub.f32 1.0, %v1431
    %v1433 = vmul.f32 %v1430, %v1432
    %v1434 = vadd.f32 %v1430, %v1433
    %vm1435 = vweird.f32 %v1162
    %vm1436 = vweird.f32 %v1430
    %vm1437 = vmor %vm1435, %vm1436
    %v1438 = vsel %vm1437, %v1430, %v1434
    %v1439 = vand.u32 2147483647, %v1162
    %vm1440 = vcmp.eq.f32.partialorder %v1439, 8.507059e+37
    %v1441 = vand.u32 %v1162, 2147483648
    %v1442 = vor.u32 1.1754944e-38, %v1441
    %v1443 = vsel %vm1440, %v1442, %v1438
    %v1444 = vmul.f32 1.0, %v1443
    %v1445 = vrcp.pop %v1163
    %v1446 = vmul.f32 %v1163, %v1445
    %v1447 = vsub.f32 1.0, %v1446
    %v1448 = vmul.f32 %v1445, %v1447
    %v1449 = vadd.f32 %v1445, %v1448
    %vm1450 = vweird.f32 %v1163
    %vm1451 = vweird.f32 %v1445
    %vm1452 = vmor %vm1450, %vm1451
    %v1453 = vsel %vm1452, %v1445, %v1449
    %v1454 = vand.u32 2147483647, %v1163
    %vm1455 = vcmp.eq.f32.partialorder %v1454, 8.507059e+37
    %v1456 = vand.u32 %v1163, 2147483648
    %v1457 = vor.u32 1.1754944e-38, %v1456
    %v1458 = vsel %vm1455, %v1457, %v1453
    %v1459 = vmul.f32 1.0, %v1458
    %v1460 = vrcp.pop %v1164
    %v1461 = vmul.f32 %v1164, %v1460
    %v1462 = vsub.f32 1.0, %v1461
    %v1463 = vmul.f32 %v1460, %v1462
    %v1464 = vadd.f32 %v1460, %v1463
    %vm1465 = vweird.f32 %v1164
    %vm1466 = vweird.f32 %v1460
    %vm1467 = vmor %vm1465, %vm1466
    %v1468 = vsel %vm1467, %v1460, %v1464
    %v1469 = vand.u32 2147483647, %v1164
    %vm1470 = vcmp.eq.f32.partialorder %v1469, 8.507059e+37
    %v1471 = vand.u32 %v1164, 2147483648
    %v1472 = vor.u32 1.1754944e-38, %v1471
    %v1473 = vsel %vm1470, %v1472, %v1468
    %v1474 = vmul.f32 1.0, %v1473
    %v1475 = vrcp.pop %v1165
    %v1476 = vmul.f32 %v1165, %v1475
    %v1477 = vsub.f32 1.0, %v1476
    %v1478 = vmul.f32 %v1475, %v1477
    %v1479 = vadd.f32 %v1475, %v1478
    %vm1480 = vweird.f32 %v1165
    %vm1481 = vweird.f32 %v1475
    %vm1482 = vmor %vm1480, %vm1481
    %v1483 = vsel %vm1482, %v1475, %v1479
    %v1484 = vand.u32 2147483647, %v1165
    %vm1485 = vcmp.eq.f32.partialorder %v1484, 8.507059e+37
    %v1486 = vand.u32 %v1165, 2147483648
    %v1487 = vor.u32 1.1754944e-38, %v1486
    %v1488 = vsel %vm1485, %v1487, %v1483
    %v1489 = vmul.f32 1.0, %v1488
    %v1490 = vrcp.pop %v1166
    %v1491 = vmul.f32 %v1166, %v1490
    %v1492 = vsub.f32 1.0, %v1491
    %v1493 = vmul.f32 %v1490, %v1492
    %v1494 = vadd.f32 %v1490, %v1493
    %vm1495 = vweird.f32 %v1166
    %vm1496 = vweird.f32 %v1490
    %vm1497 = vmor %vm1495, %vm1496
    %v1498 = vsel %vm1497, %v1490, %v1494
    %v1499 = vand.u32 2147483647, %v1166
    %vm1500 = vcmp.eq.f32.partialorder %v1499, 8.507059e+37
    %v1501 = vand.u32 %v1166, 2147483648
    %v1502 = vor.u32 1.1754944e-38, %v1501
    %v1503 = vsel %vm1500, %v1502, %v1498
    %v1504 = vmul.f32 1.0, %v1503
    %v1505 = vrcp.pop %v1167
    %v1506 = vmul.f32 %v1167, %v1505
    %v1507 = vsub.f32 1.0, %v1506
    %v1508 = vmul.f32 %v1505, %v1507
    %v1509 = vadd.f32 %v1505, %v1508
    %vm1510 = vweird.f32 %v1167
    %vm1511 = vweird.f32 %v1505
    %vm1512 = vmor %vm1510, %vm1511
    %v1513 = vsel %vm1512, %v1505, %v1509
    %v1514 = vand.u32 2147483647, %v1167
    %vm1515 = vcmp.eq.f32.partialorder %v1514, 8.507059e+37
    %v1516 = vand.u32 %v1167, 2147483648
    %v1517 = vor.u32 1.1754944e-38, %v1516
    %v1518 = vsel %vm1515, %v1517, %v1513
    %v1519 = vmul.f32 1.0, %v1518
    %v1520 = vrcp.pop %v1168
    %v1521 = vmul.f32 %v1168, %v1520
    %v1522 = vsub.f32 1.0, %v1521
    %v1523 = vmul.f32 %v1520, %v1522
    %v1524 = vadd.f32 %v1520, %v1523
    %vm1525 = vweird.f32 %v1168
    %vm1526 = vweird.f32 %v1520
    %vm1527 = vmor %vm1525, %vm1526
    %v1528 = vsel %vm1527, %v1520, %v1524
    %v1529 = vand.u32 2147483647, %v1168
    %vm1530 = vcmp.eq.f32.partialorder %v1529, 8.507059e+37
    %v1531 = vand.u32 %v1168, 2147483648
    %v1532 = vor.u32 1.1754944e-38, %v1531
    %v1533 = vsel %vm1530, %v1532, %v1528
    %v1534 = vmul.f32 1.0, %v1533
    %v1535 = vrcp.pop %v1169
    %v1536 = vmul.f32 %v1169, %v1535
    %v1537 = vsub.f32 1.0, %v1536
    %v1538 = vmul.f32 %v1535, %v1537
    %v1539 = vadd.f32 %v1535, %v1538
    %vm1540 = vweird.f32 %v1169
    %vm1541 = vweird.f32 %v1535
    %vm1542 = vmor %vm1540, %vm1541
    %v1543 = vsel %vm1542, %v1535, %v1539
    %v1544 = vand.u32 2147483647, %v1169
    %vm1545 = vcmp.eq.f32.partialorder %v1544, 8.507059e+37
    %v1546 = vand.u32 %v1169, 2147483648
    %v1547 = vor.u32 1.1754944e-38, %v1546
    %v1548 = vsel %vm1545, %v1547, %v1543
    %v1549 = vmul.f32 1.0, %v1548
    %v1550 = vrcp.pop %v1170
    %v1551 = vmul.f32 %v1170, %v1550
    %v1552 = vsub.f32 1.0, %v1551
    %v1553 = vmul.f32 %v1550, %v1552
    %v1554 = vadd.f32 %v1550, %v1553
    %vm1555 = vweird.f32 %v1170
    %vm1556 = vweird.f32 %v1550
    %vm1557 = vmor %vm1555, %vm1556
    %v1558 = vsel %vm1557, %v1550, %v1554
    %v1559 = vand.u32 2147483647, %v1170
    %vm1560 = vcmp.eq.f32.partialorder %v1559, 8.507059e+37
    %v1561 = vand.u32 %v1170, 2147483648
    %v1562 = vor.u32 1.1754944e-38, %v1561
    %v1563 = vsel %vm1560, %v1562, %v1558
    %v1564 = vmul.f32 1.0, %v1563
    %v1565 = vrcp.pop %v1171
    %v1566 = vmul.f32 %v1171, %v1565
    %v1567 = vsub.f32 1.0, %v1566
    %v1568 = vmul.f32 %v1565, %v1567
    %v1569 = vadd.f32 %v1565, %v1568
    %vm1570 = vweird.f32 %v1171
    %vm1571 = vweird.f32 %v1565
    %vm1572 = vmor %vm1570, %vm1571
    %v1573 = vsel %vm1572, %v1565, %v1569
    %v1574 = vand.u32 2147483647, %v1171
    %vm1575 = vcmp.eq.f32.partialorder %v1574, 8.507059e+37
    %v1576 = vand.u32 %v1171, 2147483648
    %v1577 = vor.u32 1.1754944e-38, %v1576
    %v1578 = vsel %vm1575, %v1577, %v1573
    %v1579 = vmul.f32 1.0, %v1578
    %v1580 = vrcp.pop %v1172
    %v1581 = vmul.f32 %v1172, %v1580
    %v1582 = vsub.f32 1.0, %v1581
    %v1583 = vmul.f32 %v1580, %v1582
    %v1584 = vadd.f32 %v1580, %v1583
    %vm1585 = vweird.f32 %v1172
    %vm1586 = vweird.f32 %v1580
    %vm1587 = vmor %vm1585, %vm1586
    %v1588 = vsel %vm1587, %v1580, %v1584
    %v1589 = vand.u32 2147483647, %v1172
    %vm1590 = vcmp.eq.f32.partialorder %v1589, 8.507059e+37
    %v1591 = vand.u32 %v1172, 2147483648
    %v1592 = vor.u32 1.1754944e-38, %v1591
    %v1593 = vsel %vm1590, %v1592, %v1588
    %v1594 = vmul.f32 1.0, %v1593
    %v1595 = vrcp.pop %v1173
    %v1596 = vmul.f32 %v1173, %v1595
    %v1597 = vsub.f32 1.0, %v1596
    %v1598 = vmul.f32 %v1595, %v1597
    %v1599 = vadd.f32 %v1595, %v1598
    %vm1600 = vweird.f32 %v1173
    %vm1601 = vweird.f32 %v1595
    %vm1602 = vmor %vm1600, %vm1601
    %v1603 = vsel %vm1602, %v1595, %v1599
    %v1604 = vand.u32 2147483647, %v1173
    %vm1605 = vcmp.eq.f32.partialorder %v1604, 8.507059e+37
    %v1606 = vand.u32 %v1173, 2147483648
    %v1607 = vor.u32 1.1754944e-38, %v1606
    %v1608 = vsel %vm1605, %v1607, %v1603
    %v1609 = vmul.f32 1.0, %v1608
    %v1610 = vrcp.pop %v1174
    %v1611 = vmul.f32 %v1174, %v1610
    %v1612 = vsub.f32 1.0, %v1611
    %v1613 = vmul.f32 %v1610, %v1612
    %v1614 = vadd.f32 %v1610, %v1613
    %vm1615 = vweird.f32 %v1174
    %vm1616 = vweird.f32 %v1610
    %vm1617 = vmor %vm1615, %vm1616
    %v1618 = vsel %vm1617, %v1610, %v1614
    %v1619 = vand.u32 2147483647, %v1174
    %vm1620 = vcmp.eq.f32.partialorder %v1619, 8.507059e+37
    %v1621 = vand.u32 %v1174, 2147483648
    %v1622 = vor.u32 1.1754944e-38, %v1621
    %v1623 = vsel %vm1620, %v1622, %v1618
    %v1624 = vmul.f32 1.0, %v1623
    %v1625 = vrcp.pop %v1175
    %v1626 = vmul.f32 %v1175, %v1625
    %v1627 = vsub.f32 1.0, %v1626
    %v1628 = vmul.f32 %v1625, %v1627
    %v1629 = vadd.f32 %v1625, %v1628
    %vm1630 = vweird.f32 %v1175
    %vm1631 = vweird.f32 %v1625
    %vm1632 = vmor %vm1630, %vm1631
    %v1633 = vsel %vm1632, %v1625, %v1629
    %v1634 = vand.u32 2147483647, %v1175
    %vm1635 = vcmp.eq.f32.partialorder %v1634, 8.507059e+37
    %v1636 = vand.u32 %v1175, 2147483648
    %v1637 = vor.u32 1.1754944e-38, %v1636
    %v1638 = vsel %vm1635, %v1637, %v1633
    %v1639 = vmul.f32 1.0, %v1638
    %v1640 = vrcp.pop %v1176
    %v1641 = vmul.f32 %v1176, %v1640
    %v1642 = vsub.f32 1.0, %v1641
    %v1643 = vmul.f32 %v1640, %v1642
    %v1644 = vadd.f32 %v1640, %v1643
    %vm1645 = vweird.f32 %v1176
    %vm1646 = vweird.f32 %v1640
    %vm1647 = vmor %vm1645, %vm1646
    %v1648 = vsel %vm1647, %v1640, %v1644
    %v1649 = vand.u32 2147483647, %v1176
    %vm1650 = vcmp.eq.f32.partialorder %v1649, 8.507059e+37
    %v1651 = vand.u32 %v1176, 2147483648
    %v1652 = vor.u32 1.1754944e-38, %v1651
    %v1653 = vsel %vm1650, %v1652, %v1648
    %v1654 = vmul.f32 1.0, %v1653
    %v1655 = vrcp.pop %v1177
    %v1656 = vmul.f32 %v1177, %v1655
    %v1657 = vsub.f32 1.0, %v1656
    %v1658 = vmul.f32 %v1655, %v1657
    %v1659 = vadd.f32 %v1655, %v1658
    %vm1660 = vweird.f32 %v1177
    %vm1661 = vweird.f32 %v1655
    %vm1662 = vmor %vm1660, %vm1661
    %v1663 = vsel %vm1662, %v1655, %v1659
    %v1664 = vand.u32 2147483647, %v1177
    %vm1665 = vcmp.eq.f32.partialorder %v1664, 8.507059e+37
    %v1666 = vand.u32 %v1177, 2147483648
    %v1667 = vor.u32 1.1754944e-38, %v1666
    %v1668 = vsel %vm1665, %v1667, %v1663
    %v1669 = vmul.f32 1.0, %v1668
    %v1670 = vrcp.pop %v1178
    %v1671 = vmul.f32 %v1178, %v1670
    %v1672 = vsub.f32 1.0, %v1671
    %v1673 = vmul.f32 %v1670, %v1672
    %v1674 = vadd.f32 %v1670, %v1673
    %vm1675 = vweird.f32 %v1178
    %vm1676 = vweird.f32 %v1670
    %vm1677 = vmor %vm1675, %vm1676
    %v1678 = vsel %vm1677, %v1670, %v1674
    %v1679 = vand.u32 2147483647, %v1178
    %vm1680 = vcmp.eq.f32.partialorder %v1679, 8.507059e+37
    %v1681 = vand.u32 %v1178, 2147483648
    %v1682 = vor.u32 1.1754944e-38, %v1681
    %v1683 = vsel %vm1680, %v1682, %v1678
    %v1684 = vmul.f32 1.0, %v1683
    %v1685 = vrcp.pop %v1179
    %v1686 = vmul.f32 %v1179, %v1685
    %v1687 = vsub.f32 1.0, %v1686
    %v1688 = vmul.f32 %v1685, %v1687
    %v1689 = vadd.f32 %v1685, %v1688
    %vm1690 = vweird.f32 %v1179
    %vm1691 = vweird.f32 %v1685
    %vm1692 = vmor %vm1690, %vm1691
    %v1693 = vsel %vm1692, %v1685, %v1689
    %v1694 = vand.u32 2147483647, %v1179
    %vm1695 = vcmp.eq.f32.partialorder %v1694, 8.507059e+37
    %v1696 = vand.u32 %v1179, 2147483648
    %v1697 = vor.u32 1.1754944e-38, %v1696
    %v1698 = vsel %vm1695, %v1697, %v1693
    %v1699 = vmul.f32 1.0, %v1698
    %v1700 = vrcp.pop %v1180
    %v1701 = vmul.f32 %v1180, %v1700
    %v1702 = vsub.f32 1.0, %v1701
    %v1703 = vmul.f32 %v1700, %v1702
    %v1704 = vadd.f32 %v1700, %v1703
    %vm1705 = vweird.f32 %v1180
    %vm1706 = vweird.f32 %v1700
    %vm1707 = vmor %vm1705, %vm1706
    %v1708 = vsel %vm1707, %v1700, %v1704
    %v1709 = vand.u32 2147483647, %v1180
    %vm1710 = vcmp.eq.f32.partialorder %v1709, 8.507059e+37
    %v1711 = vand.u32 %v1180, 2147483648
    %v1712 = vor.u32 1.1754944e-38, %v1711
    %v1713 = vsel %vm1710, %v1712, %v1708
    %v1714 = vmul.f32 1.0, %v1713
    %v1715 = vrcp.pop %v1181
    %v1716 = vmul.f32 %v1181, %v1715
    %v1717 = vsub.f32 1.0, %v1716
    %v1718 = vmul.f32 %v1715, %v1717
    %v1719 = vadd.f32 %v1715, %v1718
    %vm1720 = vweird.f32 %v1181
    %vm1721 = vweird.f32 %v1715
    %vm1722 = vmor %vm1720, %vm1721
    %v1723 = vsel %vm1722, %v1715, %v1719
    %v1724 = vand.u32 2147483647, %v1181
    %vm1725 = vcmp.eq.f32.partialorder %v1724, 8.507059e+37
    %v1726 = vand.u32 %v1181, 2147483648
    %v1727 = vor.u32 1.1754944e-38, %v1726
    %v1728 = vsel %vm1725, %v1727, %v1723
    %v1729 = vmul.f32 1.0, %v1728
    %v1730 = vrcp.pop %v1182
    %v1731 = vmul.f32 %v1182, %v1730
    %v1732 = vsub.f32 1.0, %v1731
    %v1733 = vmul.f32 %v1730, %v1732
    %v1734 = vadd.f32 %v1730, %v1733
    %vm1735 = vweird.f32 %v1182
    %vm1736 = vweird.f32 %v1730
    %vm1737 = vmor %vm1735, %vm1736
    %v1738 = vsel %vm1737, %v1730, %v1734
    %v1739 = vand.u32 2147483647, %v1182
    %vm1740 = vcmp.eq.f32.partialorder %v1739, 8.507059e+37
    %v1741 = vand.u32 %v1182, 2147483648
    %v1742 = vor.u32 1.1754944e-38, %v1741
    %v1743 = vsel %vm1740, %v1742, %v1738
    %v1744 = vmul.f32 1.0, %v1743
    %v1745 = vrcp.pop %v1183
    %v1746 = vmul.f32 %v1183, %v1745
    %v1747 = vsub.f32 1.0, %v1746
    %v1748 = vmul.f32 %v1745, %v1747
    %v1749 = vadd.f32 %v1745, %v1748
    %vm1750 = vweird.f32 %v1183
    %vm1751 = vweird.f32 %v1745
    %vm1752 = vmor %vm1750, %vm1751
    %v1753 = vsel %vm1752, %v1745, %v1749
    %v1754 = vand.u32 2147483647, %v1183
    %vm1755 = vcmp.eq.f32.partialorder %v1754, 8.507059e+37
    %v1756 = vand.u32 %v1183, 2147483648
    %v1757 = vor.u32 1.1754944e-38, %v1756
    %v1758 = vsel %vm1755, %v1757, %v1753
    %v1759 = vmul.f32 1.0, %v1758
    %v1760 = vrcp.pop %v1184
    %v1761 = vmul.f32 %v1184, %v1760
    %v1762 = vsub.f32 1.0, %v1761
    %v1763 = vmul.f32 %v1760, %v1762
    %v1764 = vadd.f32 %v1760, %v1763
    %vm1765 = vweird.f32 %v1184
    %vm1766 = vweird.f32 %v1760
    %vm1767 = vmor %vm1765, %vm1766
    %v1768 = vsel %vm1767, %v1760, %v1764
    %v1769 = vand.u32 2147483647, %v1184
    %vm1770 = vcmp.eq.f32.partialorder %v1769, 8.507059e+37
    %v1771 = vand.u32 %v1184, 2147483648
    %v1772 = vor.u32 1.1754944e-38, %v1771
    %v1773 = vsel %vm1770, %v1772, %v1768
    %v1774 = vmul.f32 1.0, %v1773
    %v1775 = vrcp.pop %v1185
    %v1776 = vmul.f32 %v1185, %v1775
    %v1777 = vsub.f32 1.0, %v1776
    %v1778 = vmul.f32 %v1775, %v1777
    %v1779 = vadd.f32 %v1775, %v1778
    %vm1780 = vweird.f32 %v1185
    %vm1781 = vweird.f32 %v1775
    %vm1782 = vmor %vm1780, %vm1781
    %v1783 = vsel %vm1782, %v1775, %v1779
    %v1784 = vand.u32 2147483647, %v1185
    %vm1785 = vcmp.eq.f32.partialorder %v1784, 8.507059e+37
    %v1786 = vand.u32 %v1185, 2147483648
    %v1787 = vor.u32 1.1754944e-38, %v1786
    %v1788 = vsel %vm1785, %v1787, %v1783
    %v1789 = vmul.f32 1.0, %v1788
    %v1790 = vrcp.pop %v1186
    %v1791 = vmul.f32 %v1186, %v1790
    %v1792 = vsub.f32 1.0, %v1791
    %v1793 = vmul.f32 %v1790, %v1792
    %v1794 = vadd.f32 %v1790, %v1793
    %vm1795 = vweird.f32 %v1186
    %vm1796 = vweird.f32 %v1790
    %vm1797 = vmor %vm1795, %vm1796
    %v1798 = vsel %vm1797, %v1790, %v1794
    %v1799 = vand.u32 2147483647, %v1186
    %vm1800 = vcmp.eq.f32.partialorder %v1799, 8.507059e+37
    %v1801 = vand.u32 %v1186, 2147483648
    %v1802 = vor.u32 1.1754944e-38, %v1801
    %v1803 = vsel %vm1800, %v1802, %v1798
    %v1804 = vmul.f32 1.0, %v1803
    %v1805 = vrcp.pop %v1187
    %v1806 = vmul.f32 %v1187, %v1805
    %v1807 = vsub.f32 1.0, %v1806
    %v1808 = vmul.f32 %v1805, %v1807
    %v1809 = vadd.f32 %v1805, %v1808
    %vm1810 = vweird.f32 %v1187
    %vm1811 = vweird.f32 %v1805
    %vm1812 = vmor %vm1810, %vm1811
    %v1813 = vsel %vm1812, %v1805, %v1809
    %v1814 = vand.u32 2147483647, %v1187
    %vm1815 = vcmp.eq.f32.partialorder %v1814, 8.507059e+37
    %v1816 = vand.u32 %v1187, 2147483648
    %v1817 = vor.u32 1.1754944e-38, %v1816
    %v1818 = vsel %vm1815, %v1817, %v1813
    %v1819 = vmul.f32 1.0, %v1818
    %v1820 = vrcp.pop %v1188
    %v1821 = vmul.f32 %v1188, %v1820
    %v1822 = vsub.f32 1.0, %v1821
    %v1823 = vmul.f32 %v1820, %v1822
    %v1824 = vadd.f32 %v1820, %v1823
    %vm1825 = vweird.f32 %v1188
    %vm1826 = vweird.f32 %v1820
    %vm1827 = vmor %vm1825, %vm1826
    %v1828 = vsel %vm1827, %v1820, %v1824
    %v1829 = vand.u32 2147483647, %v1188
    %vm1830 = vcmp.eq.f32.partialorder %v1829, 8.507059e+37
    %v1831 = vand.u32 %v1188, 2147483648
    %v1832 = vor.u32 1.1754944e-38, %v1831
    %v1833 = vsel %vm1830, %v1832, %v1828
    %v1834 = vmul.f32 1.0, %v1833
    %v1835 = vrcp.pop %v1189
    %v1836 = vmul.f32 %v1189, %v1835
    %v1837 = vsub.f32 1.0, %v1836
    %v1838 = vmul.f32 %v1835, %v1837
    %v1839 = vadd.f32 %v1835, %v1838
    %vm1840 = vweird.f32 %v1189
    %vm1841 = vweird.f32 %v1835
    %vm1842 = vmor %vm1840, %vm1841
    %v1843 = vsel %vm1842, %v1835, %v1839
    %v1844 = vand.u32 2147483647, %v1189
    %vm1845 = vcmp.eq.f32.partialorder %v1844, 8.507059e+37
    %v1846 = vand.u32 %v1189, 2147483648
    %v1847 = vor.u32 1.1754944e-38, %v1846
    %v1848 = vsel %vm1845, %v1847, %v1843
    %v1849 = vmul.f32 1.0, %v1848
    %v1850 = vrcp.pop %v1190
    %v1851 = vmul.f32 %v1190, %v1850
    %v1852 = vsub.f32 1.0, %v1851
    %v1853 = vmul.f32 %v1850, %v1852
    %v1854 = vadd.f32 %v1850, %v1853
    %vm1855 = vweird.f32 %v1190
    %vm1856 = vweird.f32 %v1850
    %vm1857 = vmor %vm1855, %vm1856
    %v1858 = vsel %vm1857, %v1850, %v1854
    %v1859 = vand.u32 2147483647, %v1190
    %vm1860 = vcmp.eq.f32.partialorder %v1859, 8.507059e+37
    %v1861 = vand.u32 %v1190, 2147483648
    %v1862 = vor.u32 1.1754944e-38, %v1861
    %v1863 = vsel %vm1860, %v1862, %v1858
    %v1864 = vmul.f32 1.0, %v1863
    %v1865 = vrcp.pop %v1191
    %v1866 = vmul.f32 %v1191, %v1865
    %v1867 = vsub.f32 1.0, %v1866
    %v1868 = vmul.f32 %v1865, %v1867
    %v1869 = vadd.f32 %v1865, %v1868
    %vm1870 = vweird.f32 %v1191
    %vm1871 = vweird.f32 %v1865
    %vm1872 = vmor %vm1870, %vm1871
    %v1873 = vsel %vm1872, %v1865, %v1869
    %v1874 = vand.u32 2147483647, %v1191
    %vm1875 = vcmp.eq.f32.partialorder %v1874, 8.507059e+37
    %v1876 = vand.u32 %v1191, 2147483648
    %v1877 = vor.u32 1.1754944e-38, %v1876
    %v1878 = vsel %vm1875, %v1877, %v1873
    %v1879 = vmul.f32 1.0, %v1878
    %v1880 = vrcp.pop %v1192
    %v1881 = vmul.f32 %v1192, %v1880
    %v1882 = vsub.f32 1.0, %v1881
    %v1883 = vmul.f32 %v1880, %v1882
    %v1884 = vadd.f32 %v1880, %v1883
    %vm1885 = vweird.f32 %v1192
    %vm1886 = vweird.f32 %v1880
    %vm1887 = vmor %vm1885, %vm1886
    %v1888 = vsel %vm1887, %v1880, %v1884
    %v1889 = vand.u32 2147483647, %v1192
    %vm1890 = vcmp.eq.f32.partialorder %v1889, 8.507059e+37
    %v1891 = vand.u32 %v1192, 2147483648
    %v1892 = vor.u32 1.1754944e-38, %v1891
    %v1893 = vsel %vm1890, %v1892, %v1888
    %v1894 = vmul.f32 1.0, %v1893
    %v1895 = vrcp.pop %v1193
    %v1896 = vmul.f32 %v1193, %v1895
    %v1897 = vsub.f32 1.0, %v1896
    %v1898 = vmul.f32 %v1895, %v1897
    %v1899 = vadd.f32 %v1895, %v1898
    %vm1900 = vweird.f32 %v1193
    %vm1901 = vweird.f32 %v1895
    %vm1902 = vmor %vm1900, %vm1901
    %v1903 = vsel %vm1902, %v1895, %v1899
    %v1904 = vand.u32 2147483647, %v1193
    %vm1905 = vcmp.eq.f32.partialorder %v1904, 8.507059e+37
    %v1906 = vand.u32 %v1193, 2147483648
    %v1907 = vor.u32 1.1754944e-38, %v1906
    %v1908 = vsel %vm1905, %v1907, %v1903
    %v1909 = vmul.f32 1.0, %v1908
    %v1910 = vrcp.pop %v1194
    %v1911 = vmul.f32 %v1194, %v1910
    %v1912 = vsub.f32 1.0, %v1911
    %v1913 = vmul.f32 %v1910, %v1912
    %v1914 = vadd.f32 %v1910, %v1913
    %vm1915 = vweird.f32 %v1194
    %vm1916 = vweird.f32 %v1910
    %vm1917 = vmor %vm1915, %vm1916
    %v1918 = vsel %vm1917, %v1910, %v1914
    %v1919 = vand.u32 2147483647, %v1194
    %vm1920 = vcmp.eq.f32.partialorder %v1919, 8.507059e+37
    %v1921 = vand.u32 %v1194, 2147483648
    %v1922 = vor.u32 1.1754944e-38, %v1921
    %v1923 = vsel %vm1920, %v1922, %v1918
    %v1924 = vmul.f32 1.0, %v1923
    %v1925 = vrcp.pop %v1195
    %v1926 = vmul.f32 %v1195, %v1925
    %v1927 = vsub.f32 1.0, %v1926
    %v1928 = vmul.f32 %v1925, %v1927
    %v1929 = vadd.f32 %v1925, %v1928
    %vm1930 = vweird.f32 %v1195
    %vm1931 = vweird.f32 %v1925
    %vm1932 = vmor %vm1930, %vm1931
    %v1933 = vsel %vm1932, %v1925, %v1929
    %v1934 = vand.u32 2147483647, %v1195
    %vm1935 = vcmp.eq.f32.partialorder %v1934, 8.507059e+37
    %v1936 = vand.u32 %v1195, 2147483648
    %v1937 = vor.u32 1.1754944e-38, %v1936
    %v1938 = vsel %vm1935, %v1937, %v1933
    %v1939 = vmul.f32 1.0, %v1938
    %v1940 = vrcp.pop %v1196
    %v1941 = vmul.f32 %v1196, %v1940
    %v1942 = vsub.f32 1.0, %v1941
    %v1943 = vmul.f32 %v1940, %v1942
    %v1944 = vadd.f32 %v1940, %v1943
    %vm1945 = vweird.f32 %v1196
    %vm1946 = vweird.f32 %v1940
    %vm1947 = vmor %vm1945, %vm1946
    %v1948 = vsel %vm1947, %v1940, %v1944
    %v1949 = vand.u32 2147483647, %v1196
    %vm1950 = vcmp.eq.f32.partialorder %v1949, 8.507059e+37
    %v1951 = vand.u32 %v1196, 2147483648
    %v1952 = vor.u32 1.1754944e-38, %v1951
    %v1953 = vsel %vm1950, %v1952, %v1948
    %v1954 = vmul.f32 1.0, %v1953
    %v1955 = vrcp.pop %v1197
    %v1956 = vmul.f32 %v1197, %v1955
    %v1957 = vsub.f32 1.0, %v1956
    %v1958 = vmul.f32 %v1955, %v1957
    %v1959 = vadd.f32 %v1955, %v1958
    %vm1960 = vweird.f32 %v1197
    %vm1961 = vweird.f32 %v1955
    %vm1962 = vmor %vm1960, %vm1961
    %v1963 = vsel %vm1962, %v1955, %v1959
    %v1964 = vand.u32 2147483647, %v1197
    %vm1965 = vcmp.eq.f32.partialorder %v1964, 8.507059e+37
    %v1966 = vand.u32 %v1197, 2147483648
    %v1967 = vor.u32 1.1754944e-38, %v1966
    %v1968 = vsel %vm1965, %v1967, %v1963
    %v1969 = vmul.f32 1.0, %v1968
    %v1970 = vrcp.pop %v1198
    %v1971 = vmul.f32 %v1198, %v1970
    %v1972 = vsub.f32 1.0, %v1971
    %v1973 = vmul.f32 %v1970, %v1972
    %v1974 = vadd.f32 %v1970, %v1973
    %vm1975 = vweird.f32 %v1198
    %vm1976 = vweird.f32 %v1970
    %vm1977 = vmor %vm1975, %vm1976
    %v1978 = vsel %vm1977, %v1970, %v1974
    %v1979 = vand.u32 2147483647, %v1198
    %vm1980 = vcmp.eq.f32.partialorder %v1979, 8.507059e+37
    %v1981 = vand.u32 %v1198, 2147483648
    %v1982 = vor.u32 1.1754944e-38, %v1981
    %v1983 = vsel %vm1980, %v1982, %v1978
    %v1984 = vmul.f32 1.0, %v1983
    %v1985 = vrcp.pop %v1199
    %v1986 = vmul.f32 %v1199, %v1985
    %v1987 = vsub.f32 1.0, %v1986
    %v1988 = vmul.f32 %v1985, %v1987
    %v1989 = vadd.f32 %v1985, %v1988
    %vm1990 = vweird.f32 %v1199
    %vm1991 = vweird.f32 %v1985
    %vm1992 = vmor %vm1990, %vm1991
    %v1993 = vsel %vm1992, %v1985, %v1989
    %v1994 = vand.u32 2147483647, %v1199
    %vm1995 = vcmp.eq.f32.partialorder %v1994, 8.507059e+37
    %v1996 = vand.u32 %v1199, 2147483648
    %v1997 = vor.u32 1.1754944e-38, %v1996
    %v1998 = vsel %vm1995, %v1997, %v1993
    %v1999 = vmul.f32 1.0, %v1998
    %v2000 = vrcp.pop %v1200
    %v2001 = vmul.f32 %v1200, %v2000
    %v2002 = vsub.f32 1.0, %v2001
    %v2003 = vmul.f32 %v2000, %v2002
    %v2004 = vadd.f32 %v2000, %v2003
    %vm2005 = vweird.f32 %v1200
    %vm2006 = vweird.f32 %v2000
    %vm2007 = vmor %vm2005, %vm2006
    %v2008 = vsel %vm2007, %v2000, %v2004
    %v2009 = vand.u32 2147483647, %v1200
    %vm2010 = vcmp.eq.f32.partialorder %v2009, 8.507059e+37
    %v2011 = vand.u32 %v1200, 2147483648
    %v2012 = vor.u32 1.1754944e-38, %v2011
    %v2013 = vsel %vm2010, %v2012, %v2008
    %v2014 = vmul.f32 1.0, %v2013
    %v2015 = vrcp.pop %v1201
    %v2016 = vmul.f32 %v1201, %v2015
    %v2017 = vsub.f32 1.0, %v2016
    %v2018 = vmul.f32 %v2015, %v2017
    %v2019 = vadd.f32 %v2015, %v2018
    %vm2020 = vweird.f32 %v1201
    %vm2021 = vweird.f32 %v2015
    %vm2022 = vmor %vm2020, %vm2021
    %v2023 = vsel %vm2022, %v2015, %v2019
    %v2024 = vand.u32 2147483647, %v1201
    %vm2025 = vcmp.eq.f32.partialorder %v2024, 8.507059e+37
    %v2026 = vand.u32 %v1201, 2147483648
    %v2027 = vor.u32 1.1754944e-38, %v2026
    %v2028 = vsel %vm2025, %v2027, %v2023
    %v2029 = vmul.f32 1.0, %v2028
    %v2030 = vrcp.pop %v1202
    %v2031 = vmul.f32 %v1202, %v2030
    %v2032 = vsub.f32 1.0, %v2031
    %v2033 = vmul.f32 %v2030, %v2032
    %v2034 = vadd.f32 %v2030, %v2033
    %vm2035 = vweird.f32 %v1202
    %vm2036 = vweird.f32 %v2030
    %vm2037 = vmor %vm2035, %vm2036
    %v2038 = vsel %vm2037, %v2030, %v2034
    %v2039 = vand.u32 2147483647, %v1202
    %vm2040 = vcmp.eq.f32.partialorder %v2039, 8.507059e+37
    %v2041 = vand.u32 %v1202, 2147483648
    %v2042 = vor.u32 1.1754944e-38, %v2041
    %v2043 = vsel %vm2040, %v2042, %v2038
    %v2044 = vmul.f32 1.0, %v2043
    %v2045 = vrcp.pop %v1203
    %v2046 = vmul.f32 %v1203, %v2045
    %v2047 = vsub.f32 1.0, %v2046
    %v2048 = vmul.f32 %v2045, %v2047
    %v2049 = vadd.f32 %v2045, %v2048
    %vm2050 = vweird.f32 %v1203
    %vm2051 = vweird.f32 %v2045
    %vm2052 = vmor %vm2050, %vm2051
    %v2053 = vsel %vm2052, %v2045, %v2049
    %v2054 = vand.u32 2147483647, %v1203
    %vm2055 = vcmp.eq.f32.partialorder %v2054, 8.507059e+37
    %v2056 = vand.u32 %v1203, 2147483648
    %v2057 = vor.u32 1.1754944e-38, %v2056
    %v2058 = vsel %vm2055, %v2057, %v2053
    %v2059 = vmul.f32 1.0, %v2058
    %v2060 = vrcp.pop %v1204
    %v2061 = vmul.f32 %v1204, %v2060
    %v2062 = vsub.f32 1.0, %v2061
    %v2063 = vmul.f32 %v2060, %v2062
    %v2064 = vadd.f32 %v2060, %v2063
    %vm2065 = vweird.f32 %v1204
    %vm2066 = vweird.f32 %v2060
    %vm2067 = vmor %vm2065, %vm2066
    %v2068 = vsel %vm2067, %v2060, %v2064
    %v2069 = vand.u32 2147483647, %v1204
    %vm2070 = vcmp.eq.f32.partialorder %v2069, 8.507059e+37
    %v2071 = vand.u32 %v1204, 2147483648
    %v2072 = vor.u32 1.1754944e-38, %v2071
    %v2073 = vsel %vm2070, %v2072, %v2068
    %v2074 = vmul.f32 1.0, %v2073
    %v2075 = vrcp.pop %v1205
    %v2076 = vmul.f32 %v1205, %v2075
    %v2077 = vsub.f32 1.0, %v2076
    %v2078 = vmul.f32 %v2075, %v2077
    %v2079 = vadd.f32 %v2075, %v2078
    %vm2080 = vweird.f32 %v1205
    %vm2081 = vweird.f32 %v2075
    %vm2082 = vmor %vm2080, %vm2081
    %v2083 = vsel %vm2082, %v2075, %v2079
    %v2084 = vand.u32 2147483647, %v1205
    %vm2085 = vcmp.eq.f32.partialorder %v2084, 8.507059e+37
    %v2086 = vand.u32 %v1205, 2147483648
    %v2087 = vor.u32 1.1754944e-38, %v2086
    %v2088 = vsel %vm2085, %v2087, %v2083
    %v2089 = vmul.f32 1.0, %v2088
    %v2090 = vrcp.pop %v1206
    %v2091 = vmul.f32 %v1206, %v2090
    %v2092 = vsub.f32 1.0, %v2091
    %v2093 = vmul.f32 %v2090, %v2092
    %v2094 = vadd.f32 %v2090, %v2093
    %vm2095 = vweird.f32 %v1206
    %vm2096 = vweird.f32 %v2090
    %vm2097 = vmor %vm2095, %vm2096
    %v2098 = vsel %vm2097, %v2090, %v2094
    %v2099 = vand.u32 2147483647, %v1206
    %vm2100 = vcmp.eq.f32.partialorder %v2099, 8.507059e+37
    %v2101 = vand.u32 %v1206, 2147483648
    %v2102 = vor.u32 1.1754944e-38, %v2101
    %v2103 = vsel %vm2100, %v2102, %v2098
    %v2104 = vmul.f32 1.0, %v2103
    %v2105 = vrcp.pop %v1207
    %v2106 = vmul.f32 %v1207, %v2105
    %v2107 = vsub.f32 1.0, %v2106
    %v2108 = vmul.f32 %v2105, %v2107
    %v2109 = vadd.f32 %v2105, %v2108
    %vm2110 = vweird.f32 %v1207
    %vm2111 = vweird.f32 %v2105
    %vm2112 = vmor %vm2110, %vm2111
    %v2113 = vsel %vm2112, %v2105, %v2109
    %v2114 = vand.u32 2147483647, %v1207
    %vm2115 = vcmp.eq.f32.partialorder %v2114, 8.507059e+37
    %v2116 = vand.u32 %v1207, 2147483648
    %v2117 = vor.u32 1.1754944e-38, %v2116
    %v2118 = vsel %vm2115, %v2117, %v2113
    %v2119 = vmul.f32 1.0, %v2118
    %v2120 = vrcp.pop %v1208
    %v2121 = vmul.f32 %v1208, %v2120
    %v2122 = vsub.f32 1.0, %v2121
    %v2123 = vmul.f32 %v2120, %v2122
    %v2124 = vadd.f32 %v2120, %v2123
    %vm2125 = vweird.f32 %v1208
    %vm2126 = vweird.f32 %v2120
    %vm2127 = vmor %vm2125, %vm2126
    %v2128 = vsel %vm2127, %v2120, %v2124
    %v2129 = vand.u32 2147483647, %v1208
    %vm2130 = vcmp.eq.f32.partialorder %v2129, 8.507059e+37
    %v2131 = vand.u32 %v1208, 2147483648
    %v2132 = vor.u32 1.1754944e-38, %v2131
    %v2133 = vsel %vm2130, %v2132, %v2128
    %v2134 = vmul.f32 1.0, %v2133
    %v2135 = vrcp.pop %v1209
    %v2136 = vmul.f32 %v1209, %v2135
    %v2137 = vsub.f32 1.0, %v2136
    %v2138 = vmul.f32 %v2135, %v2137
    %v2139 = vadd.f32 %v2135, %v2138
    %vm2140 = vweird.f32 %v1209
    %vm2141 = vweird.f32 %v2135
    %vm2142 = vmor %vm2140, %vm2141
    %v2143 = vsel %vm2142, %v2135, %v2139
    %v2144 = vand.u32 2147483647, %v1209
    %vm2145 = vcmp.eq.f32.partialorder %v2144, 8.507059e+37
    %v2146 = vand.u32 %v1209, 2147483648
    %v2147 = vor.u32 1.1754944e-38, %v2146
    %v2148 = vsel %vm2145, %v2147, %v2143
    %v2149 = vmul.f32 1.0, %v2148
    %v2150 = vrcp.pop %v1210
    %v2151 = vmul.f32 %v1210, %v2150
    %v2152 = vsub.f32 1.0, %v2151
    %v2153 = vmul.f32 %v2150, %v2152
    %v2154 = vadd.f32 %v2150, %v2153
    %vm2155 = vweird.f32 %v1210
    %vm2156 = vweird.f32 %v2150
    %vm2157 = vmor %vm2155, %vm2156
    %v2158 = vsel %vm2157, %v2150, %v2154
    %v2159 = vand.u32 2147483647, %v1210
    %vm2160 = vcmp.eq.f32.partialorder %v2159, 8.507059e+37
    %v2161 = vand.u32 %v1210, 2147483648
    %v2162 = vor.u32 1.1754944e-38, %v2161
    %v2163 = vsel %vm2160, %v2162, %v2158
    %v2164 = vmul.f32 1.0, %v2163
    %v2165 = vrcp.pop %v1211
    %v2166 = vmul.f32 %v1211, %v2165
    %v2167 = vsub.f32 1.0, %v2166
    %v2168 = vmul.f32 %v2165, %v2167
    %v2169 = vadd.f32 %v2165, %v2168
    %vm2170 = vweird.f32 %v1211
    %vm2171 = vweird.f32 %v2165
    %vm2172 = vmor %vm2170, %vm2171
    %v2173 = vsel %vm2172, %v2165, %v2169
    %v2174 = vand.u32 2147483647, %v1211
    %vm2175 = vcmp.eq.f32.partialorder %v2174, 8.507059e+37
    %v2176 = vand.u32 %v1211, 2147483648
    %v2177 = vor.u32 1.1754944e-38, %v2176
    %v2178 = vsel %vm2175, %v2177, %v2173
    %v2179 = vmul.f32 1.0, %v2178
    %v2180 = vrcp.pop %v1212
    %v2181 = vmul.f32 %v1212, %v2180
    %v2182 = vsub.f32 1.0, %v2181
    %v2183 = vmul.f32 %v2180, %v2182
    %v2184 = vadd.f32 %v2180, %v2183
    %vm2185 = vweird.f32 %v1212
    %vm2186 = vweird.f32 %v2180
    %vm2187 = vmor %vm2185, %vm2186
    %v2188 = vsel %vm2187, %v2180, %v2184
    %v2189 = vand.u32 2147483647, %v1212
    %vm2190 = vcmp.eq.f32.partialorder %v2189, 8.507059e+37
    %v2191 = vand.u32 %v1212, 2147483648
    %v2192 = vor.u32 1.1754944e-38, %v2191
    %v2193 = vsel %vm2190, %v2192, %v2188
    %v2194 = vmul.f32 1.0, %v2193
    %v2195 = vrcp.pop %v1213
    %v2196 = vmul.f32 %v1213, %v2195
    %v2197 = vsub.f32 1.0, %v2196
    %v2198 = vmul.f32 %v2195, %v2197
    %v2199 = vadd.f32 %v2195, %v2198
    %vm2200 = vweird.f32 %v1213
    %vm2201 = vweird.f32 %v2195
    %vm2202 = vmor %vm2200, %vm2201
    %v2203 = vsel %vm2202, %v2195, %v2199
    %v2204 = vand.u32 2147483647, %v1213
    %vm2205 = vcmp.eq.f32.partialorder %v2204, 8.507059e+37
    %v2206 = vand.u32 %v1213, 2147483648
    %v2207 = vor.u32 1.1754944e-38, %v2206
    %v2208 = vsel %vm2205, %v2207, %v2203
    %v2209 = vmul.f32 1.0, %v2208
    %v2210 = vrcp.pop %v1214
    %v2211 = vmul.f32 %v1214, %v2210
    %v2212 = vsub.f32 1.0, %v2211
    %v2213 = vmul.f32 %v2210, %v2212
    %v2214 = vadd.f32 %v2210, %v2213
    %vm2215 = vweird.f32 %v1214
    %vm2216 = vweird.f32 %v2210
    %vm2217 = vmor %vm2215, %vm2216
    %v2218 = vsel %vm2217, %v2210, %v2214
    %v2219 = vand.u32 2147483647, %v1214
    %vm2220 = vcmp.eq.f32.partialorder %v2219, 8.507059e+37
    %v2221 = vand.u32 %v1214, 2147483648
    %v2222 = vor.u32 1.1754944e-38, %v2221
    %v2223 = vsel %vm2220, %v2222, %v2218
    %v2224 = vmul.f32 1.0, %v2223
    %v2225 = vrcp.pop %v1215
    %v2226 = vmul.f32 %v1215, %v2225
    %v2227 = vsub.f32 1.0, %v2226
    %v2228 = vmul.f32 %v2225, %v2227
    %v2229 = vadd.f32 %v2225, %v2228
    %vm2230 = vweird.f32 %v1215
    %vm2231 = vweird.f32 %v2225
    %vm2232 = vmor %vm2230, %vm2231
    %v2233 = vsel %vm2232, %v2225, %v2229
    %v2234 = vand.u32 2147483647, %v1215
    %vm2235 = vcmp.eq.f32.partialorder %v2234, 8.507059e+37
    %v2236 = vand.u32 %v1215, 2147483648
    %v2237 = vor.u32 1.1754944e-38, %v2236
    %v2238 = vsel %vm2235, %v2237, %v2233
    %v2239 = vmul.f32 1.0, %v2238
    %v2240 = vrcp.pop %v1216
    %v2241 = vmul.f32 %v1216, %v2240
    %v2242 = vsub.f32 1.0, %v2241
    %v2243 = vmul.f32 %v2240, %v2242
    %v2244 = vadd.f32 %v2240, %v2243
    %vm2245 = vweird.f32 %v1216
    %vm2246 = vweird.f32 %v2240
    %vm2247 = vmor %vm2245, %vm2246
    %v2248 = vsel %vm2247, %v2240, %v2244
    %v2249 = vand.u32 2147483647, %v1216
    %vm2250 = vcmp.eq.f32.partialorder %v2249, 8.507059e+37
    %v2251 = vand.u32 %v1216, 2147483648
    %v2252 = vor.u32 1.1754944e-38, %v2251
    %v2253 = vsel %vm2250, %v2252, %v2248
    %v2254 = vmul.f32 1.0, %v2253
    %v2255 = vrcp.pop %v1217
    %v2256 = vmul.f32 %v1217, %v2255
    %v2257 = vsub.f32 1.0, %v2256
    %v2258 = vmul.f32 %v2255, %v2257
    %v2259 = vadd.f32 %v2255, %v2258
    %vm2260 = vweird.f32 %v1217
    %vm2261 = vweird.f32 %v2255
    %vm2262 = vmor %vm2260, %vm2261
    %v2263 = vsel %vm2262, %v2255, %v2259
    %v2264 = vand.u32 2147483647, %v1217
    %vm2265 = vcmp.eq.f32.partialorder %v2264, 8.507059e+37
    %v2266 = vand.u32 %v1217, 2147483648
    %v2267 = vor.u32 1.1754944e-38, %v2266
    %v2268 = vsel %vm2265, %v2267, %v2263
    %v2269 = vmul.f32 1.0, %v2268
    %v2270 = vrcp.pop %v1218
    %v2271 = vmul.f32 %v1218, %v2270
    %v2272 = vsub.f32 1.0, %v2271
    %v2273 = vmul.f32 %v2270, %v2272
    %v2274 = vadd.f32 %v2270, %v2273
    %vm2275 = vweird.f32 %v1218
    %vm2276 = vweird.f32 %v2270
    %vm2277 = vmor %vm2275, %vm2276
    %v2278 = vsel %vm2277, %v2270, %v2274
    %v2279 = vand.u32 2147483647, %v1218
    %vm2280 = vcmp.eq.f32.partialorder %v2279, 8.507059e+37
    %v2281 = vand.u32 %v1218, 2147483648
    %v2282 = vor.u32 1.1754944e-38, %v2281
    %v2283 = vsel %vm2280, %v2282, %v2278
    %v2284 = vmul.f32 1.0, %v2283
    %v2285 = vrcp.pop %v1219
    %v2286 = vmul.f32 %v1219, %v2285
    %v2287 = vsub.f32 1.0, %v2286
    %v2288 = vmul.f32 %v2285, %v2287
    %v2289 = vadd.f32 %v2285, %v2288
    %vm2290 = vweird.f32 %v1219
    %vm2291 = vweird.f32 %v2285
    %vm2292 = vmor %vm2290, %vm2291
    %v2293 = vsel %vm2292, %v2285, %v2289
    %v2294 = vand.u32 2147483647, %v1219
    %vm2295 = vcmp.eq.f32.partialorder %v2294, 8.507059e+37
    %v2296 = vand.u32 %v1219, 2147483648
    %v2297 = vor.u32 1.1754944e-38, %v2296
    %v2298 = vsel %vm2295, %v2297, %v2293
    %v2299 = vmul.f32 1.0, %v2298
    %v2300 = vrcp.pop %v1220
    %v2301 = vmul.f32 %v1220, %v2300
    %v2302 = vsub.f32 1.0, %v2301
    %v2303 = vmul.f32 %v2300, %v2302
    %v2304 = vadd.f32 %v2300, %v2303
    %vm2305 = vweird.f32 %v1220
    %vm2306 = vweird.f32 %v2300
    %vm2307 = vmor %vm2305, %vm2306
    %v2308 = vsel %vm2307, %v2300, %v2304
    %v2309 = vand.u32 2147483647, %v1220
    %vm2310 = vcmp.eq.f32.partialorder %v2309, 8.507059e+37
    %v2311 = vand.u32 %v1220, 2147483648
    %v2312 = vor.u32 1.1754944e-38, %v2311
    %v2313 = vsel %vm2310, %v2312, %v2308
    %v2314 = vmul.f32 1.0, %v2313
    %v2315 = vrcp.pop %v1221
    %v2316 = vmul.f32 %v1221, %v2315
    %v2317 = vsub.f32 1.0, %v2316
    %v2318 = vmul.f32 %v2315, %v2317
    %v2319 = vadd.f32 %v2315, %v2318
    %vm2320 = vweird.f32 %v1221
    %vm2321 = vweird.f32 %v2315
    %vm2322 = vmor %vm2320, %vm2321
    %v2323 = vsel %vm2322, %v2315, %v2319
    %v2324 = vand.u32 2147483647, %v1221
    %vm2325 = vcmp.eq.f32.partialorder %v2324, 8.507059e+37
    %v2326 = vand.u32 %v1221, 2147483648
    %v2327 = vor.u32 1.1754944e-38, %v2326
    %v2328 = vsel %vm2325, %v2327, %v2323
    %v2329 = vmul.f32 1.0, %v2328
    %v2330 = vrcp.pop %v1222
    %v2331 = vmul.f32 %v1222, %v2330
    %v2332 = vsub.f32 1.0, %v2331
    %v2333 = vmul.f32 %v2330, %v2332
    %v2334 = vadd.f32 %v2330, %v2333
    %vm2335 = vweird.f32 %v1222
    %vm2336 = vweird.f32 %v2330
    %vm2337 = vmor %vm2335, %vm2336
    %v2338 = vsel %vm2337, %v2330, %v2334
    %v2339 = vand.u32 2147483647, %v1222
    %vm2340 = vcmp.eq.f32.partialorder %v2339, 8.507059e+37
    %v2341 = vand.u32 %v1222, 2147483648
    %v2342 = vor.u32 1.1754944e-38, %v2341
    %v2343 = vsel %vm2340, %v2342, %v2338
    %v2344 = vmul.f32 1.0, %v2343
    %v2345 = vrcp.pop %v1223
    %v2346 = vmul.f32 %v1223, %v2345
    %v2347 = vsub.f32 1.0, %v2346
    %v2348 = vmul.f32 %v2345, %v2347
    %v2349 = vadd.f32 %v2345, %v2348
    %vm2350 = vweird.f32 %v1223
    %vm2351 = vweird.f32 %v2345
    %vm2352 = vmor %vm2350, %vm2351
    %v2353 = vsel %vm2352, %v2345, %v2349
    %v2354 = vand.u32 2147483647, %v1223
    %vm2355 = vcmp.eq.f32.partialorder %v2354, 8.507059e+37
    %v2356 = vand.u32 %v1223, 2147483648
    %v2357 = vor.u32 1.1754944e-38, %v2356
    %v2358 = vsel %vm2355, %v2357, %v2353
    %v2359 = vmul.f32 1.0, %v2358
    %v2360 = vrcp.pop %v1224
    %v2361 = vmul.f32 %v1224, %v2360
    %v2362 = vsub.f32 1.0, %v2361
    %v2363 = vmul.f32 %v2360, %v2362
    %v2364 = vadd.f32 %v2360, %v2363
    %vm2365 = vweird.f32 %v1224
    %vm2366 = vweird.f32 %v2360
    %vm2367 = vmor %vm2365, %vm2366
    %v2368 = vsel %vm2367, %v2360, %v2364
    %v2369 = vand.u32 2147483647, %v1224
    %vm2370 = vcmp.eq.f32.partialorder %v2369, 8.507059e+37
    %v2371 = vand.u32 %v1224, 2147483648
    %v2372 = vor.u32 1.1754944e-38, %v2371
    %v2373 = vsel %vm2370, %v2372, %v2368
    %v2374 = vmul.f32 1.0, %v2373
    %v2375 = vrcp.pop %v1225
    %v2376 = vmul.f32 %v1225, %v2375
    %v2377 = vsub.f32 1.0, %v2376
    %v2378 = vmul.f32 %v2375, %v2377
    %v2379 = vadd.f32 %v2375, %v2378
    %vm2380 = vweird.f32 %v1225
    %vm2381 = vweird.f32 %v2375
    %vm2382 = vmor %vm2380, %vm2381
    %v2383 = vsel %vm2382, %v2375, %v2379
    %v2384 = vand.u32 2147483647, %v1225
    %vm2385 = vcmp.eq.f32.partialorder %v2384, 8.507059e+37
    %v2386 = vand.u32 %v1225, 2147483648
    %v2387 = vor.u32 1.1754944e-38, %v2386
    %v2388 = vsel %vm2385, %v2387, %v2383
    %v2389 = vmul.f32 1.0, %v2388
    %v2390 = vrcp.pop %v1226
    %v2391 = vmul.f32 %v1226, %v2390
    %v2392 = vsub.f32 1.0, %v2391
    %v2393 = vmul.f32 %v2390, %v2392
    %v2394 = vadd.f32 %v2390, %v2393
    %vm2395 = vweird.f32 %v1226
    %vm2396 = vweird.f32 %v2390
    %vm2397 = vmor %vm2395, %vm2396
    %v2398 = vsel %vm2397, %v2390, %v2394
    %v2399 = vand.u32 2147483647, %v1226
    %vm2400 = vcmp.eq.f32.partialorder %v2399, 8.507059e+37
    %v2401 = vand.u32 %v1226, 2147483648
    %v2402 = vor.u32 1.1754944e-38, %v2401
    %v2403 = vsel %vm2400, %v2402, %v2398
    %v2404 = vmul.f32 1.0, %v2403
    %v2405 = vrcp.pop %v1227
    %v2406 = vmul.f32 %v1227, %v2405
    %v2407 = vsub.f32 1.0, %v2406
    %v2408 = vmul.f32 %v2405, %v2407
    %v2409 = vadd.f32 %v2405, %v2408
    %vm2410 = vweird.f32 %v1227
    %vm2411 = vweird.f32 %v2405
    %vm2412 = vmor %vm2410, %vm2411
    %v2413 = vsel %vm2412, %v2405, %v2409
    %v2414 = vand.u32 2147483647, %v1227
    %vm2415 = vcmp.eq.f32.partialorder %v2414, 8.507059e+37
    %v2416 = vand.u32 %v1227, 2147483648
    %v2417 = vor.u32 1.1754944e-38, %v2416
    %v2418 = vsel %vm2415, %v2417, %v2413
    %v2419 = vmul.f32 1.0, %v2418
    %v2420 = vrcp.pop %v1228
    %v2421 = vmul.f32 %v1228, %v2420
    %v2422 = vsub.f32 1.0, %v2421
    %v2423 = vmul.f32 %v2420, %v2422
    %v2424 = vadd.f32 %v2420, %v2423
    %vm2425 = vweird.f32 %v1228
    %vm2426 = vweird.f32 %v2420
    %vm2427 = vmor %vm2425, %vm2426
    %v2428 = vsel %vm2427, %v2420, %v2424
    %v2429 = vand.u32 2147483647, %v1228
    %vm2430 = vcmp.eq.f32.partialorder %v2429, 8.507059e+37
    %v2431 = vand.u32 %v1228, 2147483648
    %v2432 = vor.u32 1.1754944e-38, %v2431
    %v2433 = vsel %vm2430, %v2432, %v2428
    %v2434 = vmul.f32 1.0, %v2433
    %v2435 = vrcp.pop %v1229
    %v2436 = vmul.f32 %v1229, %v2435
    %v2437 = vsub.f32 1.0, %v2436
    %v2438 = vmul.f32 %v2435, %v2437
    %v2439 = vadd.f32 %v2435, %v2438
    %vm2440 = vweird.f32 %v1229
    %vm2441 = vweird.f32 %v2435
    %vm2442 = vmor %vm2440, %vm2441
    %v2443 = vsel %vm2442, %v2435, %v2439
    %v2444 = vand.u32 2147483647, %v1229
    %vm2445 = vcmp.eq.f32.partialorder %v2444, 8.507059e+37
    %v2446 = vand.u32 %v1229, 2147483648
    %v2447 = vor.u32 1.1754944e-38, %v2446
    %v2448 = vsel %vm2445, %v2447, %v2443
    %v2449 = vmul.f32 1.0, %v2448
    %v2450 = vrcp.pop %v1230
    %v2451 = vmul.f32 %v1230, %v2450
    %v2452 = vsub.f32 1.0, %v2451
    %v2453 = vmul.f32 %v2450, %v2452
    %v2454 = vadd.f32 %v2450, %v2453
    %vm2455 = vweird.f32 %v1230
    %vm2456 = vweird.f32 %v2450
    %vm2457 = vmor %vm2455, %vm2456
    %v2458 = vsel %vm2457, %v2450, %v2454
    %v2459 = vand.u32 2147483647, %v1230
    %vm2460 = vcmp.eq.f32.partialorder %v2459, 8.507059e+37
    %v2461 = vand.u32 %v1230, 2147483648
    %v2462 = vor.u32 1.1754944e-38, %v2461
    %v2463 = vsel %vm2460, %v2462, %v2458
    %v2464 = vmul.f32 1.0, %v2463
    %v2465 = vrcp.pop %v1231
    %v2466 = vmul.f32 %v1231, %v2465
    %v2467 = vsub.f32 1.0, %v2466
    %v2468 = vmul.f32 %v2465, %v2467
    %v2469 = vadd.f32 %v2465, %v2468
    %vm2470 = vweird.f32 %v1231
    %vm2471 = vweird.f32 %v2465
    %vm2472 = vmor %vm2470, %vm2471
    %v2473 = vsel %vm2472, %v2465, %v2469
    %v2474 = vand.u32 2147483647, %v1231
    %vm2475 = vcmp.eq.f32.partialorder %v2474, 8.507059e+37
    %v2476 = vand.u32 %v1231, 2147483648
    %v2477 = vor.u32 1.1754944e-38, %v2476
    %v2478 = vsel %vm2475, %v2477, %v2473
    %v2479 = vmul.f32 1.0, %v2478
    %v2480 = vrcp.pop %v1232
    %v2481 = vmul.f32 %v1232, %v2480
    %v2482 = vsub.f32 1.0, %v2481
    %v2483 = vmul.f32 %v2480, %v2482
    %v2484 = vadd.f32 %v2480, %v2483
    %vm2485 = vweird.f32 %v1232
    %vm2486 = vweird.f32 %v2480
    %vm2487 = vmor %vm2485, %vm2486
    %v2488 = vsel %vm2487, %v2480, %v2484
    %v2489 = vand.u32 2147483647, %v1232
    %vm2490 = vcmp.eq.f32.partialorder %v2489, 8.507059e+37
    %v2491 = vand.u32 %v1232, 2147483648
    %v2492 = vor.u32 1.1754944e-38, %v2491
    %v2493 = vsel %vm2490, %v2492, %v2488
    %v2494 = vmul.f32 1.0, %v2493
    %v2495 = vrcp.pop %v1233
    %v2496 = vmul.f32 %v1233, %v2495
    %v2497 = vsub.f32 1.0, %v2496
    %v2498 = vmul.f32 %v2495, %v2497
    %v2499 = vadd.f32 %v2495, %v2498
    %vm2500 = vweird.f32 %v1233
    %vm2501 = vweird.f32 %v2495
    %vm2502 = vmor %vm2500, %vm2501
    %v2503 = vsel %vm2502, %v2495, %v2499
    %v2504 = vand.u32 2147483647, %v1233
    %vm2505 = vcmp.eq.f32.partialorder %v2504, 8.507059e+37
    %v2506 = vand.u32 %v1233, 2147483648
    %v2507 = vor.u32 1.1754944e-38, %v2506
    %v2508 = vsel %vm2505, %v2507, %v2503
    %v2509 = vmul.f32 1.0, %v2508
    %v2510 = vrcp.pop %v1234
    %v2511 = vmul.f32 %v1234, %v2510
    %v2512 = vsub.f32 1.0, %v2511
    %v2513 = vmul.f32 %v2510, %v2512
    %v2514 = vadd.f32 %v2510, %v2513
    %vm2515 = vweird.f32 %v1234
    %vm2516 = vweird.f32 %v2510
    %vm2517 = vmor %vm2515, %vm2516
    %v2518 = vsel %vm2517, %v2510, %v2514
    %v2519 = vand.u32 2147483647, %v1234
    %vm2520 = vcmp.eq.f32.partialorder %v2519, 8.507059e+37
    %v2521 = vand.u32 %v1234, 2147483648
    %v2522 = vor.u32 1.1754944e-38, %v2521
    %v2523 = vsel %vm2520, %v2522, %v2518
    %v2524 = vmul.f32 1.0, %v2523
    %v2525 = vrcp.pop %v1235
    %v2526 = vmul.f32 %v1235, %v2525
    %v2527 = vsub.f32 1.0, %v2526
    %v2528 = vmul.f32 %v2525, %v2527
    %v2529 = vadd.f32 %v2525, %v2528
    %vm2530 = vweird.f32 %v1235
    %vm2531 = vweird.f32 %v2525
    %vm2532 = vmor %vm2530, %vm2531
    %v2533 = vsel %vm2532, %v2525, %v2529
    %v2534 = vand.u32 2147483647, %v1235
    %vm2535 = vcmp.eq.f32.partialorder %v2534, 8.507059e+37
    %v2536 = vand.u32 %v1235, 2147483648
    %v2537 = vor.u32 1.1754944e-38, %v2536
    %v2538 = vsel %vm2535, %v2537, %v2533
    %v2539 = vmul.f32 1.0, %v2538
    %v2540 = vrcp.pop %v1236
    %v2541 = vmul.f32 %v1236, %v2540
    %v2542 = vsub.f32 1.0, %v2541
    %v2543 = vmul.f32 %v2540, %v2542
    %v2544 = vadd.f32 %v2540, %v2543
    %vm2545 = vweird.f32 %v1236
    %vm2546 = vweird.f32 %v2540
    %vm2547 = vmor %vm2545, %vm2546
    %v2548 = vsel %vm2547, %v2540, %v2544
    %v2549 = vand.u32 2147483647, %v1236
    %vm2550 = vcmp.eq.f32.partialorder %v2549, 8.507059e+37
    %v2551 = vand.u32 %v1236, 2147483648
    %v2552 = vor.u32 1.1754944e-38, %v2551
    %v2553 = vsel %vm2550, %v2552, %v2548
    %v2554 = vmul.f32 1.0, %v2553
    %v2555 = vrcp.pop %v1237
    %v2556 = vmul.f32 %v1237, %v2555
    %v2557 = vsub.f32 1.0, %v2556
    %v2558 = vmul.f32 %v2555, %v2557
    %v2559 = vadd.f32 %v2555, %v2558
    %vm2560 = vweird.f32 %v1237
    %vm2561 = vweird.f32 %v2555
    %vm2562 = vmor %vm2560, %vm2561
    %v2563 = vsel %vm2562, %v2555, %v2559
    %v2564 = vand.u32 2147483647, %v1237
    %vm2565 = vcmp.eq.f32.partialorder %v2564, 8.507059e+37
    %v2566 = vand.u32 %v1237, 2147483648
    %v2567 = vor.u32 1.1754944e-38, %v2566
    %v2568 = vsel %vm2565, %v2567, %v2563
    %v2569 = vmul.f32 1.0, %v2568
    %v2570 = vrcp.pop %v1238
    %v2571 = vmul.f32 %v1238, %v2570
    %v2572 = vsub.f32 1.0, %v2571
    %v2573 = vmul.f32 %v2570, %v2572
    %v2574 = vadd.f32 %v2570, %v2573
    %vm2575 = vweird.f32 %v1238
    %vm2576 = vweird.f32 %v2570
    %vm2577 = vmor %vm2575, %vm2576
    %v2578 = vsel %vm2577, %v2570, %v2574
    %v2579 = vand.u32 2147483647, %v1238
    %vm2580 = vcmp.eq.f32.partialorder %v2579, 8.507059e+37
    %v2581 = vand.u32 %v1238, 2147483648
    %v2582 = vor.u32 1.1754944e-38, %v2581
    %v2583 = vsel %vm2580, %v2582, %v2578
    %v2584 = vmul.f32 1.0, %v2583
    %v2585 = vrcp.pop %v1239
    %v2586 = vmul.f32 %v1239, %v2585
    %v2587 = vsub.f32 1.0, %v2586
    %v2588 = vmul.f32 %v2585, %v2587
    %v2589 = vadd.f32 %v2585, %v2588
    %vm2590 = vweird.f32 %v1239
    %vm2591 = vweird.f32 %v2585
    %vm2592 = vmor %vm2590, %vm2591
    %v2593 = vsel %vm2592, %v2585, %v2589
    %v2594 = vand.u32 2147483647, %v1239
    %vm2595 = vcmp.eq.f32.partialorder %v2594, 8.507059e+37
    %v2596 = vand.u32 %v1239, 2147483648
    %v2597 = vor.u32 1.1754944e-38, %v2596
    %v2598 = vsel %vm2595, %v2597, %v2593
    %v2599 = vmul.f32 1.0, %v2598
    %v2600 = vrcp.pop %v1240
    %v2601 = vmul.f32 %v1240, %v2600
    %v2602 = vsub.f32 1.0, %v2601
    %v2603 = vmul.f32 %v2600, %v2602
    %v2604 = vadd.f32 %v2600, %v2603
    %vm2605 = vweird.f32 %v1240
    %vm2606 = vweird.f32 %v2600
    %vm2607 = vmor %vm2605, %vm2606
    %v2608 = vsel %vm2607, %v2600, %v2604
    %v2609 = vand.u32 2147483647, %v1240
    %vm2610 = vcmp.eq.f32.partialorder %v2609, 8.507059e+37
    %v2611 = vand.u32 %v1240, 2147483648
    %v2612 = vor.u32 1.1754944e-38, %v2611
    %v2613 = vsel %vm2610, %v2612, %v2608
    %v2614 = vmul.f32 1.0, %v2613
    %v2615 = vrcp.pop %v1241
    %v2616 = vmul.f32 %v1241, %v2615
    %v2617 = vsub.f32 1.0, %v2616
    %v2618 = vmul.f32 %v2615, %v2617
    %v2619 = vadd.f32 %v2615, %v2618
    %vm2620 = vweird.f32 %v1241
    %vm2621 = vweird.f32 %v2615
    %vm2622 = vmor %vm2620, %vm2621
    %v2623 = vsel %vm2622, %v2615, %v2619
    %v2624 = vand.u32 2147483647, %v1241
    %vm2625 = vcmp.eq.f32.partialorder %v2624, 8.507059e+37
    %v2626 = vand.u32 %v1241, 2147483648
    %v2627 = vor.u32 1.1754944e-38, %v2626
    %v2628 = vsel %vm2625, %v2627, %v2623
    %v2629 = vmul.f32 1.0, %v2628
    %v2630 = vrcp.pop %v1242
    %v2631 = vmul.f32 %v1242, %v2630
    %v2632 = vsub.f32 1.0, %v2631
    %v2633 = vmul.f32 %v2630, %v2632
    %v2634 = vadd.f32 %v2630, %v2633
    %vm2635 = vweird.f32 %v1242
    %vm2636 = vweird.f32 %v2630
    %vm2637 = vmor %vm2635, %vm2636
    %v2638 = vsel %vm2637, %v2630, %v2634
    %v2639 = vand.u32 2147483647, %v1242
    %vm2640 = vcmp.eq.f32.partialorder %v2639, 8.507059e+37
    %v2641 = vand.u32 %v1242, 2147483648
    %v2642 = vor.u32 1.1754944e-38, %v2641
    %v2643 = vsel %vm2640, %v2642, %v2638
    %v2644 = vmul.f32 1.0, %v2643
    %v2645 = vrcp.pop %v1243
    %v2646 = vmul.f32 %v1243, %v2645
    %v2647 = vsub.f32 1.0, %v2646
    %v2648 = vmul.f32 %v2645, %v2647
    %v2649 = vadd.f32 %v2645, %v2648
    %vm2650 = vweird.f32 %v1243
    %vm2651 = vweird.f32 %v2645
    %vm2652 = vmor %vm2650, %vm2651
    %v2653 = vsel %vm2652, %v2645, %v2649
    %v2654 = vand.u32 2147483647, %v1243
    %vm2655 = vcmp.eq.f32.partialorder %v2654, 8.507059e+37
    %v2656 = vand.u32 %v1243, 2147483648
    %v2657 = vor.u32 1.1754944e-38, %v2656
    %v2658 = vsel %vm2655, %v2657, %v2653
    %v2659 = vmul.f32 1.0, %v2658
    %v2660 = vrcp.pop %v1244
    %v2661 = vmul.f32 %v1244, %v2660
    %v2662 = vsub.f32 1.0, %v2661
    %v2663 = vmul.f32 %v2660, %v2662
    %v2664 = vadd.f32 %v2660, %v2663
    %vm2665 = vweird.f32 %v1244
    %vm2666 = vweird.f32 %v2660
    %vm2667 = vmor %vm2665, %vm2666
    %v2668 = vsel %vm2667, %v2660, %v2664
    %v2669 = vand.u32 2147483647, %v1244
    %vm2670 = vcmp.eq.f32.partialorder %v2669, 8.507059e+37
    %v2671 = vand.u32 %v1244, 2147483648
    %v2672 = vor.u32 1.1754944e-38, %v2671
    %v2673 = vsel %vm2670, %v2672, %v2668
    %v2674 = vmul.f32 1.0, %v2673
    %v2675 = vrcp.pop %v1245
    %v2676 = vmul.f32 %v1245, %v2675
    %v2677 = vsub.f32 1.0, %v2676
    %v2678 = vmul.f32 %v2675, %v2677
    %v2679 = vadd.f32 %v2675, %v2678
    %vm2680 = vweird.f32 %v1245
    %vm2681 = vweird.f32 %v2675
    %vm2682 = vmor %vm2680, %vm2681
    %v2683 = vsel %vm2682, %v2675, %v2679
    %v2684 = vand.u32 2147483647, %v1245
    %vm2685 = vcmp.eq.f32.partialorder %v2684, 8.507059e+37
    %v2686 = vand.u32 %v1245, 2147483648
    %v2687 = vor.u32 1.1754944e-38, %v2686
    %v2688 = vsel %vm2685, %v2687, %v2683
    %v2689 = vmul.f32 1.0, %v2688
    %v2690 = vrcp.pop %v1246
    %v2691 = vmul.f32 %v1246, %v2690
    %v2692 = vsub.f32 1.0, %v2691
    %v2693 = vmul.f32 %v2690, %v2692
    %v2694 = vadd.f32 %v2690, %v2693
    %vm2695 = vweird.f32 %v1246
    %vm2696 = vweird.f32 %v2690
    %vm2697 = vmor %vm2695, %vm2696
    %v2698 = vsel %vm2697, %v2690, %v2694
    %v2699 = vand.u32 2147483647, %v1246
    %vm2700 = vcmp.eq.f32.partialorder %v2699, 8.507059e+37
    %v2701 = vand.u32 %v1246, 2147483648
    %v2702 = vor.u32 1.1754944e-38, %v2701
    %v2703 = vsel %vm2700, %v2702, %v2698
    %v2704 = vmul.f32 1.0, %v2703
    %v2705 = vrcp.pop %v1247
    %v2706 = vmul.f32 %v1247, %v2705
    %v2707 = vsub.f32 1.0, %v2706
    %v2708 = vmul.f32 %v2705, %v2707
    %v2709 = vadd.f32 %v2705, %v2708
    %vm2710 = vweird.f32 %v1247
    %vm2711 = vweird.f32 %v2705
    %vm2712 = vmor %vm2710, %vm2711
    %v2713 = vsel %vm2712, %v2705, %v2709
    %v2714 = vand.u32 2147483647, %v1247
    %vm2715 = vcmp.eq.f32.partialorder %v2714, 8.507059e+37
    %v2716 = vand.u32 %v1247, 2147483648
    %v2717 = vor.u32 1.1754944e-38, %v2716
    %v2718 = vsel %vm2715, %v2717, %v2713
    %v2719 = vmul.f32 1.0, %v2718
    %v2720 = vrcp.pop %v1248
    %v2721 = vmul.f32 %v1248, %v2720
    %v2722 = vsub.f32 1.0, %v2721
    %v2723 = vmul.f32 %v2720, %v2722
    %v2724 = vadd.f32 %v2720, %v2723
    %vm2725 = vweird.f32 %v1248
    %vm2726 = vweird.f32 %v2720
    %vm2727 = vmor %vm2725, %vm2726
    %v2728 = vsel %vm2727, %v2720, %v2724
    %v2729 = vand.u32 2147483647, %v1248
    %vm2730 = vcmp.eq.f32.partialorder %v2729, 8.507059e+37
    %v2731 = vand.u32 %v1248, 2147483648
    %v2732 = vor.u32 1.1754944e-38, %v2731
    %v2733 = vsel %vm2730, %v2732, %v2728
    %v2734 = vmul.f32 1.0, %v2733
    %v2735 = vrcp.pop %v1249
    %v2736 = vmul.f32 %v1249, %v2735
    %v2737 = vsub.f32 1.0, %v2736
    %v2738 = vmul.f32 %v2735, %v2737
    %v2739 = vadd.f32 %v2735, %v2738
    %vm2740 = vweird.f32 %v1249
    %vm2741 = vweird.f32 %v2735
    %vm2742 = vmor %vm2740, %vm2741
    %v2743 = vsel %vm2742, %v2735, %v2739
    %v2744 = vand.u32 2147483647, %v1249
    %vm2745 = vcmp.eq.f32.partialorder %v2744, 8.507059e+37
    %v2746 = vand.u32 %v1249, 2147483648
    %v2747 = vor.u32 1.1754944e-38, %v2746
    %v2748 = vsel %vm2745, %v2747, %v2743
    %v2749 = vmul.f32 1.0, %v2748
    %v2750 = vrcp.pop %v1250
    %v2751 = vmul.f32 %v1250, %v2750
    %v2752 = vsub.f32 1.0, %v2751
    %v2753 = vmul.f32 %v2750, %v2752
    %v2754 = vadd.f32 %v2750, %v2753
    %vm2755 = vweird.f32 %v1250
    %vm2756 = vweird.f32 %v2750
    %vm2757 = vmor %vm2755, %vm2756
    %v2758 = vsel %vm2757, %v2750, %v2754
    %v2759 = vand.u32 2147483647, %v1250
    %vm2760 = vcmp.eq.f32.partialorder %v2759, 8.507059e+37
    %v2761 = vand.u32 %v1250, 2147483648
    %v2762 = vor.u32 1.1754944e-38, %v2761
    %v2763 = vsel %vm2760, %v2762, %v2758
    %v2764 = vmul.f32 1.0, %v2763
    %v2765 = vrcp.pop %v1251
    %v2766 = vmul.f32 %v1251, %v2765
    %v2767 = vsub.f32 1.0, %v2766
    %v2768 = vmul.f32 %v2765, %v2767
    %v2769 = vadd.f32 %v2765, %v2768
    %vm2770 = vweird.f32 %v1251
    %vm2771 = vweird.f32 %v2765
    %vm2772 = vmor %vm2770, %vm2771
    %v2773 = vsel %vm2772, %v2765, %v2769
    %v2774 = vand.u32 2147483647, %v1251
    %vm2775 = vcmp.eq.f32.partialorder %v2774, 8.507059e+37
    %v2776 = vand.u32 %v1251, 2147483648
    %v2777 = vor.u32 1.1754944e-38, %v2776
    %v2778 = vsel %vm2775, %v2777, %v2773
    %v2779 = vmul.f32 1.0, %v2778
    %v2780 = vrcp.pop %v1252
    %v2781 = vmul.f32 %v1252, %v2780
    %v2782 = vsub.f32 1.0, %v2781
    %v2783 = vmul.f32 %v2780, %v2782
    %v2784 = vadd.f32 %v2780, %v2783
    %vm2785 = vweird.f32 %v1252
    %vm2786 = vweird.f32 %v2780
    %vm2787 = vmor %vm2785, %vm2786
    %v2788 = vsel %vm2787, %v2780, %v2784
    %v2789 = vand.u32 2147483647, %v1252
    %vm2790 = vcmp.eq.f32.partialorder %v2789, 8.507059e+37
    %v2791 = vand.u32 %v1252, 2147483648
    %v2792 = vor.u32 1.1754944e-38, %v2791
    %v2793 = vsel %vm2790, %v2792, %v2788
    %v2794 = vmul.f32 1.0, %v2793
    %v2795 = vrcp.pop %v1253
    %v2796 = vmul.f32 %v1253, %v2795
    %v2797 = vsub.f32 1.0, %v2796
    %v2798 = vmul.f32 %v2795, %v2797
    %v2799 = vadd.f32 %v2795, %v2798
    %vm2800 = vweird.f32 %v1253
    %vm2801 = vweird.f32 %v2795
    %vm2802 = vmor %vm2800, %vm2801
    %v2803 = vsel %vm2802, %v2795, %v2799
    %v2804 = vand.u32 2147483647, %v1253
    %vm2805 = vcmp.eq.f32.partialorder %v2804, 8.507059e+37
    %v2806 = vand.u32 %v1253, 2147483648
    %v2807 = vor.u32 1.1754944e-38, %v2806
    %v2808 = vsel %vm2805, %v2807, %v2803
    %v2809 = vmul.f32 1.0, %v2808
    %v2810 = vrcp.pop %v1254
    %v2811 = vmul.f32 %v1254, %v2810
    %v2812 = vsub.f32 1.0, %v2811
    %v2813 = vmul.f32 %v2810, %v2812
    %v2814 = vadd.f32 %v2810, %v2813
    %vm2815 = vweird.f32 %v1254
    %vm2816 = vweird.f32 %v2810
    %vm2817 = vmor %vm2815, %vm2816
    %v2818 = vsel %vm2817, %v2810, %v2814
    %v2819 = vand.u32 2147483647, %v1254
    %vm2820 = vcmp.eq.f32.partialorder %v2819, 8.507059e+37
    %v2821 = vand.u32 %v1254, 2147483648
    %v2822 = vor.u32 1.1754944e-38, %v2821
    %v2823 = vsel %vm2820, %v2822, %v2818
    %v2824 = vmul.f32 1.0, %v2823
    %v2825 = vrcp.pop %v1255
    %v2826 = vmul.f32 %v1255, %v2825
    %v2827 = vsub.f32 1.0, %v2826
    %v2828 = vmul.f32 %v2825, %v2827
    %v2829 = vadd.f32 %v2825, %v2828
    %vm2830 = vweird.f32 %v1255
    %vm2831 = vweird.f32 %v2825
    %vm2832 = vmor %vm2830, %vm2831
    %v2833 = vsel %vm2832, %v2825, %v2829
    %v2834 = vand.u32 2147483647, %v1255
    %vm2835 = vcmp.eq.f32.partialorder %v2834, 8.507059e+37
    %v2836 = vand.u32 %v1255, 2147483648
    %v2837 = vor.u32 1.1754944e-38, %v2836
    %v2838 = vsel %vm2835, %v2837, %v2833
    %v2839 = vmul.f32 1.0, %v2838
    %v2840 = vrcp.pop %v1256
    %v2841 = vmul.f32 %v1256, %v2840
    %v2842 = vsub.f32 1.0, %v2841
    %v2843 = vmul.f32 %v2840, %v2842
    %v2844 = vadd.f32 %v2840, %v2843
    %vm2845 = vweird.f32 %v1256
    %vm2846 = vweird.f32 %v2840
    %vm2847 = vmor %vm2845, %vm2846
    %v2848 = vsel %vm2847, %v2840, %v2844
    %v2849 = vand.u32 2147483647, %v1256
    %vm2850 = vcmp.eq.f32.partialorder %v2849, 8.507059e+37
    %v2851 = vand.u32 %v1256, 2147483648
    %v2852 = vor.u32 1.1754944e-38, %v2851
    %v2853 = vsel %vm2850, %v2852, %v2848
    %v2854 = vmul.f32 1.0, %v2853
    %v2855 = vrcp.pop %v1257
    %v2856 = vmul.f32 %v1257, %v2855
    %v2857 = vsub.f32 1.0, %v2856
    %v2858 = vmul.f32 %v2855, %v2857
    %v2859 = vadd.f32 %v2855, %v2858
    %vm2860 = vweird.f32 %v1257
    %vm2861 = vweird.f32 %v2855
    %vm2862 = vmor %vm2860, %vm2861
    %v2863 = vsel %vm2862, %v2855, %v2859
    %v2864 = vand.u32 2147483647, %v1257
    %vm2865 = vcmp.eq.f32.partialorder %v2864, 8.507059e+37
    %v2866 = vand.u32 %v1257, 2147483648
    %v2867 = vor.u32 1.1754944e-38, %v2866
    %v2868 = vsel %vm2865, %v2867, %v2863
    %v2869 = vmul.f32 1.0, %v2868
    %v2870 = vrcp.pop %v1258
    %v2871 = vmul.f32 %v1258, %v2870
    %v2872 = vsub.f32 1.0, %v2871
    %v2873 = vmul.f32 %v2870, %v2872
    %v2874 = vadd.f32 %v2870, %v2873
    %vm2875 = vweird.f32 %v1258
    %vm2876 = vweird.f32 %v2870
    %vm2877 = vmor %vm2875, %vm2876
    %v2878 = vsel %vm2877, %v2870, %v2874
    %v2879 = vand.u32 2147483647, %v1258
    %vm2880 = vcmp.eq.f32.partialorder %v2879, 8.507059e+37
    %v2881 = vand.u32 %v1258, 2147483648
    %v2882 = vor.u32 1.1754944e-38, %v2881
    %v2883 = vsel %vm2880, %v2882, %v2878
    %v2884 = vmul.f32 1.0, %v2883
    %v2885 = vrcp.pop %v1259
    %v2886 = vmul.f32 %v1259, %v2885
    %v2887 = vsub.f32 1.0, %v2886
    %v2888 = vmul.f32 %v2885, %v2887
    %v2889 = vadd.f32 %v2885, %v2888
    %vm2890 = vweird.f32 %v1259
    %vm2891 = vweird.f32 %v2885
    %vm2892 = vmor %vm2890, %vm2891
    %v2893 = vsel %vm2892, %v2885, %v2889
    %v2894 = vand.u32 2147483647, %v1259
    %vm2895 = vcmp.eq.f32.partialorder %v2894, 8.507059e+37
    %v2896 = vand.u32 %v1259, 2147483648
    %v2897 = vor.u32 1.1754944e-38, %v2896
    %v2898 = vsel %vm2895, %v2897, %v2893
    %v2899 = vmul.f32 1.0, %v2898
    %v2900 = vrcp.pop %v1260
    %v2901 = vmul.f32 %v1260, %v2900
    %v2902 = vsub.f32 1.0, %v2901
    %v2903 = vmul.f32 %v2900, %v2902
    %v2904 = vadd.f32 %v2900, %v2903
    %vm2905 = vweird.f32 %v1260
    %vm2906 = vweird.f32 %v2900
    %vm2907 = vmor %vm2905, %vm2906
    %v2908 = vsel %vm2907, %v2900, %v2904
    %v2909 = vand.u32 2147483647, %v1260
    %vm2910 = vcmp.eq.f32.partialorder %v2909, 8.507059e+37
    %v2911 = vand.u32 %v1260, 2147483648
    %v2912 = vor.u32 1.1754944e-38, %v2911
    %v2913 = vsel %vm2910, %v2912, %v2908
    %v2914 = vmul.f32 1.0, %v2913
    %v2915 = vrcp.pop %v1261
    %v2916 = vmul.f32 %v1261, %v2915
    %v2917 = vsub.f32 1.0, %v2916
    %v2918 = vmul.f32 %v2915, %v2917
    %v2919 = vadd.f32 %v2915, %v2918
    %vm2920 = vweird.f32 %v1261
    %vm2921 = vweird.f32 %v2915
    %vm2922 = vmor %vm2920, %vm2921
    %v2923 = vsel %vm2922, %v2915, %v2919
    %v2924 = vand.u32 2147483647, %v1261
    %vm2925 = vcmp.eq.f32.partialorder %v2924, 8.507059e+37
    %v2926 = vand.u32 %v1261, 2147483648
    %v2927 = vor.u32 1.1754944e-38, %v2926
    %v2928 = vsel %vm2925, %v2927, %v2923
    %v2929 = vmul.f32 1.0, %v2928
    %v2930 = vrcp.pop %v1262
    %v2931 = vmul.f32 %v1262, %v2930
    %v2932 = vsub.f32 1.0, %v2931
    %v2933 = vmul.f32 %v2930, %v2932
    %v2934 = vadd.f32 %v2930, %v2933
    %vm2935 = vweird.f32 %v1262
    %vm2936 = vweird.f32 %v2930
    %vm2937 = vmor %vm2935, %vm2936
    %v2938 = vsel %vm2937, %v2930, %v2934
    %v2939 = vand.u32 2147483647, %v1262
    %vm2940 = vcmp.eq.f32.partialorder %v2939, 8.507059e+37
    %v2941 = vand.u32 %v1262, 2147483648
    %v2942 = vor.u32 1.1754944e-38, %v2941
    %v2943 = vsel %vm2940, %v2942, %v2938
    %v2944 = vmul.f32 1.0, %v2943
    %v2945 = vrcp.pop %v1263
    %v2946 = vmul.f32 %v1263, %v2945
    %v2947 = vsub.f32 1.0, %v2946
    %v2948 = vmul.f32 %v2945, %v2947
    %v2949 = vadd.f32 %v2945, %v2948
    %vm2950 = vweird.f32 %v1263
    %vm2951 = vweird.f32 %v2945
    %vm2952 = vmor %vm2950, %vm2951
    %v2953 = vsel %vm2952, %v2945, %v2949
    %v2954 = vand.u32 2147483647, %v1263
    %vm2955 = vcmp.eq.f32.partialorder %v2954, 8.507059e+37
    %v2956 = vand.u32 %v1263, 2147483648
    %v2957 = vor.u32 1.1754944e-38, %v2956
    %v2958 = vsel %vm2955, %v2957, %v2953
    %v2959 = vmul.f32 1.0, %v2958
    %v2960 = vrcp.pop %v1264
    %v2961 = vmul.f32 %v1264, %v2960
    %v2962 = vsub.f32 1.0, %v2961
    %v2963 = vmul.f32 %v2960, %v2962
    %v2964 = vadd.f32 %v2960, %v2963
    %vm2965 = vweird.f32 %v1264
    %vm2966 = vweird.f32 %v2960
    %vm2967 = vmor %vm2965, %vm2966
    %v2968 = vsel %vm2967, %v2960, %v2964
    %v2969 = vand.u32 2147483647, %v1264
    %vm2970 = vcmp.eq.f32.partialorder %v2969, 8.507059e+37
    %v2971 = vand.u32 %v1264, 2147483648
    %v2972 = vor.u32 1.1754944e-38, %v2971
    %v2973 = vsel %vm2970, %v2972, %v2968
    %v2974 = vmul.f32 1.0, %v2973
    %v2975 = vrcp.pop %v1265
    %v2976 = vmul.f32 %v1265, %v2975
    %v2977 = vsub.f32 1.0, %v2976
    %v2978 = vmul.f32 %v2975, %v2977
    %v2979 = vadd.f32 %v2975, %v2978
    %vm2980 = vweird.f32 %v1265
    %vm2981 = vweird.f32 %v2975
    %vm2982 = vmor %vm2980, %vm2981
    %v2983 = vsel %vm2982, %v2975, %v2979
    %v2984 = vand.u32 2147483647, %v1265
    %vm2985 = vcmp.eq.f32.partialorder %v2984, 8.507059e+37
    %v2986 = vand.u32 %v1265, 2147483648
    %v2987 = vor.u32 1.1754944e-38, %v2986
    %v2988 = vsel %vm2985, %v2987, %v2983
    %v2989 = vmul.f32 1.0, %v2988
    %v2990 = vrcp.pop %v1266
    %v2991 = vmul.f32 %v1266, %v2990
    %v2992 = vsub.f32 1.0, %v2991
    %v2993 = vmul.f32 %v2990, %v2992
    %v2994 = vadd.f32 %v2990, %v2993
    %vm2995 = vweird.f32 %v1266
    %vm2996 = vweird.f32 %v2990
    %vm2997 = vmor %vm2995, %vm2996
    %v2998 = vsel %vm2997, %v2990, %v2994
    %v2999 = vand.u32 2147483647, %v1266
    %vm3000 = vcmp.eq.f32.partialorder %v2999, 8.507059e+37
    %v3001 = vand.u32 %v1266, 2147483648
    %v3002 = vor.u32 1.1754944e-38, %v3001
    %v3003 = vsel %vm3000, %v3002, %v2998
    %v3004 = vmul.f32 1.0, %v3003
    %v3005 = vrcp.pop %v1267
    %v3006 = vmul.f32 %v1267, %v3005
    %v3007 = vsub.f32 1.0, %v3006
    %v3008 = vmul.f32 %v3005, %v3007
    %v3009 = vadd.f32 %v3005, %v3008
    %vm3010 = vweird.f32 %v1267
    %vm3011 = vweird.f32 %v3005
    %vm3012 = vmor %vm3010, %vm3011
    %v3013 = vsel %vm3012, %v3005, %v3009
    %v3014 = vand.u32 2147483647, %v1267
    %vm3015 = vcmp.eq.f32.partialorder %v3014, 8.507059e+37
    %v3016 = vand.u32 %v1267, 2147483648
    %v3017 = vor.u32 1.1754944e-38, %v3016
    %v3018 = vsel %vm3015, %v3017, %v3013
    %v3019 = vmul.f32 1.0, %v3018
    %v3020 = vrcp.pop %v1268
    %v3021 = vmul.f32 %v1268, %v3020
    %v3022 = vsub.f32 1.0, %v3021
    %v3023 = vmul.f32 %v3020, %v3022
    %v3024 = vadd.f32 %v3020, %v3023
    %vm3025 = vweird.f32 %v1268
    %vm3026 = vweird.f32 %v3020
    %vm3027 = vmor %vm3025, %vm3026
    %v3028 = vsel %vm3027, %v3020, %v3024
    %v3029 = vand.u32 2147483647, %v1268
    %vm3030 = vcmp.eq.f32.partialorder %v3029, 8.507059e+37
    %v3031 = vand.u32 %v1268, 2147483648
    %v3032 = vor.u32 1.1754944e-38, %v3031
    %v3033 = vsel %vm3030, %v3032, %v3028
    %v3034 = vmul.f32 1.0, %v3033
    %v3035 = vrcp.pop %v1269
    %v3036 = vmul.f32 %v1269, %v3035
    %v3037 = vsub.f32 1.0, %v3036
    %v3038 = vmul.f32 %v3035, %v3037
    %v3039 = vadd.f32 %v3035, %v3038
    %vm3040 = vweird.f32 %v1269
    %vm3041 = vweird.f32 %v3035
    %vm3042 = vmor %vm3040, %vm3041
    %v3043 = vsel %vm3042, %v3035, %v3039
    %v3044 = vand.u32 2147483647, %v1269
    %vm3045 = vcmp.eq.f32.partialorder %v3044, 8.507059e+37
    %v3046 = vand.u32 %v1269, 2147483648
    %v3047 = vor.u32 1.1754944e-38, %v3046
    %v3048 = vsel %vm3045, %v3047, %v3043
    %v3049 = vmul.f32 1.0, %v3048
    %v3050 = vrcp.pop %v1270
    %v3051 = vmul.f32 %v1270, %v3050
    %v3052 = vsub.f32 1.0, %v3051
    %v3053 = vmul.f32 %v3050, %v3052
    %v3054 = vadd.f32 %v3050, %v3053
    %vm3055 = vweird.f32 %v1270
    %vm3056 = vweird.f32 %v3050
    %vm3057 = vmor %vm3055, %vm3056
    %v3058 = vsel %vm3057, %v3050, %v3054
    %v3059 = vand.u32 2147483647, %v1270
    %vm3060 = vcmp.eq.f32.partialorder %v3059, 8.507059e+37
    %v3061 = vand.u32 %v1270, 2147483648
    %v3062 = vor.u32 1.1754944e-38, %v3061
    %v3063 = vsel %vm3060, %v3062, %v3058
    %v3064 = vmul.f32 1.0, %v3063
    %v3065 = vrcp.pop %v1271
    %v3066 = vmul.f32 %v1271, %v3065
    %v3067 = vsub.f32 1.0, %v3066
    %v3068 = vmul.f32 %v3065, %v3067
    %v3069 = vadd.f32 %v3065, %v3068
    %vm3070 = vweird.f32 %v1271
    %vm3071 = vweird.f32 %v3065
    %vm3072 = vmor %vm3070, %vm3071
    %v3073 = vsel %vm3072, %v3065, %v3069
    %v3074 = vand.u32 2147483647, %v1271
    %vm3075 = vcmp.eq.f32.partialorder %v3074, 8.507059e+37
    %v3076 = vand.u32 %v1271, 2147483648
    %v3077 = vor.u32 1.1754944e-38, %v3076
    %v3078 = vsel %vm3075, %v3077, %v3073
    %v3079 = vmul.f32 1.0, %v3078
    %v3080 = vrcp.pop %v1272
    %v3081 = vmul.f32 %v1272, %v3080
    %v3082 = vsub.f32 1.0, %v3081
    %v3083 = vmul.f32 %v3080, %v3082
    %v3084 = vadd.f32 %v3080, %v3083
    %vm3085 = vweird.f32 %v1272
    %vm3086 = vweird.f32 %v3080
    %vm3087 = vmor %vm3085, %vm3086
    %v3088 = vsel %vm3087, %v3080, %v3084
    %v3089 = vand.u32 2147483647, %v1272
    %vm3090 = vcmp.eq.f32.partialorder %v3089, 8.507059e+37
    %v3091 = vand.u32 %v1272, 2147483648
    %v3092 = vor.u32 1.1754944e-38, %v3091
    %v3093 = vsel %vm3090, %v3092, %v3088
    %v3094 = vmul.f32 1.0, %v3093
    %v3095 = vrcp.pop %v1273
    %v3096 = vmul.f32 %v1273, %v3095
    %v3097 = vsub.f32 1.0, %v3096
    %v3098 = vmul.f32 %v3095, %v3097
    %v3099 = vadd.f32 %v3095, %v3098
    %vm3100 = vweird.f32 %v1273
    %vm3101 = vweird.f32 %v3095
    %vm3102 = vmor %vm3100, %vm3101
    %v3103 = vsel %vm3102, %v3095, %v3099
    %v3104 = vand.u32 2147483647, %v1273
    %vm3105 = vcmp.eq.f32.partialorder %v3104, 8.507059e+37
    %v3106 = vand.u32 %v1273, 2147483648
    %v3107 = vor.u32 1.1754944e-38, %v3106
    %v3108 = vsel %vm3105, %v3107, %v3103
    %v3109 = vmul.f32 1.0, %v3108
    %v3110 = vrcp.pop %v1274
    %v3111 = vmul.f32 %v1274, %v3110
    %v3112 = vsub.f32 1.0, %v3111
    %v3113 = vmul.f32 %v3110, %v3112
    %v3114 = vadd.f32 %v3110, %v3113
    %vm3115 = vweird.f32 %v1274
    %vm3116 = vweird.f32 %v3110
    %vm3117 = vmor %vm3115, %vm3116
    %v3118 = vsel %vm3117, %v3110, %v3114
    %v3119 = vand.u32 2147483647, %v1274
    %vm3120 = vcmp.eq.f32.partialorder %v3119, 8.507059e+37
    %v3121 = vand.u32 %v1274, 2147483648
    %v3122 = vor.u32 1.1754944e-38, %v3121
    %v3123 = vsel %vm3120, %v3122, %v3118
    %v3124 = vmul.f32 1.0, %v3123
    %v3125 = vrcp.pop %v1275
    %v3126 = vmul.f32 %v1275, %v3125
    %v3127 = vsub.f32 1.0, %v3126
    %v3128 = vmul.f32 %v3125, %v3127
    %v3129 = vadd.f32 %v3125, %v3128
    %vm3130 = vweird.f32 %v1275
    %vm3131 = vweird.f32 %v3125
    %vm3132 = vmor %vm3130, %vm3131
    %v3133 = vsel %vm3132, %v3125, %v3129
    %v3134 = vand.u32 2147483647, %v1275
    %vm3135 = vcmp.eq.f32.partialorder %v3134, 8.507059e+37
    %v3136 = vand.u32 %v1275, 2147483648
    %v3137 = vor.u32 1.1754944e-38, %v3136
    %v3138 = vsel %vm3135, %v3137, %v3133
    %v3139 = vmul.f32 1.0, %v3138
    %v3140 = vrcp.pop %v1276
    %v3141 = vmul.f32 %v1276, %v3140
    %v3142 = vsub.f32 1.0, %v3141
    %v3143 = vmul.f32 %v3140, %v3142
    %v3144 = vadd.f32 %v3140, %v3143
    %vm3145 = vweird.f32 %v1276
    %vm3146 = vweird.f32 %v3140
    %vm3147 = vmor %vm3145, %vm3146
    %v3148 = vsel %vm3147, %v3140, %v3144
    %v3149 = vand.u32 2147483647, %v1276
    %vm3150 = vcmp.eq.f32.partialorder %v3149, 8.507059e+37
    %v3151 = vand.u32 %v1276, 2147483648
    %v3152 = vor.u32 1.1754944e-38, %v3151
    %v3153 = vsel %vm3150, %v3152, %v3148
    %v3154 = vmul.f32 1.0, %v3153
    %v3155 = vrcp.pop %v1277
    %v3156 = vmul.f32 %v1277, %v3155
    %v3157 = vsub.f32 1.0, %v3156
    %v3158 = vmul.f32 %v3155, %v3157
    %v3159 = vadd.f32 %v3155, %v3158
    %vm3160 = vweird.f32 %v1277
    %vm3161 = vweird.f32 %v3155
    %vm3162 = vmor %vm3160, %vm3161
    %v3163 = vsel %vm3162, %v3155, %v3159
    %v3164 = vand.u32 2147483647, %v1277
    %vm3165 = vcmp.eq.f32.partialorder %v3164, 8.507059e+37
    %v3166 = vand.u32 %v1277, 2147483648
    %v3167 = vor.u32 1.1754944e-38, %v3166
    %v3168 = vsel %vm3165, %v3167, %v3163
    %v3169 = vmul.f32 1.0, %v3168
    %v3170 = vrcp.pop %v1278
    %v3171 = vmul.f32 %v1278, %v3170
    %v3172 = vsub.f32 1.0, %v3171
    %v3173 = vmul.f32 %v3170, %v3172
    %v3174 = vadd.f32 %v3170, %v3173
    %vm3175 = vweird.f32 %v1278
    %vm3176 = vweird.f32 %v3170
    %vm3177 = vmor %vm3175, %vm3176
    %v3178 = vsel %vm3177, %v3170, %v3174
    %v3179 = vand.u32 2147483647, %v1278
    %vm3180 = vcmp.eq.f32.partialorder %v3179, 8.507059e+37
    %v3181 = vand.u32 %v1278, 2147483648
    %v3182 = vor.u32 1.1754944e-38, %v3181
    %v3183 = vsel %vm3180, %v3182, %v3178
    %v3184 = vmul.f32 1.0, %v3183
    %v3185 = vrcp.pop %v1279
    %v3186 = vmul.f32 %v1279, %v3185
    %v3187 = vsub.f32 1.0, %v3186
    %v3188 = vmul.f32 %v3185, %v3187
    %v3189 = vadd.f32 %v3185, %v3188
    %vm3190 = vweird.f32 %v1279
    %vm3191 = vweird.f32 %v3185
    %vm3192 = vmor %vm3190, %vm3191
    %v3193 = vsel %vm3192, %v3185, %v3189
    %v3194 = vand.u32 2147483647, %v1279
    %vm3195 = vcmp.eq.f32.partialorder %v3194, 8.507059e+37
    %v3196 = vand.u32 %v1279, 2147483648
    %v3197 = vor.u32 1.1754944e-38, %v3196
    %v3198 = vsel %vm3195, %v3197, %v3193
    %v3199 = vmul.f32 1.0, %v3198
    %v3200 = vmul.f32 %v422, %v1294
    %v3201 = vmul.f32 %v511, %v1309
    %v3202 = vmul.f32 %v600, %v1324
    %v3203 = vmul.f32 %v689, %v1339
    %v3204 = vmul.f32 %v424, %v1354
    %v3205 = vmul.f32 %v513, %v1369
    %v3206 = vmul.f32 %v602, %v1384
    %v3207 = vmul.f32 %v691, %v1399
    %v3208 = vmul.f32 %v427, %v1414
    %v3209 = vmul.f32 %v516, %v1429
    %v3210 = vmul.f32 %v605, %v1444
    %v3211 = vmul.f32 %v694, %v1459
    %v3212 = vmul.f32 %v429, %v1474
    %v3213 = vmul.f32 %v518, %v1489
    %v3214 = vmul.f32 %v607, %v1504
    %v3215 = vmul.f32 %v696, %v1519
    %v3216 = vmul.f32 %v432, %v1534
    %v3217 = vmul.f32 %v521, %v1549
    %v3218 = vmul.f32 %v610, %v1564
    %v3219 = vmul.f32 %v699, %v1579
    %v3220 = vmul.f32 %v434, %v1594
    %v3221 = vmul.f32 %v523, %v1609
    %v3222 = vmul.f32 %v612, %v1624
    %v3223 = vmul.f32 %v701, %v1639
    %v3224 = vmul.f32 %v437, %v1654
    %v3225 = vmul.f32 %v526, %v1669
    %v3226 = vmul.f32 %v615, %v1684
    %v3227 = vmul.f32 %v704, %v1699
    %v3228 = vmul.f32 %v439, %v1714
    %v3229 = vmul.f32 %v528, %v1729
    %v3230 = vmul.f32 %v617, %v1744
    %v3231 = vmul.f32 %v706, %v1759
    %v3232 = vmul.f32 %v442, %v1774
    %v3233 = vmul.f32 %v531, %v1789
    %v3234 = vmul.f32 %v620, %v1804
    %v3235 = vmul.f32 %v709, %v1819
    %v3236 = vmul.f32 %v444, %v1834
    %v3237 = vmul.f32 %v533, %v1849
    %v3238 = vmul.f32 %v622, %v1864
    %v3239 = vmul.f32 %v711, %v1879
    %v3240 = vmul.f32 %v447, %v1894
    %v3241 = vmul.f32 %v536, %v1909
    %v3242 = vmul.f32 %v625, %v1924
    %v3243 = vmul.f32 %v714, %v1939
    %v3244 = vmul.f32 %v449, %v1954
    %v3245 = vmul.f32 %v538, %v1969
    %v3246 = vmul.f32 %v627, %v1984
    %v3247 = vmul.f32 %v716, %v1999
    %v3248 = vmul.f32 %v452, %v2014
    %v3249 = vmul.f32 %v541, %v2029
    %v3250 = vmul.f32 %v630, %v2044
    %v3251 = vmul.f32 %v719, %v2059
    %v3252 = vmul.f32 %v454, %v2074
    %v3253 = vmul.f32 %v543, %v2089
    %v3254 = vmul.f32 %v632, %v2104
    %v3255 = vmul.f32 %v721, %v2119
    %v3256 = vmul.f32 %v457, %v2134
    %v3257 = vmul.f32 %v546, %v2149
    %v3258 = vmul.f32 %v635, %v2164
    %v3259 = vmul.f32 %v724, %v2179
    %v3260 = vmul.f32 %v459, %v2194
    %v3261 = vmul.f32 %v548, %v2209
    %v3262 = vmul.f32 %v637, %v2224
    %v3263 = vmul.f32 %v726, %v2239
    %v3264 = vmul.f32 %v462, %v2254
    %v3265 = vmul.f32 %v551, %v2269
    %v3266 = vmul.f32 %v640, %v2284
    %v3267 = vmul.f32 %v729, %v2299
    %v3268 = vmul.f32 %v464, %v2314
    %v3269 = vmul.f32 %v553, %v2329
    %v3270 = vmul.f32 %v642, %v2344
    %v3271 = vmul.f32 %v731, %v2359
    %v3272 = vmul.f32 %v467, %v2374
    %v3273 = vmul.f32 %v556, %v2389
    %v3274 = vmul.f32 %v645, %v2404
    %v3275 = vmul.f32 %v734, %v2419
    %v3276 = vmul.f32 %v469, %v2434
    %v3277 = vmul.f32 %v558, %v2449
    %v3278 = vmul.f32 %v647, %v2464
    %v3279 = vmul.f32 %v736, %v2479
    %v3280 = vmul.f32 %v472, %v2494
    %v3281 = vmul.f32 %v561, %v2509
    %v3282 = vmul.f32 %v650, %v2524
    %v3283 = vmul.f32 %v739, %v2539
    %v3284 = vmul.f32 %v474, %v2554
    %v3285 = vmul.f32 %v563, %v2569
    %v3286 = vmul.f32 %v652, %v2584
    %v3287 = vmul.f32 %v741, %v2599
    %v3288 = vmul.f32 %v477, %v2614
    %v3289 = vmul.f32 %v566, %v2629
    %v3290 = vmul.f32 %v655, %v2644
    %v3291 = vmul.f32 %v744, %v2659
    %v3292 = vmul.f32 %v479, %v2674
    %v3293 = vmul.f32 %v568, %v2689
    %v3294 = vmul.f32 %v657, %v2704
    %v3295 = vmul.f32 %v746, %v2719
    %v3296 = vmul.f32 %v482, %v2734
    %v3297 = vmul.f32 %v571, %v2749
    %v3298 = vmul.f32 %v660, %v2764
    %v3299 = vmul.f32 %v749, %v2779
    %v3300 = vmul.f32 %v484, %v2794
    %v3301 = vmul.f32 %v573, %v2809
    %v3302 = vmul.f32 %v662, %v2824
    %v3303 = vmul.f32 %v751, %v2839
    %v3304 = vmul.f32 %v487, %v2854
    %v3305 = vmul.f32 %v576, %v2869
    %v3306 = vmul.f32 %v665, %v2884
    %v3307 = vmul.f32 %v754, %v2899
    %v3308 = vmul.f32 %v489, %v2914
    %v3309 = vmul.f32 %v578, %v2929
    %v3310 = vmul.f32 %v667, %v2944
    %v3311 = vmul.f32 %v756, %v2959
    %v3312 = vmul.f32 %v492, %v2974
    %v3313 = vmul.f32 %v581, %v2989
    %v3314 = vmul.f32 %v670, %v3004
    %v3315 = vmul.f32 %v759, %v3019
    %v3316 = vmul.f32 %v494, %v3034
    %v3317 = vmul.f32 %v583, %v3049
    %v3318 = vmul.f32 %v672, %v3064
    %v3319 = vmul.f32 %v761, %v3079
    %v3320 = vmul.f32 %v497, %v3094
    %v3321 = vmul.f32 %v586, %v3109
    %v3322 = vmul.f32 %v675, %v3124
    %v3323 = vmul.f32 %v764, %v3139
    %v3324 = vmul.f32 %v499, %v3154
    %v3325 = vmul.f32 %v588, %v3169
    %v3326 = vmul.f32 %v677, %v3184
    %v3327 = vmul.f32 %v766, %v3199
    %v3328 = vpack.c.bf16 %v3204, %v3200
    %v3329 = vpack.c.bf16 %v3205, %v3201
    %v3330 = vpack.c.bf16 %v3206, %v3202
    %v3331 = vpack.c.bf16 %v3207, %v3203
    %v3332 = vpack.c.bf16 %v3212, %v3208
    %v3333 = vpack.c.bf16 %v3213, %v3209
    %v3334 = vpack.c.bf16 %v3214, %v3210
    %v3335 = vpack.c.bf16 %v3215, %v3211
    %v3336 = vpack.c.bf16 %v3220, %v3216
    %v3337 = vpack.c.bf16 %v3221, %v3217
    %v3338 = vpack.c.bf16 %v3222, %v3218
    %v3339 = vpack.c.bf16 %v3223, %v3219
    %v3340 = vpack.c.bf16 %v3228, %v3224
    %v3341 = vpack.c.bf16 %v3229, %v3225
    %v3342 = vpack.c.bf16 %v3230, %v3226
    %v3343 = vpack.c.bf16 %v3231, %v3227
    %v3344 = vpack.c.bf16 %v3236, %v3232
    %v3345 = vpack.c.bf16 %v3237, %v3233
    %v3346 = vpack.c.bf16 %v3238, %v3234
    %v3347 = vpack.c.bf16 %v3239, %v3235
    %v3348 = vpack.c.bf16 %v3244, %v3240
    %v3349 = vpack.c.bf16 %v3245, %v3241
    %v3350 = vpack.c.bf16 %v3246, %v3242
    %v3351 = vpack.c.bf16 %v3247, %v3243
    %v3352 = vpack.c.bf16 %v3252, %v3248
    %v3353 = vpack.c.bf16 %v3253, %v3249
    %v3354 = vpack.c.bf16 %v3254, %v3250
    %v3355 = vpack.c.bf16 %v3255, %v3251
    %v3356 = vpack.c.bf16 %v3260, %v3256
    %v3357 = vpack.c.bf16 %v3261, %v3257
    %v3358 = vpack.c.bf16 %v3262, %v3258
    %v3359 = vpack.c.bf16 %v3263, %v3259
    %v3360 = vpack.c.bf16 %v3268, %v3264
    %v3361 = vpack.c.bf16 %v3269, %v3265
    %v3362 = vpack.c.bf16 %v3270, %v3266
    %v3363 = vpack.c.bf16 %v3271, %v3267
    %v3364 = vpack.c.bf16 %v3276, %v3272
    %v3365 = vpack.c.bf16 %v3277, %v3273
    %v3366 = vpack.c.bf16 %v3278, %v3274
    %v3367 = vpack.c.bf16 %v3279, %v3275
    %v3368 = vpack.c.bf16 %v3284, %v3280
    %v3369 = vpack.c.bf16 %v3285, %v3281
    %v3370 = vpack.c.bf16 %v3286, %v3282
    %v3371 = vpack.c.bf16 %v3287, %v3283
    %v3372 = vpack.c.bf16 %v3292, %v3288
    %v3373 = vpack.c.bf16 %v3293, %v3289
    %v3374 = vpack.c.bf16 %v3294, %v3290
    %v3375 = vpack.c.bf16 %v3295, %v3291
    %v3376 = vpack.c.bf16 %v3300, %v3296
    %v3377 = vpack.c.bf16 %v3301, %v3297
    %v3378 = vpack.c.bf16 %v3302, %v3298
    %v3379 = vpack.c.bf16 %v3303, %v3299
    %v3380 = vpack.c.bf16 %v3308, %v3304
    %v3381 = vpack.c.bf16 %v3309, %v3305
    %v3382 = vpack.c.bf16 %v3310, %v3306
    %v3383 = vpack.c.bf16 %v3311, %v3307
    %v3384 = vpack.c.bf16 %v3316, %v3312
    %v3385 = vpack.c.bf16 %v3317, %v3313
    %v3386 = vpack.c.bf16 %v3318, %v3314
    %v3387 = vpack.c.bf16 %v3319, %v3315
    %v3388 = vpack.c.bf16 %v3324, %v3320
    %v3389 = vpack.c.bf16 %v3325, %v3321
    %v3390 = vpack.c.bf16 %v3326, %v3322
    %v3391 = vpack.c.bf16 %v3327, %v3323
    %v3392 = vld [vmem:[#allocation8] sm:$0xf]
    %v3393 = vld [vmem:[#allocation8 + $0x4] sm:$0xf]
    %v3394 = vld [vmem:[#allocation8 + $0x8] sm:$0xf]
    %v3395 = vld [vmem:[#allocation8 + $0xc] sm:$0xf]
    %v3396 = vld [vmem:[#allocation8 + $0x10] sm:$0xf]
    %v3397 = vld [vmem:[#allocation8 + $0x14] sm:$0xf]
    %v3398 = vld [vmem:[#allocation8 + $0x18] sm:$0xf]
    %v3399 = vld [vmem:[#allocation8 + $0x1c] sm:$0xf]
    %v3400 = vld [vmem:[#allocation8 + $0x20] sm:$0xf]
    %v3401 = vld [vmem:[#allocation8 + $0x24] sm:$0xf]
    %v3402 = vld [vmem:[#allocation8 + $0x28] sm:$0xf]
    %v3403 = vld [vmem:[#allocation8 + $0x2c] sm:$0xf]
    %v3404 = vld [vmem:[#allocation8 + $0x30] sm:$0xf]
    %v3405 = vld [vmem:[#allocation8 + $0x34] sm:$0xf]
    %v3406 = vld [vmem:[#allocation8 + $0x38] sm:$0xf]
    %v3407 = vld [vmem:[#allocation8 + $0x3c] sm:$0xf]
    %v3408 = vld [vmem:[#allocation8 + $0x40] sm:$0xf]
    %v3409 = vld [vmem:[#allocation8 + $0x44] sm:$0xf]
    %v3410 = vld [vmem:[#allocation8 + $0x48] sm:$0xf]
    %v3411 = vld [vmem:[#allocation8 + $0x4c] sm:$0xf]
    %v3412 = vld [vmem:[#allocation8 + $0x50] sm:$0xf]
    %v3413 = vld [vmem:[#allocation8 + $0x54] sm:$0xf]
    %v3414 = vld [vmem:[#allocation8 + $0x58] sm:$0xf]
    %v3415 = vld [vmem:[#allocation8 + $0x5c] sm:$0xf]
    %v3416 = vld [vmem:[#allocation8 + $0x60] sm:$0xf]
    %v3417 = vld [vmem:[#allocation8 + $0x64] sm:$0xf]
    %v3418 = vld [vmem:[#allocation8 + $0x68] sm:$0xf]
    %v3419 = vld [vmem:[#allocation8 + $0x6c] sm:$0xf]
    %v3420 = vld [vmem:[#allocation8 + $0x70] sm:$0xf]
    %v3421 = vld [vmem:[#allocation8 + $0x74] sm:$0xf]
    %v3422 = vld [vmem:[#allocation8 + $0x78] sm:$0xf]
    %v3423 = vld [vmem:[#allocation8 + $0x7c] sm:$0xf]
    %v3424 = vld [vmem:[#allocation8 + $0x80] sm:$0xf]
    %v3425 = vld [vmem:[#allocation8 + $0x84] sm:$0xf]
    %v3426 = vld [vmem:[#allocation8 + $0x88] sm:$0xf]
    %v3427 = vld [vmem:[#allocation8 + $0x8c] sm:$0xf]
    %v3428 = vld [vmem:[#allocation8 + $0x90] sm:$0xf]
    %v3429 = vld [vmem:[#allocation8 + $0x94] sm:$0xf]
    %v3430 = vld [vmem:[#allocation8 + $0x98] sm:$0xf]
    %v3431 = vld [vmem:[#allocation8 + $0x9c] sm:$0xf]
    %v3432 = vld [vmem:[#allocation8 + $0xa0] sm:$0xf]
    %v3433 = vld [vmem:[#allocation8 + $0xa4] sm:$0xf]
    %v3434 = vld [vmem:[#allocation8 + $0xa8] sm:$0xf]
    %v3435 = vld [vmem:[#allocation8 + $0xac] sm:$0xf]
    %v3436 = vld [vmem:[#allocation8 + $0xb0] sm:$0xf]
    %v3437 = vld [vmem:[#allocation8 + $0xb4] sm:$0xf]
    %v3438 = vld [vmem:[#allocation8 + $0xb8] sm:$0xf]
    %v3439 = vld [vmem:[#allocation8 + $0xbc] sm:$0xf]
    %v3440 = vld [vmem:[#allocation8 + $0xc0] sm:$0xf]
    %v3441 = vld [vmem:[#allocation8 + $0xc4] sm:$0xf]
    %v3442 = vld [vmem:[#allocation8 + $0xc8] sm:$0xf]
    %v3443 = vld [vmem:[#allocation8 + $0xcc] sm:$0xf]
    %v3444 = vld [vmem:[#allocation8 + $0xd0] sm:$0xf]
    %v3445 = vld [vmem:[#allocation8 + $0xd4] sm:$0xf]
    %v3446 = vld [vmem:[#allocation8 + $0xd8] sm:$0xf]
    %v3447 = vld [vmem:[#allocation8 + $0xdc] sm:$0xf]
    %v3448 = vld [vmem:[#allocation8 + $0xe0] sm:$0xf]
    %v3449 = vld [vmem:[#allocation8 + $0xe4] sm:$0xf]
    %v3450 = vld [vmem:[#allocation8 + $0xe8] sm:$0xf]
    %v3451 = vld [vmem:[#allocation8 + $0xec] sm:$0xf]
    %v3452 = vld [vmem:[#allocation8 + $0xf0] sm:$0xf]
    %v3453 = vld [vmem:[#allocation8 + $0xf4] sm:$0xf]
    %v3454 = vld [vmem:[#allocation8 + $0xf8] sm:$0xf]
    %v3455 = vld [vmem:[#allocation8 + $0xfc] sm:$0xf]
    %v3520 = vunpack.c.l.b16 %v3392
    %v3521 = vunpack.c.l.b16 %v3393
    %v3522 = vunpack.c.l.b16 %v3394
    %v3523 = vunpack.c.l.b16 %v3395
    %v3524 = vunpack.c.l.b16 %v3396
    %v3525 = vunpack.c.l.b16 %v3397
    %v3526 = vunpack.c.l.b16 %v3398
    %v3527 = vunpack.c.l.b16 %v3399
    %v3528 = vunpack.c.l.b16 %v3400
    %v3529 = vunpack.c.l.b16 %v3401
    %v3530 = vunpack.c.l.b16 %v3402
    %v3531 = vunpack.c.l.b16 %v3403
    %v3532 = vunpack.c.l.b16 %v3404
    %v3533 = vunpack.c.l.b16 %v3405
    %v3534 = vunpack.c.l.b16 %v3406
    %v3535 = vunpack.c.l.b16 %v3407
    %v3536 = vunpack.c.l.b16 %v3408
    %v3537 = vunpack.c.l.b16 %v3409
    %v3538 = vunpack.c.l.b16 %v3410
    %v3539 = vunpack.c.l.b16 %v3411
    %v3540 = vunpack.c.l.b16 %v3412
    %v3541 = vunpack.c.l.b16 %v3413
    %v3542 = vunpack.c.l.b16 %v3414
    %v3543 = vunpack.c.l.b16 %v3415
    %v3544 = vunpack.c.l.b16 %v3416
    %v3545 = vunpack.c.l.b16 %v3417
    %v3546 = vunpack.c.l.b16 %v3418
    %v3547 = vunpack.c.l.b16 %v3419
    %v3548 = vunpack.c.l.b16 %v3420
    %v3549 = vunpack.c.l.b16 %v3421
    %v3550 = vunpack.c.l.b16 %v3422
    %v3551 = vunpack.c.l.b16 %v3423
    %v3552 = vunpack.c.l.b16 %v3424
    %v3553 = vunpack.c.l.b16 %v3425
    %v3554 = vunpack.c.l.b16 %v3426
    %v3555 = vunpack.c.l.b16 %v3427
    %v3556 = vunpack.c.l.b16 %v3428
    %v3557 = vunpack.c.l.b16 %v3429
    %v3558 = vunpack.c.l.b16 %v3430
    %v3559 = vunpack.c.l.b16 %v3431
    %v3560 = vunpack.c.l.b16 %v3432
    %v3561 = vunpack.c.l.b16 %v3433
    %v3562 = vunpack.c.l.b16 %v3434
    %v3563 = vunpack.c.l.b16 %v3435
    %v3564 = vunpack.c.l.b16 %v3436
    %v3565 = vunpack.c.l.b16 %v3437
    %v3566 = vunpack.c.l.b16 %v3438
    %v3567 = vunpack.c.l.b16 %v3439
    %v3568 = vunpack.c.l.b16 %v3440
    %v3569 = vunpack.c.l.b16 %v3441
    %v3570 = vunpack.c.l.b16 %v3442
    %v3571 = vunpack.c.l.b16 %v3443
    %v3572 = vunpack.c.l.b16 %v3444
    %v3573 = vunpack.c.l.b16 %v3445
    %v3574 = vunpack.c.l.b16 %v3446
    %v3575 = vunpack.c.l.b16 %v3447
    %v3576 = vunpack.c.l.b16 %v3448
    %v3577 = vunpack.c.l.b16 %v3449
    %v3578 = vunpack.c.l.b16 %v3450
    %v3579 = vunpack.c.l.b16 %v3451
    %v3580 = vunpack.c.l.b16 %v3452
    %v3581 = vunpack.c.l.b16 %v3453
    %v3582 = vunpack.c.l.b16 %v3454
    %v3583 = vunpack.c.l.b16 %v3455
    %v3584 = vpack.c.b16 %v3521, %v3520
    %v3585 = vpack.c.b16 %v3523, %v3522
    %v3586 = vpack.c.b16 %v3525, %v3524
    %v3587 = vpack.c.b16 %v3527, %v3526
    %v3588 = vpack.c.b16 %v3529, %v3528
    %v3589 = vpack.c.b16 %v3531, %v3530
    %v3590 = vpack.c.b16 %v3533, %v3532
    %v3591 = vpack.c.b16 %v3535, %v3534
    %v3592 = vpack.c.b16 %v3537, %v3536
    %v3593 = vpack.c.b16 %v3539, %v3538
    %v3594 = vpack.c.b16 %v3541, %v3540
    %v3595 = vpack.c.b16 %v3543, %v3542
    %v3596 = vpack.c.b16 %v3545, %v3544
    %v3597 = vpack.c.b16 %v3547, %v3546
    %v3598 = vpack.c.b16 %v3549, %v3548
    %v3599 = vpack.c.b16 %v3551, %v3550
    %v3600 = vpack.c.b16 %v3553, %v3552
    %v3601 = vpack.c.b16 %v3555, %v3554
    %v3602 = vpack.c.b16 %v3557, %v3556
    %v3603 = vpack.c.b16 %v3559, %v3558
    %v3604 = vpack.c.b16 %v3561, %v3560
    %v3605 = vpack.c.b16 %v3563, %v3562
    %v3606 = vpack.c.b16 %v3565, %v3564
    %v3607 = vpack.c.b16 %v3567, %v3566
    %v3608 = vpack.c.b16 %v3569, %v3568
    %v3609 = vpack.c.b16 %v3571, %v3570
    %v3610 = vpack.c.b16 %v3573, %v3572
    %v3611 = vpack.c.b16 %v3575, %v3574
    %v3612 = vpack.c.b16 %v3577, %v3576
    %v3613 = vpack.c.b16 %v3579, %v3578
    %v3614 = vpack.c.b16 %v3581, %v3580
    %v3615 = vpack.c.b16 %v3583, %v3582
    %3648 = vmatpush.bf16.msra.mxu0 %v3591
    %3649 = vmatpush.bf16.msra.mxu0 %v3590
    %3650 = vmatpush.bf16.msra.mxu0 %v3589
    %3651 = vmatpush.bf16.msra.mxu0 %v3588
    %3652 = vmatpush.bf16.msra.mxu0 %v3587
    %3653 = vmatpush.bf16.msra.mxu0 %v3586
    %3654 = vmatpush.bf16.msra.mxu0 %v3585
    %3655 = vmatpush.bf16.msra.mxu0 %v3584
    %3656 = vmatmul.bf16.gmra.mxu0 %v3328
    %v3657 = vpop.f32.mrf.mxu0
    %v3658 = vadd.f32 0.0, %v3657
    %v3659 = vpop.f32.mrf.mxu0
    %v3660 = vadd.f32 0.0, %v3659
    %3661 = vmatmul.bf16.gmra.mxu0 %v3332
    %v3662 = vpop.f32.mrf.mxu0
    %v3663 = vadd.f32 0.0, %v3662
    %v3664 = vpop.f32.mrf.mxu0
    %v3665 = vadd.f32 0.0, %v3664
    %3666 = vmatmul.bf16.gmra.mxu0 %v3336
    %v3667 = vpop.f32.mrf.mxu0
    %v3668 = vadd.f32 0.0, %v3667
    %v3669 = vpop.f32.mrf.mxu0
    %v3670 = vadd.f32 0.0, %v3669
    %3671 = vmatmul.bf16.gmra.mxu0 %v3340
    %v3672 = vpop.f32.mrf.mxu0
    %v3673 = vadd.f32 0.0, %v3672
    %v3674 = vpop.f32.mrf.mxu0
    %v3675 = vadd.f32 0.0, %v3674
    %3676 = vmatmul.bf16.gmra.mxu0 %v3344
    %v3677 = vpop.f32.mrf.mxu0
    %v3678 = vadd.f32 0.0, %v3677
    %v3679 = vpop.f32.mrf.mxu0
    %v3680 = vadd.f32 0.0, %v3679
    %3681 = vmatmul.bf16.gmra.mxu0 %v3348
    %v3682 = vpop.f32.mrf.mxu0
    %v3683 = vadd.f32 0.0, %v3682
    %v3684 = vpop.f32.mrf.mxu0
    %v3685 = vadd.f32 0.0, %v3684
    %3686 = vmatmul.bf16.gmra.mxu0 %v3352
    %v3687 = vpop.f32.mrf.mxu0
    %v3688 = vadd.f32 0.0, %v3687
    %v3689 = vpop.f32.mrf.mxu0
    %v3690 = vadd.f32 0.0, %v3689
    %3691 = vmatmul.bf16.gmra.mxu0 %v3356
    %v3692 = vpop.f32.mrf.mxu0
    %v3693 = vadd.f32 0.0, %v3692
    %v3694 = vpop.f32.mrf.mxu0
    %v3695 = vadd.f32 0.0, %v3694
    %3696 = vmatmul.bf16.gmra.mxu0 %v3360
    %v3697 = vpop.f32.mrf.mxu0
    %v3698 = vadd.f32 0.0, %v3697
    %v3699 = vpop.f32.mrf.mxu0
    %v3700 = vadd.f32 0.0, %v3699
    %3701 = vmatmul.bf16.gmra.mxu0 %v3364
    %v3702 = vpop.f32.mrf.mxu0
    %v3703 = vadd.f32 0.0, %v3702
    %v3704 = vpop.f32.mrf.mxu0
    %v3705 = vadd.f32 0.0, %v3704
    %3706 = vmatmul.bf16.gmra.mxu0 %v3368
    %v3707 = vpop.f32.mrf.mxu0
    %v3708 = vadd.f32 0.0, %v3707
    %v3709 = vpop.f32.mrf.mxu0
    %v3710 = vadd.f32 0.0, %v3709
    %3711 = vmatmul.bf16.gmra.mxu0 %v3372
    %v3712 = vpop.f32.mrf.mxu0
    %v3713 = vadd.f32 0.0, %v3712
    %v3714 = vpop.f32.mrf.mxu0
    %v3715 = vadd.f32 0.0, %v3714
    %3716 = vmatmul.bf16.gmra.mxu0 %v3376
    %v3717 = vpop.f32.mrf.mxu0
    %v3718 = vadd.f32 0.0, %v3717
    %v3719 = vpop.f32.mrf.mxu0
    %v3720 = vadd.f32 0.0, %v3719
    %3721 = vmatmul.bf16.gmra.mxu0 %v3380
    %v3722 = vpop.f32.mrf.mxu0
    %v3723 = vadd.f32 0.0, %v3722
    %v3724 = vpop.f32.mrf.mxu0
    %v3725 = vadd.f32 0.0, %v3724
    %3726 = vmatmul.bf16.gmra.mxu0 %v3384
    %v3727 = vpop.f32.mrf.mxu0
    %v3728 = vadd.f32 0.0, %v3727
    %v3729 = vpop.f32.mrf.mxu0
    %v3730 = vadd.f32 0.0, %v3729
    %3731 = vmatmul.bf16.gmra.mxu0 %v3388
    %v3732 = vpop.f32.mrf.mxu0
    %v3733 = vadd.f32 0.0, %v3732
    %v3734 = vpop.f32.mrf.mxu0
    %v3735 = vadd.f32 0.0, %v3734
    %3736 = vdwg.mxu0
    %3737 = vmatpush.bf16.msra.mxu0 %v3599
    %3738 = vmatpush.bf16.msra.mxu0 %v3598
    %3739 = vmatpush.bf16.msra.mxu0 %v3597
    %3740 = vmatpush.bf16.msra.mxu0 %v3596
    %3741 = vmatpush.bf16.msra.mxu0 %v3595
    %3742 = vmatpush.bf16.msra.mxu0 %v3594
    %3743 = vmatpush.bf16.msra.mxu0 %v3593
    %3744 = vmatpush.bf16.msra.mxu0 %v3592
    %3745 = vmatmul.bf16.gmra.mxu0 %v3329
    %v3746 = vpop.f32.mrf.mxu0
    %v3747 = vadd.f32 %v3658, %v3746
    %v3748 = vpop.f32.mrf.mxu0
    %v3749 = vadd.f32 %v3660, %v3748
    %3750 = vmatmul.bf16.gmra.mxu0 %v3333
    %v3751 = vpop.f32.mrf.mxu0
    %v3752 = vadd.f32 %v3663, %v3751
    %v3753 = vpop.f32.mrf.mxu0
    %v3754 = vadd.f32 %v3665, %v3753
    %3755 = vmatmul.bf16.gmra.mxu0 %v3337
    %v3756 = vpop.f32.mrf.mxu0
    %v3757 = vadd.f32 %v3668, %v3756
    %v3758 = vpop.f32.mrf.mxu0
    %v3759 = vadd.f32 %v3670, %v3758
    %3760 = vmatmul.bf16.gmra.mxu0 %v3341
    %v3761 = vpop.f32.mrf.mxu0
    %v3762 = vadd.f32 %v3673, %v3761
    %v3763 = vpop.f32.mrf.mxu0
    %v3764 = vadd.f32 %v3675, %v3763
    %3765 = vmatmul.bf16.gmra.mxu0 %v3345
    %v3766 = vpop.f32.mrf.mxu0
    %v3767 = vadd.f32 %v3678, %v3766
    %v3768 = vpop.f32.mrf.mxu0
    %v3769 = vadd.f32 %v3680, %v3768
    %3770 = vmatmul.bf16.gmra.mxu0 %v3349
    %v3771 = vpop.f32.mrf.mxu0
    %v3772 = vadd.f32 %v3683, %v3771
    %v3773 = vpop.f32.mrf.mxu0
    %v3774 = vadd.f32 %v3685, %v3773
    %3775 = vmatmul.bf16.gmra.mxu0 %v3353
    %v3776 = vpop.f32.mrf.mxu0
    %v3777 = vadd.f32 %v3688, %v3776
    %v3778 = vpop.f32.mrf.mxu0
    %v3779 = vadd.f32 %v3690, %v3778
    %3780 = vmatmul.bf16.gmra.mxu0 %v3357
    %v3781 = vpop.f32.mrf.mxu0
    %v3782 = vadd.f32 %v3693, %v3781
    %v3783 = vpop.f32.mrf.mxu0
    %v3784 = vadd.f32 %v3695, %v3783
    %3785 = vmatmul.bf16.gmra.mxu0 %v3361
    %v3786 = vpop.f32.mrf.mxu0
    %v3787 = vadd.f32 %v3698, %v3786
    %v3788 = vpop.f32.mrf.mxu0
    %v3789 = vadd.f32 %v3700, %v3788
    %3790 = vmatmul.bf16.gmra.mxu0 %v3365
    %v3791 = vpop.f32.mrf.mxu0
    %v3792 = vadd.f32 %v3703, %v3791
    %v3793 = vpop.f32.mrf.mxu0
    %v3794 = vadd.f32 %v3705, %v3793
    %3795 = vmatmul.bf16.gmra.mxu0 %v3369
    %v3796 = vpop.f32.mrf.mxu0
    %v3797 = vadd.f32 %v3708, %v3796
    %v3798 = vpop.f32.mrf.mxu0
    %v3799 = vadd.f32 %v3710, %v3798
    %3800 = vmatmul.bf16.gmra.mxu0 %v3373
    %v3801 = vpop.f32.mrf.mxu0
    %v3802 = vadd.f32 %v3713, %v3801
    %v3803 = vpop.f32.mrf.mxu0
    %v3804 = vadd.f32 %v3715, %v3803
    %3805 = vmatmul.bf16.gmra.mxu0 %v3377
    %v3806 = vpop.f32.mrf.mxu0
    %v3807 = vadd.f32 %v3718, %v3806
    %v3808 = vpop.f32.mrf.mxu0
    %v3809 = vadd.f32 %v3720, %v3808
    %3810 = vmatmul.bf16.gmra.mxu0 %v3381
    %v3811 = vpop.f32.mrf.mxu0
    %v3812 = vadd.f32 %v3723, %v3811
    %v3813 = vpop.f32.mrf.mxu0
    %v3814 = vadd.f32 %v3725, %v3813
    %3815 = vmatmul.bf16.gmra.mxu0 %v3385
    %v3816 = vpop.f32.mrf.mxu0
    %v3817 = vadd.f32 %v3728, %v3816
    %v3818 = vpop.f32.mrf.mxu0
    %v3819 = vadd.f32 %v3730, %v3818
    %3820 = vmatmul.bf16.gmra.mxu0 %v3389
    %v3821 = vpop.f32.mrf.mxu0
    %v3822 = vadd.f32 %v3733, %v3821
    %v3823 = vpop.f32.mrf.mxu0
    %v3824 = vadd.f32 %v3735, %v3823
    %3825 = vdwg.mxu0
    %3826 = vmatpush.bf16.msra.mxu0 %v3607
    %3827 = vmatpush.bf16.msra.mxu0 %v3606
    %3828 = vmatpush.bf16.msra.mxu0 %v3605
    %3829 = vmatpush.bf16.msra.mxu0 %v3604
    %3830 = vmatpush.bf16.msra.mxu0 %v3603
    %3831 = vmatpush.bf16.msra.mxu0 %v3602
    %3832 = vmatpush.bf16.msra.mxu0 %v3601
    %3833 = vmatpush.bf16.msra.mxu0 %v3600
    %3834 = vmatmul.bf16.gmra.mxu0 %v3330
    %v3835 = vpop.f32.mrf.mxu0
    %v3836 = vadd.f32 %v3747, %v3835
    %v3837 = vpop.f32.mrf.mxu0
    %v3838 = vadd.f32 %v3749, %v3837
    %3839 = vmatmul.bf16.gmra.mxu0 %v3334
    %v3840 = vpop.f32.mrf.mxu0
    %v3841 = vadd.f32 %v3752, %v3840
    %v3842 = vpop.f32.mrf.mxu0
    %v3843 = vadd.f32 %v3754, %v3842
    %3844 = vmatmul.bf16.gmra.mxu0 %v3338
    %v3845 = vpop.f32.mrf.mxu0
    %v3846 = vadd.f32 %v3757, %v3845
    %v3847 = vpop.f32.mrf.mxu0
    %v3848 = vadd.f32 %v3759, %v3847
    %3849 = vmatmul.bf16.gmra.mxu0 %v3342
    %v3850 = vpop.f32.mrf.mxu0
    %v3851 = vadd.f32 %v3762, %v3850
    %v3852 = vpop.f32.mrf.mxu0
    %v3853 = vadd.f32 %v3764, %v3852
    %3854 = vmatmul.bf16.gmra.mxu0 %v3346
    %v3855 = vpop.f32.mrf.mxu0
    %v3856 = vadd.f32 %v3767, %v3855
    %v3857 = vpop.f32.mrf.mxu0
    %v3858 = vadd.f32 %v3769, %v3857
    %3859 = vmatmul.bf16.gmra.mxu0 %v3350
    %v3860 = vpop.f32.mrf.mxu0
    %v3861 = vadd.f32 %v3772, %v3860
    %v3862 = vpop.f32.mrf.mxu0
    %v3863 = vadd.f32 %v3774, %v3862
    %3864 = vmatmul.bf16.gmra.mxu0 %v3354
    %v3865 = vpop.f32.mrf.mxu0
    %v3866 = vadd.f32 %v3777, %v3865
    %v3867 = vpop.f32.mrf.mxu0
    %v3868 = vadd.f32 %v3779, %v3867
    %3869 = vmatmul.bf16.gmra.mxu0 %v3358
    %v3870 = vpop.f32.mrf.mxu0
    %v3871 = vadd.f32 %v3782, %v3870
    %v3872 = vpop.f32.mrf.mxu0
    %v3873 = vadd.f32 %v3784, %v3872
    %3874 = vmatmul.bf16.gmra.mxu0 %v3362
    %v3875 = vpop.f32.mrf.mxu0
    %v3876 = vadd.f32 %v3787, %v3875
    %v3877 = vpop.f32.mrf.mxu0
    %v3878 = vadd.f32 %v3789, %v3877
    %3879 = vmatmul.bf16.gmra.mxu0 %v3366
    %v3880 = vpop.f32.mrf.mxu0
    %v3881 = vadd.f32 %v3792, %v3880
    %v3882 = vpop.f32.mrf.mxu0
    %v3883 = vadd.f32 %v3794, %v3882
    %3884 = vmatmul.bf16.gmra.mxu0 %v3370
    %v3885 = vpop.f32.mrf.mxu0
    %v3886 = vadd.f32 %v3797, %v3885
    %v3887 = vpop.f32.mrf.mxu0
    %v3888 = vadd.f32 %v3799, %v3887
    %3889 = vmatmul.bf16.gmra.mxu0 %v3374
    %v3890 = vpop.f32.mrf.mxu0
    %v3891 = vadd.f32 %v3802, %v3890
    %v3892 = vpop.f32.mrf.mxu0
    %v3893 = vadd.f32 %v3804, %v3892
    %3894 = vmatmul.bf16.gmra.mxu0 %v3378
    %v3895 = vpop.f32.mrf.mxu0
    %v3896 = vadd.f32 %v3807, %v3895
    %v3897 = vpop.f32.mrf.mxu0
    %v3898 = vadd.f32 %v3809, %v3897
    %3899 = vmatmul.bf16.gmra.mxu0 %v3382
    %v3900 = vpop.f32.mrf.mxu0
    %v3901 = vadd.f32 %v3812, %v3900
    %v3902 = vpop.f32.mrf.mxu0
    %v3903 = vadd.f32 %v3814, %v3902
    %3904 = vmatmul.bf16.gmra.mxu0 %v3386
    %v3905 = vpop.f32.mrf.mxu0
    %v3906 = vadd.f32 %v3817, %v3905
    %v3907 = vpop.f32.mrf.mxu0
    %v3908 = vadd.f32 %v3819, %v3907
    %3909 = vmatmul.bf16.gmra.mxu0 %v3390
    %v3910 = vpop.f32.mrf.mxu0
    %v3911 = vadd.f32 %v3822, %v3910
    %v3912 = vpop.f32.mrf.mxu0
    %v3913 = vadd.f32 %v3824, %v3912
    %3914 = vdwg.mxu0
    %3915 = vmatpush.bf16.msra.mxu0 %v3615
    %3916 = vmatpush.bf16.msra.mxu0 %v3614
    %3917 = vmatpush.bf16.msra.mxu0 %v3613
    %3918 = vmatpush.bf16.msra.mxu0 %v3612
    %3919 = vmatpush.bf16.msra.mxu0 %v3611
    %3920 = vmatpush.bf16.msra.mxu0 %v3610
    %3921 = vmatpush.bf16.msra.mxu0 %v3609
    %3922 = vmatpush.bf16.msra.mxu0 %v3608
    %3923 = vmatmul.bf16.gmra.mxu0 %v3331
    %v3924 = vpop.f32.mrf.mxu0
    %v3925 = vadd.f32 %v3836, %v3924
    %v3926 = vpop.f32.mrf.mxu0
    %v3927 = vadd.f32 %v3838, %v3926
    %3928 = vmatmul.bf16.gmra.mxu0 %v3335
    %v3929 = vpop.f32.mrf.mxu0
    %v3930 = vadd.f32 %v3841, %v3929
    %v3931 = vpop.f32.mrf.mxu0
    %v3932 = vadd.f32 %v3843, %v3931
    %3933 = vmatmul.bf16.gmra.mxu0 %v3339
    %v3934 = vpop.f32.mrf.mxu0
    %v3935 = vadd.f32 %v3846, %v3934
    %v3936 = vpop.f32.mrf.mxu0
    %v3937 = vadd.f32 %v3848, %v3936
    %3938 = vmatmul.bf16.gmra.mxu0 %v3343
    %v3939 = vpop.f32.mrf.mxu0
    %v3940 = vadd.f32 %v3851, %v3939
    %v3941 = vpop.f32.mrf.mxu0
    %v3942 = vadd.f32 %v3853, %v3941
    %3943 = vmatmul.bf16.gmra.mxu0 %v3347
    %v3944 = vpop.f32.mrf.mxu0
    %v3945 = vadd.f32 %v3856, %v3944
    %v3946 = vpop.f32.mrf.mxu0
    %v3947 = vadd.f32 %v3858, %v3946
    %3948 = vmatmul.bf16.gmra.mxu0 %v3351
    %v3949 = vpop.f32.mrf.mxu0
    %v3950 = vadd.f32 %v3861, %v3949
    %v3951 = vpop.f32.mrf.mxu0
    %v3952 = vadd.f32 %v3863, %v3951
    %3953 = vmatmul.bf16.gmra.mxu0 %v3355
    %v3954 = vpop.f32.mrf.mxu0
    %v3955 = vadd.f32 %v3866, %v3954
    %v3956 = vpop.f32.mrf.mxu0
    %v3957 = vadd.f32 %v3868, %v3956
    %3958 = vmatmul.bf16.gmra.mxu0 %v3359
    %v3959 = vpop.f32.mrf.mxu0
    %v3960 = vadd.f32 %v3871, %v3959
    %v3961 = vpop.f32.mrf.mxu0
    %v3962 = vadd.f32 %v3873, %v3961
    %3963 = vmatmul.bf16.gmra.mxu0 %v3363
    %v3964 = vpop.f32.mrf.mxu0
    %v3965 = vadd.f32 %v3876, %v3964
    %v3966 = vpop.f32.mrf.mxu0
    %v3967 = vadd.f32 %v3878, %v3966
    %3968 = vmatmul.bf16.gmra.mxu0 %v3367
    %v3969 = vpop.f32.mrf.mxu0
    %v3970 = vadd.f32 %v3881, %v3969
    %v3971 = vpop.f32.mrf.mxu0
    %v3972 = vadd.f32 %v3883, %v3971
    %3973 = vmatmul.bf16.gmra.mxu0 %v3371
    %v3974 = vpop.f32.mrf.mxu0
    %v3975 = vadd.f32 %v3886, %v3974
    %v3976 = vpop.f32.mrf.mxu0
    %v3977 = vadd.f32 %v3888, %v3976
    %3978 = vmatmul.bf16.gmra.mxu0 %v3375
    %v3979 = vpop.f32.mrf.mxu0
    %v3980 = vadd.f32 %v3891, %v3979
    %v3981 = vpop.f32.mrf.mxu0
    %v3982 = vadd.f32 %v3893, %v3981
    %3983 = vmatmul.bf16.gmra.mxu0 %v3379
    %v3984 = vpop.f32.mrf.mxu0
    %v3985 = vadd.f32 %v3896, %v3984
    %v3986 = vpop.f32.mrf.mxu0
    %v3987 = vadd.f32 %v3898, %v3986
    %3988 = vmatmul.bf16.gmra.mxu0 %v3383
    %v3989 = vpop.f32.mrf.mxu0
    %v3990 = vadd.f32 %v3901, %v3989
    %v3991 = vpop.f32.mrf.mxu0
    %v3992 = vadd.f32 %v3903, %v3991
    %3993 = vmatmul.bf16.gmra.mxu0 %v3387
    %v3994 = vpop.f32.mrf.mxu0
    %v3995 = vadd.f32 %v3906, %v3994
    %v3996 = vpop.f32.mrf.mxu0
    %v3997 = vadd.f32 %v3908, %v3996
    %3998 = vmatmul.bf16.gmra.mxu0 %v3391
    %v3999 = vpop.f32.mrf.mxu0
    %v4000 = vadd.f32 %v3911, %v3999
    %v4001 = vpop.f32.mrf.mxu0
    %v4002 = vadd.f32 %v3913, %v4001
    %4003 = vdwg.mxu0
    %p4004 = scmp.eq.s32.totalorder 0, 0
    // Predicated region
    $region38: #{tpu_custom_call.1} parent=1 // pred_check
      %p4005 = pneg %p4004
    $region39: #{tpu_custom_call.1} parent=1 // pred_check_branch
      %4007 = sbr.rel (%p4005) target = $region41
    $region40: #{tpu_custom_call.1} parent=1 // pred_region
      %4008 = vst [vmem:[#allocation10] sm:$0xff] %v3925
      %4009 = vst [vmem:[#allocation10 + $0x8] sm:$0xff] %v3927
      %4010 = vst [vmem:[#allocation10 + $0x10] sm:$0xff] %v3930
      %4011 = vst [vmem:[#allocation10 + $0x18] sm:$0xff] %v3932
      %4012 = vst [vmem:[#allocation10 + $0x20] sm:$0xff] %v3935
      %4013 = vst [vmem:[#allocation10 + $0x28] sm:$0xff] %v3937
      %4014 = vst [vmem:[#allocation10 + $0x30] sm:$0xff] %v3940
      %4015 = vst [vmem:[#allocation10 + $0x38] sm:$0xff] %v3942
      %4016 = vst [vmem:[#allocation10 + $0x40] sm:$0xff] %v3945
      %4017 = vst [vmem:[#allocation10 + $0x48] sm:$0xff] %v3947
      %4018 = vst [vmem:[#allocation10 + $0x50] sm:$0xff] %v3950
      %4019 = vst [vmem:[#allocation10 + $0x58] sm:$0xff] %v3952
      %4020 = vst [vmem:[#allocation10 + $0x60] sm:$0xff] %v3955
      %4021 = vst [vmem:[#allocation10 + $0x68] sm:$0xff] %v3957
      %4022 = vst [vmem:[#allocation10 + $0x70] sm:$0xff] %v3960
      %4023 = vst [vmem:[#allocation10 + $0x78] sm:$0xff] %v3962
      %4024 = vst [vmem:[#allocation10 + $0x80] sm:$0xff] %v3965
      %4025 = vst [vmem:[#allocation10 + $0x88] sm:$0xff] %v3967
      %4026 = vst [vmem:[#allocation10 + $0x90] sm:$0xff] %v3970
      %4027 = vst [vmem:[#allocation10 + $0x98] sm:$0xff] %v3972
      %4028 = vst [vmem:[#allocation10 + $0xa0] sm:$0xff] %v3975
      %4029 = vst [vmem:[#allocation10 + $0xa8] sm:$0xff] %v3977
      %4030 = vst [vmem:[#allocation10 + $0xb0] sm:$0xff] %v3980
      %4031 = vst [vmem:[#allocation10 + $0xb8] sm:$0xff] %v3982
      %4032 = vst [vmem:[#allocation10 + $0xc0] sm:$0xff] %v3985
      %4033 = vst [vmem:[#allocation10 + $0xc8] sm:$0xff] %v3987
      %4034 = vst [vmem:[#allocation10 + $0xd0] sm:$0xff] %v3990
      %4035 = vst [vmem:[#allocation10 + $0xd8] sm:$0xff] %v3992
      %4036 = vst [vmem:[#allocation10 + $0xe0] sm:$0xff] %v3995
      %4037 = vst [vmem:[#allocation10 + $0xe8] sm:$0xff] %v3997
      %4038 = vst [vmem:[#allocation10 + $0xf0] sm:$0xff] %v4000
      %4039 = vst [vmem:[#allocation10 + $0xf8] sm:$0xff] %v4002
    $region41: #{tpu_custom_call.1} parent=1 // pred_fallthru
      _
    %p4040 = scmp.ne.s32.totalorder 0, 0
    // Predicated region
    $region42: #{tpu_custom_call.1} parent=1 // pred_check
      %p4041 = pneg %p4040
    $region43: #{tpu_custom_call.1} parent=1 // pred_check_branch
      %4043 = sbr.rel (%p4041) target = $region45
    $region44: #{tpu_custom_call.1} parent=1 // pred_region
      %v4044 = vld [vmem:[#allocation10] sm:$0xff]
      %v4045 = vld [vmem:[#allocation10 + $0x8] sm:$0xff]
      %v4046 = vld [vmem:[#allocation10 + $0x10] sm:$0xff]
      %v4047 = vld [vmem:[#allocation10 + $0x18] sm:$0xff]
      %v4048 = vld [vmem:[#allocation10 + $0x20] sm:$0xff]
      %v4049 = vld [vmem:[#allocation10 + $0x28] sm:$0xff]
      %v4050 = vld [vmem:[#allocation10 + $0x30] sm:$0xff]
      %v4051 = vld [vmem:[#allocation10 + $0x38] sm:$0xff]
      %v4052 = vld [vmem:[#allocation10 + $0x40] sm:$0xff]
      %v4053 = vld [vmem:[#allocation10 + $0x48] sm:$0xff]
      %v4054 = vld [vmem:[#allocation10 + $0x50] sm:$0xff]
      %v4055 = vld [vmem:[#allocation10 + $0x58] sm:$0xff]
      %v4056 = vld [vmem:[#allocation10 + $0x60] sm:$0xff]
      %v4057 = vld [vmem:[#allocation10 + $0x68] sm:$0xff]
      %v4058 = vld [vmem:[#allocation10 + $0x70] sm:$0xff]
      %v4059 = vld [vmem:[#allocation10 + $0x78] sm:$0xff]
      %v4060 = vld [vmem:[#allocation10 + $0x80] sm:$0xff]
      %v4061 = vld [vmem:[#allocation10 + $0x88] sm:$0xff]
      %v4062 = vld [vmem:[#allocation10 + $0x90] sm:$0xff]
      %v4063 = vld [vmem:[#allocation10 + $0x98] sm:$0xff]
      %v4064 = vld [vmem:[#allocation10 + $0xa0] sm:$0xff]
      %v4065 = vld [vmem:[#allocation10 + $0xa8] sm:$0xff]
      %v4066 = vld [vmem:[#allocation10 + $0xb0] sm:$0xff]
      %v4067 = vld [vmem:[#allocation10 + $0xb8] sm:$0xff]
      %v4068 = vld [vmem:[#allocation10 + $0xc0] sm:$0xff]
      %v4069 = vld [vmem:[#allocation10 + $0xc8] sm:$0xff]
      %v4070 = vld [vmem:[#allocation10 + $0xd0] sm:$0xff]
      %v4071 = vld [vmem:[#allocation10 + $0xd8] sm:$0xff]
      %v4072 = vld [vmem:[#allocation10 + $0xe0] sm:$0xff]
      %v4073 = vld [vmem:[#allocation10 + $0xe8] sm:$0xff]
      %v4074 = vld [vmem:[#allocation10 + $0xf0] sm:$0xff]
      %v4075 = vld [vmem:[#allocation10 + $0xf8] sm:$0xff]
      %v4076 = vadd.f32 %v4044, %v3925
      %v4077 = vadd.f32 %v4045, %v3927
      %v4078 = vadd.f32 %v4046, %v3930
      %v4079 = vadd.f32 %v4047, %v3932
      %v4080 = vadd.f32 %v4048, %v3935
      %v4081 = vadd.f32 %v4049, %v3937
      %v4082 = vadd.f32 %v4050, %v3940
      %v4083 = vadd.f32 %v4051, %v3942
      %v4084 = vadd.f32 %v4052, %v3945
      %v4085 = vadd.f32 %v4053, %v3947
      %v4086 = vadd.f32 %v4054, %v3950
      %v4087 = vadd.f32 %v4055, %v3952
      %v4088 = vadd.f32 %v4056, %v3955
      %v4089 = vadd.f32 %v4057, %v3957
      %v4090 = vadd.f32 %v4058, %v3960
      %v4091 = vadd.f32 %v4059, %v3962
      %v4092 = vadd.f32 %v4060, %v3965
      %v4093 = vadd.f32 %v4061, %v3967
      %v4094 = vadd.f32 %v4062, %v3970
      %v4095 = vadd.f32 %v4063, %v3972
      %v4096 = vadd.f32 %v4064, %v3975
      %v4097 = vadd.f32 %v4065, %v3977
      %v4098 = vadd.f32 %v4066, %v3980
      %v4099 = vadd.f32 %v4067, %v3982
      %v4100 = vadd.f32 %v4068, %v3985
      %v4101 = vadd.f32 %v4069, %v3987
      %v4102 = vadd.f32 %v4070, %v3990
      %v4103 = vadd.f32 %v4071, %v3992
      %v4104 = vadd.f32 %v4072, %v3995
      %v4105 = vadd.f32 %v4073, %v3997
      %v4106 = vadd.f32 %v4074, %v4000
      %v4107 = vadd.f32 %v4075, %v4002
      %4108 = vst [vmem:[#allocation10] sm:$0xff] %v4076
      %4109 = vst [vmem:[#allocation10 + $0x8] sm:$0xff] %v4077
      %4110 = vst [vmem:[#allocation10 + $0x10] sm:$0xff] %v4078
      %4111 = vst [vmem:[#allocation10 + $0x18] sm:$0xff] %v4079
      %4112 = vst [vmem:[#allocation10 + $0x20] sm:$0xff] %v4080
      %4113 = vst [vmem:[#allocation10 + $0x28] sm:$0xff] %v4081
      %4114 = vst [vmem:[#allocation10 + $0x30] sm:$0xff] %v4082
      %4115 = vst [vmem:[#allocation10 + $0x38] sm:$0xff] %v4083
      %4116 = vst [vmem:[#allocation10 + $0x40] sm:$0xff] %v4084
      %4117 = vst [vmem:[#allocation10 + $0x48] sm:$0xff] %v4085
      %4118 = vst [vmem:[#allocation10 + $0x50] sm:$0xff] %v4086
      %4119 = vst [vmem:[#allocation10 + $0x58] sm:$0xff] %v4087
      %4120 = vst [vmem:[#allocation10 + $0x60] sm:$0xff] %v4088
      %4121 = vst [vmem:[#allocation10 + $0x68] sm:$0xff] %v4089
      %4122 = vst [vmem:[#allocation10 + $0x70] sm:$0xff] %v4090
      %4123 = vst [vmem:[#allocation10 + $0x78] sm:$0xff] %v4091
      %4124 = vst [vmem:[#allocation10 + $0x80] sm:$0xff] %v4092
      %4125 = vst [vmem:[#allocation10 + $0x88] sm:$0xff] %v4093
      %4126 = vst [vmem:[#allocation10 + $0x90] sm:$0xff] %v4094
      %4127 = vst [vmem:[#allocation10 + $0x98] sm:$0xff] %v4095
      %4128 = vst [vmem:[#allocation10 + $0xa0] sm:$0xff] %v4096
      %4129 = vst [vmem:[#allocation10 + $0xa8] sm:$0xff] %v4097
      %4130 = vst [vmem:[#allocation10 + $0xb0] sm:$0xff] %v4098
      %4131 = vst [vmem:[#allocation10 + $0xb8] sm:$0xff] %v4099
      %4132 = vst [vmem:[#allocation10 + $0xc0] sm:$0xff] %v4100
      %4133 = vst [vmem:[#allocation10 + $0xc8] sm:$0xff] %v4101
      %4134 = vst [vmem:[#allocation10 + $0xd0] sm:$0xff] %v4102
      %4135 = vst [vmem:[#allocation10 + $0xd8] sm:$0xff] %v4103
      %4136 = vst [vmem:[#allocation10 + $0xe0] sm:$0xff] %v4104
      %4137 = vst [vmem:[#allocation10 + $0xe8] sm:$0xff] %v4105
      %4138 = vst [vmem:[#allocation10 + $0xf0] sm:$0xff] %v4106
      %4139 = vst [vmem:[#allocation10 + $0xf8] sm:$0xff] %v4107
    $region45: #{tpu_custom_call.1} parent=1 // pred_fallthru
      _
    // Predicated region
    $region46: #{tpu_custom_call.1} parent=1 // pred_check
      %p4140 = pneg %p4004
    $region47: #{tpu_custom_call.1} parent=1 // pred_check_branch
      %4142 = sbr.rel (%p4140) target = $region49
    $region48: #{tpu_custom_call.1} parent=1 // pred_region
      %v4143 = vld [vmem:[#allocation10] sm:$0xff]
      %v4144 = vld [vmem:[#allocation10 + $0x8] sm:$0xff]
      %v4145 = vld [vmem:[#allocation10 + $0x10] sm:$0xff]
      %v4146 = vld [vmem:[#allocation10 + $0x18] sm:$0xff]
      %v4147 = vld [vmem:[#allocation10 + $0x20] sm:$0xff]
      %v4148 = vld [vmem:[#allocation10 + $0x28] sm:$0xff]
      %v4149 = vld [vmem:[#allocation10 + $0x30] sm:$0xff]
      %v4150 = vld [vmem:[#allocation10 + $0x38] sm:$0xff]
      %v4151 = vld [vmem:[#allocation10 + $0x40] sm:$0xff]
      %v4152 = vld [vmem:[#allocation10 + $0x48] sm:$0xff]
      %v4153 = vld [vmem:[#allocation10 + $0x50] sm:$0xff]
      %v4154 = vld [vmem:[#allocation10 + $0x58] sm:$0xff]
      %v4155 = vld [vmem:[#allocation10 + $0x60] sm:$0xff]
      %v4156 = vld [vmem:[#allocation10 + $0x68] sm:$0xff]
      %v4157 = vld [vmem:[#allocation10 + $0x70] sm:$0xff]
      %v4158 = vld [vmem:[#allocation10 + $0x78] sm:$0xff]
      %v4159 = vld [vmem:[#allocation10 + $0x80] sm:$0xff]
      %v4160 = vld [vmem:[#allocation10 + $0x88] sm:$0xff]
      %v4161 = vld [vmem:[#allocation10 + $0x90] sm:$0xff]
      %v4162 = vld [vmem:[#allocation10 + $0x98] sm:$0xff]
      %v4163 = vld [vmem:[#allocation10 + $0xa0] sm:$0xff]
      %v4164 = vld [vmem:[#allocation10 + $0xa8] sm:$0xff]
      %v4165 = vld [vmem:[#allocation10 + $0xb0] sm:$0xff]
      %v4166 = vld [vmem:[#allocation10 + $0xb8] sm:$0xff]
      %v4167 = vld [vmem:[#allocation10 + $0xc0] sm:$0xff]
      %v4168 = vld [vmem:[#allocation10 + $0xc8] sm:$0xff]
      %v4169 = vld [vmem:[#allocation10 + $0xd0] sm:$0xff]
      %v4170 = vld [vmem:[#allocation10 + $0xd8] sm:$0xff]
      %v4171 = vld [vmem:[#allocation10 + $0xe0] sm:$0xff]
      %v4172 = vld [vmem:[#allocation10 + $0xe8] sm:$0xff]
      %v4173 = vld [vmem:[#allocation10 + $0xf0] sm:$0xff]
      %v4174 = vld [vmem:[#allocation10 + $0xf8] sm:$0xff]
      %v4175 = vld [vmem:[%s4] sm:$0x1]
      %v4177 = vperm.slane %v4175, 0
      %v4179 = vadd.f32 %v4143, %v4177
      %v4180 = vadd.f32 %v4144, %v4177
      %v4181 = vadd.f32 %v4145, %v4177
      %v4182 = vadd.f32 %v4146, %v4177
      %v4183 = vadd.f32 %v4147, %v4177
      %v4184 = vadd.f32 %v4148, %v4177
      %v4185 = vadd.f32 %v4149, %v4177
      %v4186 = vadd.f32 %v4150, %v4177
      %v4187 = vadd.f32 %v4151, %v4177
      %v4188 = vadd.f32 %v4152, %v4177
      %v4189 = vadd.f32 %v4153, %v4177
      %v4190 = vadd.f32 %v4154, %v4177
      %v4191 = vadd.f32 %v4155, %v4177
      %v4192 = vadd.f32 %v4156, %v4177
      %v4193 = vadd.f32 %v4157, %v4177
      %v4194 = vadd.f32 %v4158, %v4177
      %v4195 = vadd.f32 %v4159, %v4177
      %v4196 = vadd.f32 %v4160, %v4177
      %v4197 = vadd.f32 %v4161, %v4177
      %v4198 = vadd.f32 %v4162, %v4177
      %v4199 = vadd.f32 %v4163, %v4177
      %v4200 = vadd.f32 %v4164, %v4177
      %v4201 = vadd.f32 %v4165, %v4177
      %v4202 = vadd.f32 %v4166, %v4177
      %v4203 = vadd.f32 %v4167, %v4177
      %v4204 = vadd.f32 %v4168, %v4177
      %v4205 = vadd.f32 %v4169, %v4177
      %v4206 = vadd.f32 %v4170, %v4177
      %v4207 = vadd.f32 %v4171, %v4177
      %v4208 = vadd.f32 %v4172, %v4177
      %v4209 = vadd.f32 %v4173, %v4177
      %v4210 = vadd.f32 %v4174, %v4177
      %4211 = vst [vmem:[#allocation10] sm:$0xff] %v4179
      %4212 = vst [vmem:[#allocation10 + $0x8] sm:$0xff] %v4180
      %4213 = vst [vmem:[#allocation10 + $0x10] sm:$0xff] %v4181
      %4214 = vst [vmem:[#allocation10 + $0x18] sm:$0xff] %v4182
      %4215 = vst [vmem:[#allocation10 + $0x20] sm:$0xff] %v4183
      %4216 = vst [vmem:[#allocation10 + $0x28] sm:$0xff] %v4184
      %4217 = vst [vmem:[#allocation10 + $0x30] sm:$0xff] %v4185
      %4218 = vst [vmem:[#allocation10 + $0x38] sm:$0xff] %v4186
      %4219 = vst [vmem:[#allocation10 + $0x40] sm:$0xff] %v4187
      %4220 = vst [vmem:[#allocation10 + $0x48] sm:$0xff] %v4188
      %4221 = vst [vmem:[#allocation10 + $0x50] sm:$0xff] %v4189
      %4222 = vst [vmem:[#allocation10 + $0x58] sm:$0xff] %v4190
      %4223 = vst [vmem:[#allocation10 + $0x60] sm:$0xff] %v4191
      %4224 = vst [vmem:[#allocation10 + $0x68] sm:$0xff] %v4192
      %4225 = vst [vmem:[#allocation10 + $0x70] sm:$0xff] %v4193
      %4226 = vst [vmem:[#allocation10 + $0x78] sm:$0xff] %v4194
      %4227 = vst [vmem:[#allocation10 + $0x80] sm:$0xff] %v4195
      %4228 = vst [vmem:[#allocation10 + $0x88] sm:$0xff] %v4196
      %4229 = vst [vmem:[#allocation10 + $0x90] sm:$0xff] %v4197
      %4230 = vst [vmem:[#allocation10 + $0x98] sm:$0xff] %v4198
      %4231 = vst [vmem:[#allocation10 + $0xa0] sm:$0xff] %v4199
      %4232 = vst [vmem:[#allocation10 + $0xa8] sm:$0xff] %v4200
      %4233 = vst [vmem:[#allocation10 + $0xb0] sm:$0xff] %v4201
      %4234 = vst [vmem:[#allocation10 + $0xb8] sm:$0xff] %v4202
      %4235 = vst [vmem:[#allocation10 + $0xc0] sm:$0xff] %v4203
      %4236 = vst [vmem:[#allocation10 + $0xc8] sm:$0xff] %v4204
      %4237 = vst [vmem:[#allocation10 + $0xd0] sm:$0xff] %v4205
      %4238 = vst [vmem:[#allocation10 + $0xd8] sm:$0xff] %v4206
      %4239 = vst [vmem:[#allocation10 + $0xe0] sm:$0xff] %v4207
      %4240 = vst [vmem:[#allocation10 + $0xe8] sm:$0xff] %v4208
      %4241 = vst [vmem:[#allocation10 + $0xf0] sm:$0xff] %v4209
      %4242 = vst [vmem:[#allocation10 + $0xf8] sm:$0xff] %v4210
    $region49: #{tpu_custom_call.1} parent=1 // pred_fallthru
      _
    // Predicated region
    $region50: #{tpu_custom_call.1} parent=1 // pred_check
      _
    $region51: #{tpu_custom_call.1} parent=1 // pred_check_branch
      %4244 = sbr.rel (0) target = $region53
    $region52: #{tpu_custom_call.1} parent=1 // pred_region
      %4246 = vsyncadd [#allocation4], 0
      %s4247 = sshll.u32 [#allocation10], 4
      %s4248 = int_to_ptr.vmem [resolvable:$true] %s4247
      %s4249 = sshll.u32 %s5, 4
      %s4250 = int_to_ptr.hbm [resolvable:$true] %s4249
      %4255 = dma.vmem_to_hbm [thread:$0]  %s4248, 4096, %s4250, [#allocation4], 128, 128, 8
    $region53: #{tpu_custom_call.1} parent=1 // pred_fallthru
      _
    // Predicated region
    $region54: #{tpu_custom_call.1} parent=1 // pred_check
      _
    $region55: #{tpu_custom_call.1} parent=1 // pred_check_branch
      %4257 = sbr.rel (0) target = $region57
    $region56: #{tpu_custom_call.1} parent=1 // pred_region
      %4259 = dma.done [#allocation4], 4096
    $region57: #{tpu_custom_call.1} parent=1 // pred_fallthru
      _
    %4260 = vsyncpa [#allocation3], 1
    %4261 = vsyncpa [#allocation6], 1
    %4262 = vsyncpa [#allocation9], 1
    %4263 = vsyncpa [#allocation4], 1

</llo_original>
